<compile_context>
chip_gen: v7x
topology: tpu7x:2x2x1
jax: 0.10.0
libtpu: 0.0.40
codegen_flags: <defaults>
</compile_context>

<pallas_src>
import jax
import jax.numpy as jnp
from jax.experimental import pallas as pl
from jax.experimental.pallas import tpu as pltpu

# ---- module hyper-parameters (defaults of callPredictor.__init__) ----
INPUT_CHANNEL = 1
NHID = 8
N_LEVEL = 8
KERNEL_SIZE = 2
HIDDEN = 8
LABEL = 1
C = NHID

TARGET_M_ROWS = 256     # sublane rows per grid step (fills the 256-row MXU on v6e/v7x)


def _ceil_div(a, b):
    return -(-a // b)


# --------------------------------------------------------------------------------------
# Pallas kernel factory: full forward (TCN -> Linear+ReLU -> attention output layer).
# Activations: (M, lanes) with M = NG * T_pad (NG batch groups stacked on sublanes),
# lanes = Bt * channels (batch x channel on the 128-wide lane axis).
# --------------------------------------------------------------------------------------
def _make_kernel(n_level, T_real, T_pad, NG, has_prev, has_down):
    M = NG * T_pad

    def kernel(*refs):
        x_ref = refs[0]
        i = 1
        conv_w = refs[i:i + 2 * n_level]; i += 2 * n_level     # per-conv block-diag weights
        convb_ref = refs[i]; i += 1                            # (2L, 1, NC) tiled biases
        if has_down:
            wd_ref = refs[i]; bd_ref = refs[i + 1]; i += 2     # layer-0 downsample
        linw_ref = refs[i]; linb_ref = refs[i + 1]
        usel_ref = refs[i + 2]; finsel_ref = refs[i + 3]; finb_ref = refs[i + 4]
        out_ref = refs[i + 5]

        x_in = x_ref[0]                      # (M, Bt*cin) f32, true input width (no 0-pad)

        # Local time index within each stacked batch group.  Built from one iota and
        # NG-1 static compares (no vector int-mod needed); only materialized when used.
        if NG > 1 or T_pad > T_real:
            row = jax.lax.broadcasted_iota(jnp.int32, (M, 1), 0)
            grp = jnp.zeros((M, 1), jnp.int32)
            for g in range(1, NG):
                grp = grp + (row >= g * T_pad).astype(jnp.int32)
            t_local = row - grp * T_pad      # (M, 1), values in [0, T_pad)
        else:
            t_local = None

        def conv(a, w_ref, bias, d, prev_tap):
            """Causal dilated conv (kernel_size=2) + bias + ReLU (dropout = id in eval)."""
            K = a.shape[1]
            if prev_tap:
                # prev[t] = a[t-d] within each group, 0 for local t < d.
                prev = jnp.concatenate(
                    [jnp.zeros((d, K), jnp.float32), a[:M - d, :]], axis=0)
                if NG > 1:
                    # kill rows that leaked across a group boundary
                    prev = jnp.where(t_local < d, 0.0, prev)
                if K % 128 == 0:
                    # lane-aligned concat -> single fused K=2*NC dot (256-wide MXU).
                    a_in = jnp.concatenate([prev, a], axis=1).astype(jnp.bfloat16)
                    o = jnp.dot(a_in, w_ref[...],
                                preferred_element_type=jnp.float32)
                else:
                    # narrow input (layer 0, Bt*cin < 128): two small dots instead of a
                    # sub-vreg lane concatenate.
                    w_full = w_ref[...]
                    o = (jnp.dot(prev.astype(jnp.bfloat16), w_full[:K, :],
                                 preferred_element_type=jnp.float32)
                         + jnp.dot(a.astype(jnp.bfloat16), w_full[K:, :],
                                   preferred_element_type=jnp.float32))
            else:
                # dilation >= seq len: previous tap only sees zero padding -> dropped.
                o = jnp.dot(a.astype(jnp.bfloat16), w_ref[...],
                            preferred_element_type=jnp.float32)
            return jnp.maximum(o + bias, 0.0)

        # ---- Temporal Conv Net: n_level residual blocks, dilation 2**l ----
        h = x_in
        for l in range(n_level):
            d = 2 ** l
            o = conv(h, conv_w[2 * l],     convb_ref[2 * l],     d, has_prev[l])
            o = conv(o, conv_w[2 * l + 1], convb_ref[2 * l + 1], d, has_prev[l])
            if l == 0 and has_down:
                res = (jnp.dot(h.astype(jnp.bfloat16), wd_ref[...],
                               preferred_element_type=jnp.float32) + bd_ref[...])
            else:
                res = h                      # identity residual (in == out channels)
            h = jnp.maximum(o + res, 0.0)

        # ---- Linear + ReLU ----
        hid = jnp.maximum(
            jnp.dot(h.astype(jnp.bfloat16), linw_ref[...],
                    preferred_element_type=jnp.float32) + linb_ref[...], 0.0)
        hid_bf = hid.astype(jnp.bfloat16)                      # (M, Bt*HIDDEN)

        # ---- OutputLayer (label_size == 1): softmax over time per batch column ----
        att = jnp.dot(hid_bf, usel_ref[...],
                      preferred_element_type=jnp.float32)      # (M, Bt) f32
        fhid = jnp.dot(hid_bf, finsel_ref[...],
                       preferred_element_type=jnp.float32)     # (M, Bt) f32
        if T_pad > T_real:
            att = jnp.where(t_local < T_real, att, -1e30)      # mask padded time (f32)

        rows = []
        for g in range(NG):                                    # static unroll, NG <= 8
            a_g = att[g * T_pad:(g + 1) * T_pad, :]
            f_g = fhid[g * T_pad:(g + 1) * T_pad, :]
            m_g = jnp.max(a_g, axis=0, keepdims=True)
            e_g = jnp.exp(a_g - m_g)
            s_g = jnp.sum(e_g, axis=0, keepdims=True)
            inv = pl.reciprocal(s_g, approx=True)
            inv = inv * (2.0 - s_g * inv)    # one Newton step -> ~f32-exact reciprocal
            rows.append(jnp.sum(e_g * f_g, axis=0, keepdims=True) * inv)   # (1, Bt)
        logits = jnp.concatenate(rows, axis=0) + finb_ref[...]             # (NG, Bt)
        out_ref[...] = logits[None]                                        # (1, NG, Bt)

    return kernel


# --------------------------------------------------------------------------------------
# Parameter packing: torch-style weights -> block-diagonal, batch-tiled bf16 weights
# --------------------------------------------------------------------------------------
def pack_params(layers, lin_w, lin_b, U_w, fin_w, fin_b, T, Bt=None):
    nhid = lin_w.shape[1]
    hidden = lin_w.shape[0]
    assert U_w.shape[0] == 1 and fin_w.shape[0] == 1, "label_size must be 1"
    # TODO(synk): label_size > 1 would need U_sel / fin_sel widened to Bt*label columns.
    c = nhid
    if Bt is None:
        Bt = max(1, 128 // c)          # fill the 128-lane vreg width (Bt=16 for nhid=8)
    eye_bt = jnp.eye(Bt, dtype=jnp.float32)

    def blk(small):                    # (a, b) -> block-diagonal (Bt*a, Bt*b), bf16
        return jnp.kron(eye_bt, small.astype(jnp.float32)).astype(jnp.bfloat16)

    conv_ws, conv_bs = [], []
    for l, p in enumerate(layers):
        d = 2 ** l
        for wname, bname in (("w1", "b1"), ("w2", "b2")):
            w = p[wname]                        # torch conv weight (C_out, cin, 2)
            cur = blk(w[:, :, 1].T)             # (Bt*cin, Bt*c)
            if d < T:                           # fused two-tap weight (prev rows first)
                prev = blk(w[:, :, 0].T)
                conv_ws.append(jnp.concatenate([prev, cur], axis=0))
            else:                               # dilation >= T: current tap only
                conv_ws.append(cur)
            conv_bs.append(jnp.tile(p[bname].astype(jnp.float32), Bt).reshape(1, Bt * c))
    conv_b = jnp.stack(conv_bs)                 # (2L, 1, Bt*c) f32

    p0 = layers[0]
    if p0.get("wd") is not None:
        wd_blk = blk(p0["wd"][:, :, 0].T)       # (Bt*cin0, Bt*c)
        bd = jnp.tile(p0["bd"].astype(jnp.float32), Bt).reshape(1, Bt * c)
    else:
        wd_blk, bd = None, None

    return dict(
        conv_w=tuple(conv_ws),
        conv_b=conv_b,
        wd=wd_blk, bd=bd,
        lin_w=blk(lin_w.T),                                          # (Bt*nhid, Bt*hidden)
        lin_b=jnp.tile(lin_b.astype(jnp.float32), Bt).reshape(1, Bt * hidden),
        u_sel=blk(U_w.T),                                            # (Bt*hidden, Bt)
        fin_sel=blk(fin_w.T),                                        # (Bt*hidden, Bt)
        fin_b=fin_b.astype(jnp.float32).reshape(1, 1),
    )


# --------------------------------------------------------------------------------------
# Wrapper: input re-layout + pallas_call
# --------------------------------------------------------------------------------------
@jax.jit
def call_predictor_pallas(x, params):
    B, T, n_feat = x.shape
    assert T >= 2
    conv_w = params["conv_w"]
    n_level = len(conv_w) // 2
    Bt = params["u_sel"].shape[1]
    NC = params["lin_w"].shape[0]                        # Bt * nhid
    has_down = params["wd"] is not None

    has_prev = tuple(conv_w[2 * l + 1].shape[0] == 2 * NC for l in range(n_level))
    for l in range(n_level):
        assert has_prev[l] == (2 ** l < T), "params were packed for a different seq length"
    assert conv_w[0].shape[0] == (2 if has_prev[0] else 1) * Bt * n_feat, \
        "params were packed for a different input_channel"

    T_pad = _ceil_div(T, 8) * 8
    n_grp = _ceil_div(B, Bt)                             # batch groups of Bt sequences
    NG = min(max(1, TARGET_M_ROWS // T_pad), n_grp)      # groups stacked per grid step
    G = _ceil_div(n_grp, NG)
    if G == 1 and n_grp > 1:                             # v7x: keep both TensorCores busy
        NG = _ceil_div(n_grp, 2)
        G = _ceil_div(n_grp, NG)
    # TODO(synk): for B <= Bt a smaller Bt at pack time would let both v7x cores work.
    M = NG * T_pad
    B_pad = G * NG * Bt

    # (B, T, n_feat) -> zero-pad -> (G, M, Bt*n_feat): batch groups stacked on sublanes,
    # (batch x feature) on lanes.  No channel zero-padding (true cin keeps HBM traffic low).
    xp = jnp.pad(x.astype(jnp.float32),
                 ((0, B_pad - B), (0, T_pad - T), (0, 0)))
    xp = (xp.reshape(G, NG, Bt, T_pad, n_feat)
            .transpose(0, 1, 3, 2, 4)
            .reshape(G, M, Bt * n_feat))

    kernel = _make_kernel(n_level=n_level, T_real=T, T_pad=T_pad, NG=NG,
                          has_prev=has_prev, has_down=has_down)

    inputs = [xp] + list(conv_w) + [params["conv_b"]]
    if has_down:
        inputs += [params["wd"], params["bd"]]
    inputs += [params["lin_w"], params["lin_b"],
               params["u_sel"], params["fin_sel"], params["fin_b"]]

    def _const_spec(a):
        nd = a.ndim
        return pl.BlockSpec(a.shape, lambda g, _n=nd: (0,) * _n)

    in_specs = ([pl.BlockSpec((1, M, Bt * n_feat), lambda g: (g, 0, 0))]
                + [_const_spec(a) for a in inputs[1:]])

    out = pl.pallas_call(
        kernel,
        out_shape=jax.ShapeDtypeStruct((G, NG, Bt), jnp.float32),
        grid_spec=pltpu.PrefetchScalarGridSpec(
            num_scalar_prefetch=0,
            grid=(G,),
            in_specs=in_specs,
            out_specs=pl.BlockSpec((1, NG, Bt), lambda g: (g, 0, 0)),
        ),
        compiler_params=pltpu.CompilerParams(
            dimension_semantics=("parallel",)),
    )(*inputs)

    logits = out.reshape(G * NG * Bt)[:B].reshape(B, LABEL)
    return None, logits            # matches torch forward: (None, logits)


# --------------------------------------------------------------------------------------
# Pure-JAX reference (channels-last).  dot_dtype=bf16 reproduces the kernel's MXU
# rounding exactly; dot_dtype=f32 is the original module's full-precision numerics.
# --------------------------------------------------------------------------------------
def _causal_conv_ref(h, w, b, d, dd):
    T = h.shape[1]
    hprev = jnp.pad(h, ((0, 0), (d, 0), (0, 0)))[:, :T, :]
    return (jnp.einsum('btc,oc->bto', hprev.astype(dd), w[:, :, 0].astype(dd),
                       preferred_element_type=jnp.float32)
            + jnp.einsum('btc,oc->bto', h.astype(dd), w[:, :, 1].astype(dd),
                         preferred_element_type=jnp.float32) + b)


def call_predictor_ref(x, layers, lin_w, lin_b, U_w, fin_w, fin_b,
                       dot_dtype=jnp.float32):
    dd = dot_dtype
    h = x.astype(jnp.float32)                       # (B, T, cin)
    for l, p in enumerate(layers):
        d = 2 ** l
        o = jax.nn.relu(_causal_conv_ref(h, p['w1'], p['b1'], d, dd))
        o = jax.nn.relu(_causal_conv_ref(o, p['w2'], p['b2'], d, dd))
        if p['wd'] is not None:
            res = jnp.einsum('btc,oc->bto', h.astype(dd), p['wd'][:, :, 0].astype(dd),
                             preferred_element_type=jnp.float32) + p['bd']
        else:
            res = h
        h = jax.nn.relu(o + res)
    hid = jax.nn.relu(jnp.einsum('btc,hc->bth', h.astype(dd), lin_w.astype(dd),
                                 preferred_element_type=jnp.float32) + lin_b)
    att = jnp.einsum('lh,bth->blt', U_w.astype(dd), hid.astype(dd),
                     preferred_element_type=jnp.float32)             # (B, 1, T)
    alpha = jax.nn.softmax(att, axis=2)
    fhid = jnp.einsum('lh,bth->blt', fin_w.astype(dd), hid.astype(dd),
                      preferred_element_type=jnp.float32)            # (B, 1, T)
    logits = jnp.sum(alpha * fhid, axis=2) + fin_b                   # (B, 1)
    return None, logits


# --------------------------------------------------------------------------------------
if __name__ == "__main__":
    key = jax.random.PRNGKey(0)
    keys = iter(jax.random.split(key, 64))

    def rnd(shape, scale=0.25):
        return (scale * jax.random.normal(next(keys), shape)).astype(jnp.float32)

    # Deterministic synthetic parameters (shapes follow the torch module __init__).
    layers = []
    for l in range(N_LEVEL):
        cin = INPUT_CHANNEL if l == 0 else NHID
        layers.append(dict(
            w1=rnd((NHID, cin, KERNEL_SIZE)), b1=rnd((NHID,), 0.1),
            w2=rnd((NHID, NHID, KERNEL_SIZE)), b2=rnd((NHID,), 0.1),
            wd=rnd((NHID, cin, 1)) if cin != NHID else None,
            bd=rnd((NHID,), 0.1) if cin != NHID else None,
        ))
    lin_w = rnd((HIDDEN, NHID))
    lin_b = rnd((HIDDEN,), 0.1)
    U_w = rnd((LABEL, HIDDEN))
    fin_w = rnd((LABEL, HIDDEN))
    fin_b = rnd((LABEL,), 0.1)

    # Example input: input_data['X'] of shape (n_case, n_visit, n_feat=1).
    # B = 30 sequences -> 2 grid steps of one 16-wide batch group each (both v7x cores
    # get work); larger B automatically stacks up to 256//T_pad groups per step.
    B, T = 30, 32
    x = jax.random.normal(jax.random.PRNGKey(42), (B, T, INPUT_CHANNEL), jnp.float32)

    params = pack_params(layers, lin_w, lin_b, U_w, fin_w, fin_b, T=T)

    _, logits = call_predictor_pallas(x, params)
    logits = jax.block_until_ready(logits)

    # bf16-matched reference (same dot rounding as the kernel) -> tight check.
    _, ref_bf = call_predictor_ref(x, layers, lin_w, lin_b, U_w, fin_w, fin_b,
                                   dot_dtype=jnp.bfloat16)
    # full-f32 reference (true module numerics) -> loose sanity bound on bf16 error.
    _, ref_f32 = call_predictor_ref(x, layers, lin_w, lin_b, U_w, fin_w, fin_b,
                                    dot_dtype=jnp.float32)
    ref_bf = jax.block_until_ready(ref_bf)
    ref_f32 = jax.block_until_ready(ref_f32)

    assert logits.shape == (B, LABEL), logits.shape

    err = float(jnp.max(jnp.abs(logits - ref_bf)))
    scale = max(1.0, float(jnp.max(jnp.abs(ref_bf))))
    assert err < 2e-3 * scale, f"mismatch vs bf16-matched reference: max abs err {err}"

    err32 = float(jnp.max(jnp.abs(logits - ref_f32)))
    scale32 = max(1.0, float(jnp.max(jnp.abs(ref_f32))))
    assert err32 < 1e-1 * scale32, f"bf16 deviation vs f32 reference too large: {err32}"

    print("KERNEL_OK")
</pallas_src>

<mosaic_0001>
module attributes {stable_mosaic.version = 11 : i64} {
  func.func @kernel(%arg0: i32, %arg1: memref<1x32x16xf32, #tpu.memory_space<vmem>>, %arg2: memref<32x128xbf16, #tpu.memory_space<vmem>>, %arg3: memref<256x128xbf16, #tpu.memory_space<vmem>>, %arg4: memref<256x128xbf16, #tpu.memory_space<vmem>>, %arg5: memref<256x128xbf16, #tpu.memory_space<vmem>>, %arg6: memref<256x128xbf16, #tpu.memory_space<vmem>>, %arg7: memref<256x128xbf16, #tpu.memory_space<vmem>>, %arg8: memref<256x128xbf16, #tpu.memory_space<vmem>>, %arg9: memref<256x128xbf16, #tpu.memory_space<vmem>>, %arg10: memref<256x128xbf16, #tpu.memory_space<vmem>>, %arg11: memref<256x128xbf16, #tpu.memory_space<vmem>>, %arg12: memref<128x128xbf16, #tpu.memory_space<vmem>>, %arg13: memref<128x128xbf16, #tpu.memory_space<vmem>>, %arg14: memref<128x128xbf16, #tpu.memory_space<vmem>>, %arg15: memref<128x128xbf16, #tpu.memory_space<vmem>>, %arg16: memref<128x128xbf16, #tpu.memory_space<vmem>>, %arg17: memref<128x128xbf16, #tpu.memory_space<vmem>>, %arg18: memref<16x1x128xf32, #tpu.memory_space<vmem>>, %arg19: memref<16x128xbf16, #tpu.memory_space<vmem>>, %arg20: memref<1x128xf32, #tpu.memory_space<vmem>>, %arg21: memref<128x128xbf16, #tpu.memory_space<vmem>>, %arg22: memref<1x128xf32, #tpu.memory_space<vmem>>, %arg23: memref<128x16xbf16, #tpu.memory_space<vmem>>, %arg24: memref<128x16xbf16, #tpu.memory_space<vmem>>, %arg25: memref<1x1xf32, #tpu.memory_space<vmem>>, %arg26: memref<1x1x16xf32, #tpu.memory_space<vmem>>) attributes {dimension_semantics = [#tpu.dimension_semantics<parallel>], iteration_bounds = array<i64: 2>, scalar_prefetch = 0 : i64, scratch_operands = 0 : i64, tpu.core_type = #tpu.core_type<tc>, window_params = [{transform_indices = @transform_0, window_bounds = array<i64: 1, 32, 16>}, {pipeline_mode = #tpu.pipeline_mode<synchronous>, transform_indices = @transform_1, window_bounds = array<i64: 32, 128>}, {pipeline_mode = #tpu.pipeline_mode<synchronous>, transform_indices = @transform_2, window_bounds = array<i64: 256, 128>}, {pipeline_mode = #tpu.pipeline_mode<synchronous>, transform_indices = @transform_3, window_bounds = array<i64: 256, 128>}, {pipeline_mode = #tpu.pipeline_mode<synchronous>, transform_indices = @transform_4, window_bounds = array<i64: 256, 128>}, {pipeline_mode = #tpu.pipeline_mode<synchronous>, transform_indices = @transform_5, window_bounds = array<i64: 256, 128>}, {pipeline_mode = #tpu.pipeline_mode<synchronous>, transform_indices = @transform_6, window_bounds = array<i64: 256, 128>}, {pipeline_mode = #tpu.pipeline_mode<synchronous>, transform_indices = @transform_7, window_bounds = array<i64: 256, 128>}, {pipeline_mode = #tpu.pipeline_mode<synchronous>, transform_indices = @transform_8, window_bounds = array<i64: 256, 128>}, {pipeline_mode = #tpu.pipeline_mode<synchronous>, transform_indices = @transform_9, window_bounds = array<i64: 256, 128>}, {pipeline_mode = #tpu.pipeline_mode<synchronous>, transform_indices = @transform_10, window_bounds = array<i64: 256, 128>}, {pipeline_mode = #tpu.pipeline_mode<synchronous>, transform_indices = @transform_11, window_bounds = array<i64: 128, 128>}, {pipeline_mode = #tpu.pipeline_mode<synchronous>, transform_indices = @transform_12, window_bounds = array<i64: 128, 128>}, {pipeline_mode = #tpu.pipeline_mode<synchronous>, transform_indices = @transform_13, window_bounds = array<i64: 128, 128>}, {pipeline_mode = #tpu.pipeline_mode<synchronous>, transform_indices = @transform_14, window_bounds = array<i64: 128, 128>}, {pipeline_mode = #tpu.pipeline_mode<synchronous>, transform_indices = @transform_15, window_bounds = array<i64: 128, 128>}, {pipeline_mode = #tpu.pipeline_mode<synchronous>, transform_indices = @transform_16, window_bounds = array<i64: 128, 128>}, {pipeline_mode = #tpu.pipeline_mode<synchronous>, transform_indices = @transform_17, window_bounds = array<i64: 16, 1, 128>}, {pipeline_mode = #tpu.pipeline_mode<synchronous>, transform_indices = @transform_18, window_bounds = array<i64: 16, 128>}, {pipeline_mode = #tpu.pipeline_mode<synchronous>, transform_indices = @transform_19, window_bounds = array<i64: 1, 128>}, {pipeline_mode = #tpu.pipeline_mode<synchronous>, transform_indices = @transform_20, window_bounds = array<i64: 128, 128>}, {pipeline_mode = #tpu.pipeline_mode<synchronous>, transform_indices = @transform_21, window_bounds = array<i64: 1, 128>}, {pipeline_mode = #tpu.pipeline_mode<synchronous>, transform_indices = @transform_22, window_bounds = array<i64: 128, 16>}, {pipeline_mode = #tpu.pipeline_mode<synchronous>, transform_indices = @transform_23, window_bounds = array<i64: 128, 16>}, {pipeline_mode = #tpu.pipeline_mode<synchronous>, transform_indices = @transform_24, window_bounds = array<i64: 1, 1>}, {transform_indices = @transform_25, window_bounds = array<i64: 1, 1, 16>}]} {
    %c0 = arith.constant 0 : index
    %c0_0 = arith.constant 0 : index
    %c0_1 = arith.constant 0 : index
    %0 = vector.load %arg1[%c0, %c0_0, %c0_1] : memref<1x32x16xf32, #tpu.memory_space<vmem>>, vector<1x32x16xf32>
    %1 = vector.shape_cast %0 : vector<1x32x16xf32> to vector<32x16xf32>
    %c0_2 = arith.constant 0 : index
    %c0_3 = arith.constant 0 : index
    %c0_4 = arith.constant 0 : index
    %2 = vector.load %arg18[%c0_2, %c0_3, %c0_4] : memref<16x1x128xf32, #tpu.memory_space<vmem>>, vector<1x1x128xf32>
    %3 = vector.shape_cast %2 : vector<1x1x128xf32> to vector<1x128xf32>
    %cst = arith.constant 0.000000e+00 : f32
    %4 = vector.broadcast %cst : f32 to vector<1x16xf32>
    %5 = vector.extract_strided_slice %1 {offsets = [0, 0], sizes = [31, 16], strides = [1, 1]} : vector<32x16xf32> to vector<31x16xf32>
    %6 = tpu.concatenate %4, %5 in 0 : vector<1x16xf32>, vector<31x16xf32> -> vector<32x16xf32>
    %c0_5 = arith.constant 0 : index
    %c0_6 = arith.constant 0 : index
    %7 = vector.load %arg2[%c0_5, %c0_6] : memref<32x128xbf16, #tpu.memory_space<vmem>>, vector<32x128xbf16>
    %8 = arith.truncf %6 : vector<32x16xf32> to vector<32x16xbf16>
    %9 = vector.extract_strided_slice %7 {offsets = [0, 0], sizes = [16, 128], strides = [1, 1]} : vector<32x128xbf16> to vector<16x128xbf16>
    %cst_7 = arith.constant dense<0.000000e+00> : vector<32x128xf32>
    %10 = tpu.matmul %8, %9, %cst_7 {dimension_numbers = #tpu.dot_dimension_numbers<[1], [0], [0], [1], [0, 0, 1, 1], [], []>} : vector<32x16xbf16>, vector<16x128xbf16>, vector<32x128xf32> -> vector<32x128xf32>
    %11 = arith.truncf %1 : vector<32x16xf32> to vector<32x16xbf16>
    %12 = vector.extract_strided_slice %7 {offsets = [16, 0], sizes = [16, 128], strides = [1, 1]} : vector<32x128xbf16> to vector<16x128xbf16>
    %cst_8 = arith.constant dense<0.000000e+00> : vector<32x128xf32>
    %13 = tpu.matmul %11, %12, %cst_8 {dimension_numbers = #tpu.dot_dimension_numbers<[1], [0], [0], [1], [0, 0, 1, 1], [], []>} : vector<32x16xbf16>, vector<16x128xbf16>, vector<32x128xf32> -> vector<32x128xf32>
    %14 = arith.addf %10, %13 : vector<32x128xf32>
    %15 = vector.broadcast %3 : vector<1x128xf32> to vector<32x128xf32>
    %16 = arith.addf %14, %15 : vector<32x128xf32>
    %cst_9 = arith.constant 0.000000e+00 : f32
    %17 = vector.broadcast %cst_9 : f32 to vector<32x128xf32>
    %18 = arith.maximumf %16, %17 : vector<32x128xf32>
    %c1 = arith.constant 1 : index
    %c0_10 = arith.constant 0 : index
    %c0_11 = arith.constant 0 : index
    %19 = vector.load %arg18[%c1, %c0_10, %c0_11] : memref<16x1x128xf32, #tpu.memory_space<vmem>>, vector<1x1x128xf32>
    %20 = vector.shape_cast %19 : vector<1x1x128xf32> to vector<1x128xf32>
    %cst_12 = arith.constant 0.000000e+00 : f32
    %21 = vector.broadcast %cst_12 : f32 to vector<1x128xf32>
    %22 = vector.extract_strided_slice %18 {offsets = [0, 0], sizes = [31, 128], strides = [1, 1]} : vector<32x128xf32> to vector<31x128xf32>
    %23 = tpu.concatenate %21, %22 in 0 : vector<1x128xf32>, vector<31x128xf32> -> vector<32x128xf32>
    %24 = tpu.concatenate %23, %18 in 1 : vector<32x128xf32>, vector<32x128xf32> -> vector<32x256xf32>
    %25 = arith.truncf %24 : vector<32x256xf32> to vector<32x256xbf16>
    %c0_13 = arith.constant 0 : index
    %c0_14 = arith.constant 0 : index
    %26 = vector.load %arg3[%c0_13, %c0_14] : memref<256x128xbf16, #tpu.memory_space<vmem>>, vector<256x128xbf16>
    %cst_15 = arith.constant dense<0.000000e+00> : vector<32x128xf32>
    %27 = tpu.matmul %25, %26, %cst_15 {dimension_numbers = #tpu.dot_dimension_numbers<[1], [0], [0], [1], [0, 0, 1, 1], [], []>} : vector<32x256xbf16>, vector<256x128xbf16>, vector<32x128xf32> -> vector<32x128xf32>
    %28 = vector.broadcast %20 : vector<1x128xf32> to vector<32x128xf32>
    %29 = arith.addf %27, %28 : vector<32x128xf32>
    %cst_16 = arith.constant 0.000000e+00 : f32
    %30 = vector.broadcast %cst_16 : f32 to vector<32x128xf32>
    %31 = arith.maximumf %29, %30 : vector<32x128xf32>
    %32 = arith.truncf %1 : vector<32x16xf32> to vector<32x16xbf16>
    %c0_17 = arith.constant 0 : index
    %c0_18 = arith.constant 0 : index
    %33 = vector.load %arg19[%c0_17, %c0_18] : memref<16x128xbf16, #tpu.memory_space<vmem>>, vector<16x128xbf16>
    %cst_19 = arith.constant dense<0.000000e+00> : vector<32x128xf32>
    %34 = tpu.matmul %32, %33, %cst_19 {dimension_numbers = #tpu.dot_dimension_numbers<[1], [0], [0], [1], [0, 0, 1, 1], [], []>} : vector<32x16xbf16>, vector<16x128xbf16>, vector<32x128xf32> -> vector<32x128xf32>
    %c0_20 = arith.constant 0 : index
    %c0_21 = arith.constant 0 : index
    %35 = vector.load %arg20[%c0_20, %c0_21] : memref<1x128xf32, #tpu.memory_space<vmem>>, vector<1x128xf32>
    %36 = vector.broadcast %35 : vector<1x128xf32> to vector<32x128xf32>
    %37 = arith.addf %34, %36 : vector<32x128xf32>
    %38 = arith.addf %31, %37 : vector<32x128xf32>
    %cst_22 = arith.constant 0.000000e+00 : f32
    %39 = vector.broadcast %cst_22 : f32 to vector<32x128xf32>
    %40 = arith.maximumf %38, %39 : vector<32x128xf32>
    %c2 = arith.constant 2 : index
    %c0_23 = arith.constant 0 : index
    %c0_24 = arith.constant 0 : index
    %41 = vector.load %arg18[%c2, %c0_23, %c0_24] : memref<16x1x128xf32, #tpu.memory_space<vmem>>, vector<1x1x128xf32>
    %42 = vector.shape_cast %41 : vector<1x1x128xf32> to vector<1x128xf32>
    %cst_25 = arith.constant 0.000000e+00 : f32
    %43 = vector.broadcast %cst_25 : f32 to vector<2x128xf32>
    %44 = vector.extract_strided_slice %40 {offsets = [0, 0], sizes = [30, 128], strides = [1, 1]} : vector<32x128xf32> to vector<30x128xf32>
    %45 = tpu.concatenate %43, %44 in 0 : vector<2x128xf32>, vector<30x128xf32> -> vector<32x128xf32>
    %46 = tpu.concatenate %45, %40 in 1 : vector<32x128xf32>, vector<32x128xf32> -> vector<32x256xf32>
    %47 = arith.truncf %46 : vector<32x256xf32> to vector<32x256xbf16>
    %c0_26 = arith.constant 0 : index
    %c0_27 = arith.constant 0 : index
    %48 = vector.load %arg4[%c0_26, %c0_27] : memref<256x128xbf16, #tpu.memory_space<vmem>>, vector<256x128xbf16>
    %cst_28 = arith.constant dense<0.000000e+00> : vector<32x128xf32>
    %49 = tpu.matmul %47, %48, %cst_28 {dimension_numbers = #tpu.dot_dimension_numbers<[1], [0], [0], [1], [0, 0, 1, 1], [], []>} : vector<32x256xbf16>, vector<256x128xbf16>, vector<32x128xf32> -> vector<32x128xf32>
    %50 = vector.broadcast %42 : vector<1x128xf32> to vector<32x128xf32>
    %51 = arith.addf %49, %50 : vector<32x128xf32>
    %cst_29 = arith.constant 0.000000e+00 : f32
    %52 = vector.broadcast %cst_29 : f32 to vector<32x128xf32>
    %53 = arith.maximumf %51, %52 : vector<32x128xf32>
    %c3 = arith.constant 3 : index
    %c0_30 = arith.constant 0 : index
    %c0_31 = arith.constant 0 : index
    %54 = vector.load %arg18[%c3, %c0_30, %c0_31] : memref<16x1x128xf32, #tpu.memory_space<vmem>>, vector<1x1x128xf32>
    %55 = vector.shape_cast %54 : vector<1x1x128xf32> to vector<1x128xf32>
    %cst_32 = arith.constant 0.000000e+00 : f32
    %56 = vector.broadcast %cst_32 : f32 to vector<2x128xf32>
    %57 = vector.extract_strided_slice %53 {offsets = [0, 0], sizes = [30, 128], strides = [1, 1]} : vector<32x128xf32> to vector<30x128xf32>
    %58 = tpu.concatenate %56, %57 in 0 : vector<2x128xf32>, vector<30x128xf32> -> vector<32x128xf32>
    %59 = tpu.concatenate %58, %53 in 1 : vector<32x128xf32>, vector<32x128xf32> -> vector<32x256xf32>
    %60 = arith.truncf %59 : vector<32x256xf32> to vector<32x256xbf16>
    %c0_33 = arith.constant 0 : index
    %c0_34 = arith.constant 0 : index
    %61 = vector.load %arg5[%c0_33, %c0_34] : memref<256x128xbf16, #tpu.memory_space<vmem>>, vector<256x128xbf16>
    %cst_35 = arith.constant dense<0.000000e+00> : vector<32x128xf32>
    %62 = tpu.matmul %60, %61, %cst_35 {dimension_numbers = #tpu.dot_dimension_numbers<[1], [0], [0], [1], [0, 0, 1, 1], [], []>} : vector<32x256xbf16>, vector<256x128xbf16>, vector<32x128xf32> -> vector<32x128xf32>
    %63 = vector.broadcast %55 : vector<1x128xf32> to vector<32x128xf32>
    %64 = arith.addf %62, %63 : vector<32x128xf32>
    %cst_36 = arith.constant 0.000000e+00 : f32
    %65 = vector.broadcast %cst_36 : f32 to vector<32x128xf32>
    %66 = arith.maximumf %64, %65 : vector<32x128xf32>
    %67 = arith.addf %66, %40 : vector<32x128xf32>
    %cst_37 = arith.constant 0.000000e+00 : f32
    %68 = vector.broadcast %cst_37 : f32 to vector<32x128xf32>
    %69 = arith.maximumf %67, %68 : vector<32x128xf32>
    %c4 = arith.constant 4 : index
    %c0_38 = arith.constant 0 : index
    %c0_39 = arith.constant 0 : index
    %70 = vector.load %arg18[%c4, %c0_38, %c0_39] : memref<16x1x128xf32, #tpu.memory_space<vmem>>, vector<1x1x128xf32>
    %71 = vector.shape_cast %70 : vector<1x1x128xf32> to vector<1x128xf32>
    %cst_40 = arith.constant 0.000000e+00 : f32
    %72 = vector.broadcast %cst_40 : f32 to vector<4x128xf32>
    %73 = vector.extract_strided_slice %69 {offsets = [0, 0], sizes = [28, 128], strides = [1, 1]} : vector<32x128xf32> to vector<28x128xf32>
    %74 = tpu.concatenate %72, %73 in 0 : vector<4x128xf32>, vector<28x128xf32> -> vector<32x128xf32>
    %75 = tpu.concatenate %74, %69 in 1 : vector<32x128xf32>, vector<32x128xf32> -> vector<32x256xf32>
    %76 = arith.truncf %75 : vector<32x256xf32> to vector<32x256xbf16>
    %c0_41 = arith.constant 0 : index
    %c0_42 = arith.constant 0 : index
    %77 = vector.load %arg6[%c0_41, %c0_42] : memref<256x128xbf16, #tpu.memory_space<vmem>>, vector<256x128xbf16>
    %cst_43 = arith.constant dense<0.000000e+00> : vector<32x128xf32>
    %78 = tpu.matmul %76, %77, %cst_43 {dimension_numbers = #tpu.dot_dimension_numbers<[1], [0], [0], [1], [0, 0, 1, 1], [], []>} : vector<32x256xbf16>, vector<256x128xbf16>, vector<32x128xf32> -> vector<32x128xf32>
    %79 = vector.broadcast %71 : vector<1x128xf32> to vector<32x128xf32>
    %80 = arith.addf %78, %79 : vector<32x128xf32>
    %cst_44 = arith.constant 0.000000e+00 : f32
    %81 = vector.broadcast %cst_44 : f32 to vector<32x128xf32>
    %82 = arith.maximumf %80, %81 : vector<32x128xf32>
    %c5 = arith.constant 5 : index
    %c0_45 = arith.constant 0 : index
    %c0_46 = arith.constant 0 : index
    %83 = vector.load %arg18[%c5, %c0_45, %c0_46] : memref<16x1x128xf32, #tpu.memory_space<vmem>>, vector<1x1x128xf32>
    %84 = vector.shape_cast %83 : vector<1x1x128xf32> to vector<1x128xf32>
    %cst_47 = arith.constant 0.000000e+00 : f32
    %85 = vector.broadcast %cst_47 : f32 to vector<4x128xf32>
    %86 = vector.extract_strided_slice %82 {offsets = [0, 0], sizes = [28, 128], strides = [1, 1]} : vector<32x128xf32> to vector<28x128xf32>
    %87 = tpu.concatenate %85, %86 in 0 : vector<4x128xf32>, vector<28x128xf32> -> vector<32x128xf32>
    %88 = tpu.concatenate %87, %82 in 1 : vector<32x128xf32>, vector<32x128xf32> -> vector<32x256xf32>
    %89 = arith.truncf %88 : vector<32x256xf32> to vector<32x256xbf16>
    %c0_48 = arith.constant 0 : index
    %c0_49 = arith.constant 0 : index
    %90 = vector.load %arg7[%c0_48, %c0_49] : memref<256x128xbf16, #tpu.memory_space<vmem>>, vector<256x128xbf16>
    %cst_50 = arith.constant dense<0.000000e+00> : vector<32x128xf32>
    %91 = tpu.matmul %89, %90, %cst_50 {dimension_numbers = #tpu.dot_dimension_numbers<[1], [0], [0], [1], [0, 0, 1, 1], [], []>} : vector<32x256xbf16>, vector<256x128xbf16>, vector<32x128xf32> -> vector<32x128xf32>
    %92 = vector.broadcast %84 : vector<1x128xf32> to vector<32x128xf32>
    %93 = arith.addf %91, %92 : vector<32x128xf32>
    %cst_51 = arith.constant 0.000000e+00 : f32
    %94 = vector.broadcast %cst_51 : f32 to vector<32x128xf32>
    %95 = arith.maximumf %93, %94 : vector<32x128xf32>
    %96 = arith.addf %95, %69 : vector<32x128xf32>
    %cst_52 = arith.constant 0.000000e+00 : f32
    %97 = vector.broadcast %cst_52 : f32 to vector<32x128xf32>
    %98 = arith.maximumf %96, %97 : vector<32x128xf32>
    %c6 = arith.constant 6 : index
    %c0_53 = arith.constant 0 : index
    %c0_54 = arith.constant 0 : index
    %99 = vector.load %arg18[%c6, %c0_53, %c0_54] : memref<16x1x128xf32, #tpu.memory_space<vmem>>, vector<1x1x128xf32>
    %100 = vector.shape_cast %99 : vector<1x1x128xf32> to vector<1x128xf32>
    %cst_55 = arith.constant 0.000000e+00 : f32
    %101 = vector.broadcast %cst_55 : f32 to vector<8x128xf32>
    %102 = vector.extract_strided_slice %98 {offsets = [0, 0], sizes = [24, 128], strides = [1, 1]} : vector<32x128xf32> to vector<24x128xf32>
    %103 = tpu.concatenate %101, %102 in 0 : vector<8x128xf32>, vector<24x128xf32> -> vector<32x128xf32>
    %104 = tpu.concatenate %103, %98 in 1 : vector<32x128xf32>, vector<32x128xf32> -> vector<32x256xf32>
    %105 = arith.truncf %104 : vector<32x256xf32> to vector<32x256xbf16>
    %c0_56 = arith.constant 0 : index
    %c0_57 = arith.constant 0 : index
    %106 = vector.load %arg8[%c0_56, %c0_57] : memref<256x128xbf16, #tpu.memory_space<vmem>>, vector<256x128xbf16>
    %cst_58 = arith.constant dense<0.000000e+00> : vector<32x128xf32>
    %107 = tpu.matmul %105, %106, %cst_58 {dimension_numbers = #tpu.dot_dimension_numbers<[1], [0], [0], [1], [0, 0, 1, 1], [], []>} : vector<32x256xbf16>, vector<256x128xbf16>, vector<32x128xf32> -> vector<32x128xf32>
    %108 = vector.broadcast %100 : vector<1x128xf32> to vector<32x128xf32>
    %109 = arith.addf %107, %108 : vector<32x128xf32>
    %cst_59 = arith.constant 0.000000e+00 : f32
    %110 = vector.broadcast %cst_59 : f32 to vector<32x128xf32>
    %111 = arith.maximumf %109, %110 : vector<32x128xf32>
    %c7 = arith.constant 7 : index
    %c0_60 = arith.constant 0 : index
    %c0_61 = arith.constant 0 : index
    %112 = vector.load %arg18[%c7, %c0_60, %c0_61] : memref<16x1x128xf32, #tpu.memory_space<vmem>>, vector<1x1x128xf32>
    %113 = vector.shape_cast %112 : vector<1x1x128xf32> to vector<1x128xf32>
    %cst_62 = arith.constant 0.000000e+00 : f32
    %114 = vector.broadcast %cst_62 : f32 to vector<8x128xf32>
    %115 = vector.extract_strided_slice %111 {offsets = [0, 0], sizes = [24, 128], strides = [1, 1]} : vector<32x128xf32> to vector<24x128xf32>
    %116 = tpu.concatenate %114, %115 in 0 : vector<8x128xf32>, vector<24x128xf32> -> vector<32x128xf32>
    %117 = tpu.concatenate %116, %111 in 1 : vector<32x128xf32>, vector<32x128xf32> -> vector<32x256xf32>
    %118 = arith.truncf %117 : vector<32x256xf32> to vector<32x256xbf16>
    %c0_63 = arith.constant 0 : index
    %c0_64 = arith.constant 0 : index
    %119 = vector.load %arg9[%c0_63, %c0_64] : memref<256x128xbf16, #tpu.memory_space<vmem>>, vector<256x128xbf16>
    %cst_65 = arith.constant dense<0.000000e+00> : vector<32x128xf32>
    %120 = tpu.matmul %118, %119, %cst_65 {dimension_numbers = #tpu.dot_dimension_numbers<[1], [0], [0], [1], [0, 0, 1, 1], [], []>} : vector<32x256xbf16>, vector<256x128xbf16>, vector<32x128xf32> -> vector<32x128xf32>
    %121 = vector.broadcast %113 : vector<1x128xf32> to vector<32x128xf32>
    %122 = arith.addf %120, %121 : vector<32x128xf32>
    %cst_66 = arith.constant 0.000000e+00 : f32
    %123 = vector.broadcast %cst_66 : f32 to vector<32x128xf32>
    %124 = arith.maximumf %122, %123 : vector<32x128xf32>
    %125 = arith.addf %124, %98 : vector<32x128xf32>
    %cst_67 = arith.constant 0.000000e+00 : f32
    %126 = vector.broadcast %cst_67 : f32 to vector<32x128xf32>
    %127 = arith.maximumf %125, %126 : vector<32x128xf32>
    %c8 = arith.constant 8 : index
    %c0_68 = arith.constant 0 : index
    %c0_69 = arith.constant 0 : index
    %128 = vector.load %arg18[%c8, %c0_68, %c0_69] : memref<16x1x128xf32, #tpu.memory_space<vmem>>, vector<1x1x128xf32>
    %129 = vector.shape_cast %128 : vector<1x1x128xf32> to vector<1x128xf32>
    %cst_70 = arith.constant 0.000000e+00 : f32
    %130 = vector.broadcast %cst_70 : f32 to vector<16x128xf32>
    %131 = vector.extract_strided_slice %127 {offsets = [0, 0], sizes = [16, 128], strides = [1, 1]} : vector<32x128xf32> to vector<16x128xf32>
    %132 = tpu.concatenate %130, %131 in 0 : vector<16x128xf32>, vector<16x128xf32> -> vector<32x128xf32>
    %133 = tpu.concatenate %132, %127 in 1 : vector<32x128xf32>, vector<32x128xf32> -> vector<32x256xf32>
    %134 = arith.truncf %133 : vector<32x256xf32> to vector<32x256xbf16>
    %c0_71 = arith.constant 0 : index
    %c0_72 = arith.constant 0 : index
    %135 = vector.load %arg10[%c0_71, %c0_72] : memref<256x128xbf16, #tpu.memory_space<vmem>>, vector<256x128xbf16>
    %cst_73 = arith.constant dense<0.000000e+00> : vector<32x128xf32>
    %136 = tpu.matmul %134, %135, %cst_73 {dimension_numbers = #tpu.dot_dimension_numbers<[1], [0], [0], [1], [0, 0, 1, 1], [], []>} : vector<32x256xbf16>, vector<256x128xbf16>, vector<32x128xf32> -> vector<32x128xf32>
    %137 = vector.broadcast %129 : vector<1x128xf32> to vector<32x128xf32>
    %138 = arith.addf %136, %137 : vector<32x128xf32>
    %cst_74 = arith.constant 0.000000e+00 : f32
    %139 = vector.broadcast %cst_74 : f32 to vector<32x128xf32>
    %140 = arith.maximumf %138, %139 : vector<32x128xf32>
    %c9 = arith.constant 9 : index
    %c0_75 = arith.constant 0 : index
    %c0_76 = arith.constant 0 : index
    %141 = vector.load %arg18[%c9, %c0_75, %c0_76] : memref<16x1x128xf32, #tpu.memory_space<vmem>>, vector<1x1x128xf32>
    %142 = vector.shape_cast %141 : vector<1x1x128xf32> to vector<1x128xf32>
    %cst_77 = arith.constant 0.000000e+00 : f32
    %143 = vector.broadcast %cst_77 : f32 to vector<16x128xf32>
    %144 = vector.extract_strided_slice %140 {offsets = [0, 0], sizes = [16, 128], strides = [1, 1]} : vector<32x128xf32> to vector<16x128xf32>
    %145 = tpu.concatenate %143, %144 in 0 : vector<16x128xf32>, vector<16x128xf32> -> vector<32x128xf32>
    %146 = tpu.concatenate %145, %140 in 1 : vector<32x128xf32>, vector<32x128xf32> -> vector<32x256xf32>
    %147 = arith.truncf %146 : vector<32x256xf32> to vector<32x256xbf16>
    %c0_78 = arith.constant 0 : index
    %c0_79 = arith.constant 0 : index
    %148 = vector.load %arg11[%c0_78, %c0_79] : memref<256x128xbf16, #tpu.memory_space<vmem>>, vector<256x128xbf16>
    %cst_80 = arith.constant dense<0.000000e+00> : vector<32x128xf32>
    %149 = tpu.matmul %147, %148, %cst_80 {dimension_numbers = #tpu.dot_dimension_numbers<[1], [0], [0], [1], [0, 0, 1, 1], [], []>} : vector<32x256xbf16>, vector<256x128xbf16>, vector<32x128xf32> -> vector<32x128xf32>
    %150 = vector.broadcast %142 : vector<1x128xf32> to vector<32x128xf32>
    %151 = arith.addf %149, %150 : vector<32x128xf32>
    %cst_81 = arith.constant 0.000000e+00 : f32
    %152 = vector.broadcast %cst_81 : f32 to vector<32x128xf32>
    %153 = arith.maximumf %151, %152 : vector<32x128xf32>
    %154 = arith.addf %153, %127 : vector<32x128xf32>
    %cst_82 = arith.constant 0.000000e+00 : f32
    %155 = vector.broadcast %cst_82 : f32 to vector<32x128xf32>
    %156 = arith.maximumf %154, %155 : vector<32x128xf32>
    %c10 = arith.constant 10 : index
    %c0_83 = arith.constant 0 : index
    %c0_84 = arith.constant 0 : index
    %157 = vector.load %arg18[%c10, %c0_83, %c0_84] : memref<16x1x128xf32, #tpu.memory_space<vmem>>, vector<1x1x128xf32>
    %158 = vector.shape_cast %157 : vector<1x1x128xf32> to vector<1x128xf32>
    %159 = arith.truncf %156 : vector<32x128xf32> to vector<32x128xbf16>
    %c0_85 = arith.constant 0 : index
    %c0_86 = arith.constant 0 : index
    %160 = vector.load %arg12[%c0_85, %c0_86] : memref<128x128xbf16, #tpu.memory_space<vmem>>, vector<128x128xbf16>
    %cst_87 = arith.constant dense<0.000000e+00> : vector<32x128xf32>
    %161 = tpu.matmul %159, %160, %cst_87 {dimension_numbers = #tpu.dot_dimension_numbers<[1], [0], [0], [1], [0, 0, 1, 1], [], []>} : vector<32x128xbf16>, vector<128x128xbf16>, vector<32x128xf32> -> vector<32x128xf32>
    %162 = vector.broadcast %158 : vector<1x128xf32> to vector<32x128xf32>
    %163 = arith.addf %161, %162 : vector<32x128xf32>
    %cst_88 = arith.constant 0.000000e+00 : f32
    %164 = vector.broadcast %cst_88 : f32 to vector<32x128xf32>
    %165 = arith.maximumf %163, %164 : vector<32x128xf32>
    %c11 = arith.constant 11 : index
    %c0_89 = arith.constant 0 : index
    %c0_90 = arith.constant 0 : index
    %166 = vector.load %arg18[%c11, %c0_89, %c0_90] : memref<16x1x128xf32, #tpu.memory_space<vmem>>, vector<1x1x128xf32>
    %167 = vector.shape_cast %166 : vector<1x1x128xf32> to vector<1x128xf32>
    %168 = arith.truncf %165 : vector<32x128xf32> to vector<32x128xbf16>
    %c0_91 = arith.constant 0 : index
    %c0_92 = arith.constant 0 : index
    %169 = vector.load %arg13[%c0_91, %c0_92] : memref<128x128xbf16, #tpu.memory_space<vmem>>, vector<128x128xbf16>
    %cst_93 = arith.constant dense<0.000000e+00> : vector<32x128xf32>
    %170 = tpu.matmul %168, %169, %cst_93 {dimension_numbers = #tpu.dot_dimension_numbers<[1], [0], [0], [1], [0, 0, 1, 1], [], []>} : vector<32x128xbf16>, vector<128x128xbf16>, vector<32x128xf32> -> vector<32x128xf32>
    %171 = vector.broadcast %167 : vector<1x128xf32> to vector<32x128xf32>
    %172 = arith.addf %170, %171 : vector<32x128xf32>
    %cst_94 = arith.constant 0.000000e+00 : f32
    %173 = vector.broadcast %cst_94 : f32 to vector<32x128xf32>
    %174 = arith.maximumf %172, %173 : vector<32x128xf32>
    %175 = arith.addf %174, %156 : vector<32x128xf32>
    %cst_95 = arith.constant 0.000000e+00 : f32
    %176 = vector.broadcast %cst_95 : f32 to vector<32x128xf32>
    %177 = arith.maximumf %175, %176 : vector<32x128xf32>
    %c12 = arith.constant 12 : index
    %c0_96 = arith.constant 0 : index
    %c0_97 = arith.constant 0 : index
    %178 = vector.load %arg18[%c12, %c0_96, %c0_97] : memref<16x1x128xf32, #tpu.memory_space<vmem>>, vector<1x1x128xf32>
    %179 = vector.shape_cast %178 : vector<1x1x128xf32> to vector<1x128xf32>
    %180 = arith.truncf %177 : vector<32x128xf32> to vector<32x128xbf16>
    %c0_98 = arith.constant 0 : index
    %c0_99 = arith.constant 0 : index
    %181 = vector.load %arg14[%c0_98, %c0_99] : memref<128x128xbf16, #tpu.memory_space<vmem>>, vector<128x128xbf16>
    %cst_100 = arith.constant dense<0.000000e+00> : vector<32x128xf32>
    %182 = tpu.matmul %180, %181, %cst_100 {dimension_numbers = #tpu.dot_dimension_numbers<[1], [0], [0], [1], [0, 0, 1, 1], [], []>} : vector<32x128xbf16>, vector<128x128xbf16>, vector<32x128xf32> -> vector<32x128xf32>
    %183 = vector.broadcast %179 : vector<1x128xf32> to vector<32x128xf32>
    %184 = arith.addf %182, %183 : vector<32x128xf32>
    %cst_101 = arith.constant 0.000000e+00 : f32
    %185 = vector.broadcast %cst_101 : f32 to vector<32x128xf32>
    %186 = arith.maximumf %184, %185 : vector<32x128xf32>
    %c13 = arith.constant 13 : index
    %c0_102 = arith.constant 0 : index
    %c0_103 = arith.constant 0 : index
    %187 = vector.load %arg18[%c13, %c0_102, %c0_103] : memref<16x1x128xf32, #tpu.memory_space<vmem>>, vector<1x1x128xf32>
    %188 = vector.shape_cast %187 : vector<1x1x128xf32> to vector<1x128xf32>
    %189 = arith.truncf %186 : vector<32x128xf32> to vector<32x128xbf16>
    %c0_104 = arith.constant 0 : index
    %c0_105 = arith.constant 0 : index
    %190 = vector.load %arg15[%c0_104, %c0_105] : memref<128x128xbf16, #tpu.memory_space<vmem>>, vector<128x128xbf16>
    %cst_106 = arith.constant dense<0.000000e+00> : vector<32x128xf32>
    %191 = tpu.matmul %189, %190, %cst_106 {dimension_numbers = #tpu.dot_dimension_numbers<[1], [0], [0], [1], [0, 0, 1, 1], [], []>} : vector<32x128xbf16>, vector<128x128xbf16>, vector<32x128xf32> -> vector<32x128xf32>
    %192 = vector.broadcast %188 : vector<1x128xf32> to vector<32x128xf32>
    %193 = arith.addf %191, %192 : vector<32x128xf32>
    %cst_107 = arith.constant 0.000000e+00 : f32
    %194 = vector.broadcast %cst_107 : f32 to vector<32x128xf32>
    %195 = arith.maximumf %193, %194 : vector<32x128xf32>
    %196 = arith.addf %195, %177 : vector<32x128xf32>
    %cst_108 = arith.constant 0.000000e+00 : f32
    %197 = vector.broadcast %cst_108 : f32 to vector<32x128xf32>
    %198 = arith.maximumf %196, %197 : vector<32x128xf32>
    %c14 = arith.constant 14 : index
    %c0_109 = arith.constant 0 : index
    %c0_110 = arith.constant 0 : index
    %199 = vector.load %arg18[%c14, %c0_109, %c0_110] : memref<16x1x128xf32, #tpu.memory_space<vmem>>, vector<1x1x128xf32>
    %200 = vector.shape_cast %199 : vector<1x1x128xf32> to vector<1x128xf32>
    %201 = arith.truncf %198 : vector<32x128xf32> to vector<32x128xbf16>
    %c0_111 = arith.constant 0 : index
    %c0_112 = arith.constant 0 : index
    %202 = vector.load %arg16[%c0_111, %c0_112] : memref<128x128xbf16, #tpu.memory_space<vmem>>, vector<128x128xbf16>
    %cst_113 = arith.constant dense<0.000000e+00> : vector<32x128xf32>
    %203 = tpu.matmul %201, %202, %cst_113 {dimension_numbers = #tpu.dot_dimension_numbers<[1], [0], [0], [1], [0, 0, 1, 1], [], []>} : vector<32x128xbf16>, vector<128x128xbf16>, vector<32x128xf32> -> vector<32x128xf32>
    %204 = vector.broadcast %200 : vector<1x128xf32> to vector<32x128xf32>
    %205 = arith.addf %203, %204 : vector<32x128xf32>
    %cst_114 = arith.constant 0.000000e+00 : f32
    %206 = vector.broadcast %cst_114 : f32 to vector<32x128xf32>
    %207 = arith.maximumf %205, %206 : vector<32x128xf32>
    %c15 = arith.constant 15 : index
    %c0_115 = arith.constant 0 : index
    %c0_116 = arith.constant 0 : index
    %208 = vector.load %arg18[%c15, %c0_115, %c0_116] : memref<16x1x128xf32, #tpu.memory_space<vmem>>, vector<1x1x128xf32>
    %209 = vector.shape_cast %208 : vector<1x1x128xf32> to vector<1x128xf32>
    %210 = arith.truncf %207 : vector<32x128xf32> to vector<32x128xbf16>
    %c0_117 = arith.constant 0 : index
    %c0_118 = arith.constant 0 : index
    %211 = vector.load %arg17[%c0_117, %c0_118] : memref<128x128xbf16, #tpu.memory_space<vmem>>, vector<128x128xbf16>
    %cst_119 = arith.constant dense<0.000000e+00> : vector<32x128xf32>
    %212 = tpu.matmul %210, %211, %cst_119 {dimension_numbers = #tpu.dot_dimension_numbers<[1], [0], [0], [1], [0, 0, 1, 1], [], []>} : vector<32x128xbf16>, vector<128x128xbf16>, vector<32x128xf32> -> vector<32x128xf32>
    %213 = vector.broadcast %209 : vector<1x128xf32> to vector<32x128xf32>
    %214 = arith.addf %212, %213 : vector<32x128xf32>
    %cst_120 = arith.constant 0.000000e+00 : f32
    %215 = vector.broadcast %cst_120 : f32 to vector<32x128xf32>
    %216 = arith.maximumf %214, %215 : vector<32x128xf32>
    %217 = arith.addf %216, %198 : vector<32x128xf32>
    %cst_121 = arith.constant 0.000000e+00 : f32
    %218 = vector.broadcast %cst_121 : f32 to vector<32x128xf32>
    %219 = arith.maximumf %217, %218 : vector<32x128xf32>
    %220 = arith.truncf %219 : vector<32x128xf32> to vector<32x128xbf16>
    %c0_122 = arith.constant 0 : index
    %c0_123 = arith.constant 0 : index
    %221 = vector.load %arg21[%c0_122, %c0_123] : memref<128x128xbf16, #tpu.memory_space<vmem>>, vector<128x128xbf16>
    %cst_124 = arith.constant dense<0.000000e+00> : vector<32x128xf32>
    %222 = tpu.matmul %220, %221, %cst_124 {dimension_numbers = #tpu.dot_dimension_numbers<[1], [0], [0], [1], [0, 0, 1, 1], [], []>} : vector<32x128xbf16>, vector<128x128xbf16>, vector<32x128xf32> -> vector<32x128xf32>
    %c0_125 = arith.constant 0 : index
    %c0_126 = arith.constant 0 : index
    %223 = vector.load %arg22[%c0_125, %c0_126] : memref<1x128xf32, #tpu.memory_space<vmem>>, vector<1x128xf32>
    %224 = vector.broadcast %223 : vector<1x128xf32> to vector<32x128xf32>
    %225 = arith.addf %222, %224 : vector<32x128xf32>
    %cst_127 = arith.constant 0.000000e+00 : f32
    %226 = vector.broadcast %cst_127 : f32 to vector<32x128xf32>
    %227 = arith.maximumf %225, %226 : vector<32x128xf32>
    %228 = arith.truncf %227 : vector<32x128xf32> to vector<32x128xbf16>
    %c0_128 = arith.constant 0 : index
    %c0_129 = arith.constant 0 : index
    %229 = vector.load %arg23[%c0_128, %c0_129] : memref<128x16xbf16, #tpu.memory_space<vmem>>, vector<128x16xbf16>
    %cst_130 = arith.constant dense<0.000000e+00> : vector<32x16xf32>
    %230 = tpu.matmul %228, %229, %cst_130 {dimension_numbers = #tpu.dot_dimension_numbers<[1], [0], [0], [1], [0, 0, 1, 1], [], []>} : vector<32x128xbf16>, vector<128x16xbf16>, vector<32x16xf32> -> vector<32x16xf32>
    %c0_131 = arith.constant 0 : index
    %c0_132 = arith.constant 0 : index
    %231 = vector.load %arg24[%c0_131, %c0_132] : memref<128x16xbf16, #tpu.memory_space<vmem>>, vector<128x16xbf16>
    %cst_133 = arith.constant dense<0.000000e+00> : vector<32x16xf32>
    %232 = tpu.matmul %228, %231, %cst_133 {dimension_numbers = #tpu.dot_dimension_numbers<[1], [0], [0], [1], [0, 0, 1, 1], [], []>} : vector<32x128xbf16>, vector<128x16xbf16>, vector<32x16xf32> -> vector<32x16xf32>
    %cst_134 = arith.constant dense<0xFF800000> : vector<16xf32>
    %233 = vector.multi_reduction <maximumf>, %230, %cst_134 [0] : vector<32x16xf32> to vector<16xf32>
    %234 = vector.shape_cast %233 : vector<16xf32> to vector<1x16xf32>
    %235 = vector.broadcast %234 : vector<1x16xf32> to vector<32x16xf32>
    %236 = arith.subf %230, %235 : vector<32x16xf32>
    %237 = math.exp %236 : vector<32x16xf32>
    %cst_135 = arith.constant dense<0.000000e+00> : vector<16xf32>
    %238 = vector.multi_reduction <add>, %237, %cst_135 [0] : vector<32x16xf32> to vector<16xf32>
    %239 = vector.shape_cast %238 : vector<16xf32> to vector<1x16xf32>
    %240 = tpu.reciprocal %239 {approx = true} : vector<1x16xf32> -> vector<1x16xf32>
    %241 = arith.mulf %239, %240 : vector<1x16xf32>
    %cst_136 = arith.constant 2.000000e+00 : f32
    %242 = vector.broadcast %cst_136 : f32 to vector<1x16xf32>
    %243 = arith.subf %242, %241 : vector<1x16xf32>
    %244 = arith.mulf %240, %243 : vector<1x16xf32>
    %245 = arith.mulf %237, %232 : vector<32x16xf32>
    %cst_137 = arith.constant dense<0.000000e+00> : vector<16xf32>
    %246 = vector.multi_reduction <add>, %245, %cst_137 [0] : vector<32x16xf32> to vector<16xf32>
    %247 = vector.shape_cast %246 : vector<16xf32> to vector<1x16xf32>
    %248 = arith.mulf %247, %244 : vector<1x16xf32>
    %c0_138 = arith.constant 0 : index
    %c0_139 = arith.constant 0 : index
    %249 = vector.load %arg25[%c0_138, %c0_139] : memref<1x1xf32, #tpu.memory_space<vmem>>, vector<1x1xf32>
    %250 = vector.broadcast %249 : vector<1x1xf32> to vector<1x16xf32>
    %251 = arith.addf %248, %250 : vector<1x16xf32>
    %252 = vector.shape_cast %251 : vector<1x16xf32> to vector<1x1x16xf32>
    %c0_140 = arith.constant 0 : index
    %c0_141 = arith.constant 0 : index
    %c0_142 = arith.constant 0 : index
    %253 = vector.load %arg26[%c0_140, %c0_141, %c0_142] : memref<1x1x16xf32, #tpu.memory_space<vmem>>, vector<1x1x16xf32>
    tpu.vector_store %arg26[%c0_140, %c0_141, %c0_142], %252 {strides = array<i32>} : memref<1x1x16xf32, #tpu.memory_space<vmem>>, vector<1x1x16xf32>,
    return
  }
  func.func @transform_0(%arg0: i32) -> (i32, i32, i32) {
    %c0_i32 = arith.constant 0 : i32
    %c0_i32_0 = arith.constant 0 : i32
    %c0_i32_1 = arith.constant 0 : i32
    return %arg0, %c0_i32, %c0_i32_0 : i32, i32, i32
  }
  func.func @transform_1(%arg0: i32) -> (i32, i32) {
    %c0_i32 = arith.constant 0 : i32
    %c0_i32_0 = arith.constant 0 : i32
    %c0_i32_1 = arith.constant 0 : i32
    return %c0_i32, %c0_i32_0 : i32, i32
  }
  func.func @transform_2(%arg0: i32) -> (i32, i32) {
    %c0_i32 = arith.constant 0 : i32
    %c0_i32_0 = arith.constant 0 : i32
    %c0_i32_1 = arith.constant 0 : i32
    return %c0_i32, %c0_i32_0 : i32, i32
  }
  func.func @transform_3(%arg0: i32) -> (i32, i32) {
    %c0_i32 = arith.constant 0 : i32
    %c0_i32_0 = arith.constant 0 : i32
    %c0_i32_1 = arith.constant 0 : i32
    return %c0_i32, %c0_i32_0 : i32, i32
  }
  func.func @transform_4(%arg0: i32) -> (i32, i32) {
    %c0_i32 = arith.constant 0 : i32
    %c0_i32_0 = arith.constant 0 : i32
    %c0_i32_1 = arith.constant 0 : i32
    return %c0_i32, %c0_i32_0 : i32, i32
  }
  func.func @transform_5(%arg0: i32) -> (i32, i32) {
    %c0_i32 = arith.constant 0 : i32
    %c0_i32_0 = arith.constant 0 : i32
    %c0_i32_1 = arith.constant 0 : i32
    return %c0_i32, %c0_i32_0 : i32, i32
  }
  func.func @transform_6(%arg0: i32) -> (i32, i32) {
    %c0_i32 = arith.constant 0 : i32
    %c0_i32_0 = arith.constant 0 : i32
    %c0_i32_1 = arith.constant 0 : i32
    return %c0_i32, %c0_i32_0 : i32, i32
  }
  func.func @transform_7(%arg0: i32) -> (i32, i32) {
    %c0_i32 = arith.constant 0 : i32
    %c0_i32_0 = arith.constant 0 : i32
    %c0_i32_1 = arith.constant 0 : i32
    return %c0_i32, %c0_i32_0 : i32, i32
  }
  func.func @transform_8(%arg0: i32) -> (i32, i32) {
    %c0_i32 = arith.constant 0 : i32
    %c0_i32_0 = arith.constant 0 : i32
    %c0_i32_1 = arith.constant 0 : i32
    return %c0_i32, %c0_i32_0 : i32, i32
  }
  func.func @transform_9(%arg0: i32) -> (i32, i32) {
    %c0_i32 = arith.constant 0 : i32
    %c0_i32_0 = arith.constant 0 : i32
    %c0_i32_1 = arith.constant 0 : i32
    return %c0_i32, %c0_i32_0 : i32, i32
  }
  func.func @transform_10(%arg0: i32) -> (i32, i32) {
    %c0_i32 = arith.constant 0 : i32
    %c0_i32_0 = arith.constant 0 : i32
    %c0_i32_1 = arith.constant 0 : i32
    return %c0_i32, %c0_i32_0 : i32, i32
  }
  func.func @transform_11(%arg0: i32) -> (i32, i32) {
    %c0_i32 = arith.constant 0 : i32
    %c0_i32_0 = arith.constant 0 : i32
    %c0_i32_1 = arith.constant 0 : i32
    return %c0_i32, %c0_i32_0 : i32, i32
  }
  func.func @transform_12(%arg0: i32) -> (i32, i32) {
    %c0_i32 = arith.constant 0 : i32
    %c0_i32_0 = arith.constant 0 : i32
    %c0_i32_1 = arith.constant 0 : i32
    return %c0_i32, %c0_i32_0 : i32, i32
  }
  func.func @transform_13(%arg0: i32) -> (i32, i32) {
    %c0_i32 = arith.constant 0 : i32
    %c0_i32_0 = arith.constant 0 : i32
    %c0_i32_1 = arith.constant 0 : i32
    return %c0_i32, %c0_i32_0 : i32, i32
  }
  func.func @transform_14(%arg0: i32) -> (i32, i32) {
    %c0_i32 = arith.constant 0 : i32
    %c0_i32_0 = arith.constant 0 : i32
    %c0_i32_1 = arith.constant 0 : i32
    return %c0_i32, %c0_i32_0 : i32, i32
  }
  func.func @transform_15(%arg0: i32) -> (i32, i32) {
    %c0_i32 = arith.constant 0 : i32
    %c0_i32_0 = arith.constant 0 : i32
    %c0_i32_1 = arith.constant 0 : i32
    return %c0_i32, %c0_i32_0 : i32, i32
  }
  func.func @transform_16(%arg0: i32) -> (i32, i32) {
    %c0_i32 = arith.constant 0 : i32
    %c0_i32_0 = arith.constant 0 : i32
    %c0_i32_1 = arith.constant 0 : i32
    return %c0_i32, %c0_i32_0 : i32, i32
  }
  func.func @transform_17(%arg0: i32) -> (i32, i32, i32) {
    %c0_i32 = arith.constant 0 : i32
    %c0_i32_0 = arith.constant 0 : i32
    %c0_i32_1 = arith.constant 0 : i32
    %c0_i32_2 = arith.constant 0 : i32
    return %c0_i32, %c0_i32_0, %c0_i32_1 : i32, i32, i32
  }
  func.func @transform_18(%arg0: i32) -> (i32, i32) {
    %c0_i32 = arith.constant 0 : i32
    %c0_i32_0 = arith.constant 0 : i32
    %c0_i32_1 = arith.constant 0 : i32
    return %c0_i32, %c0_i32_0 : i32, i32
  }
  func.func @transform_19(%arg0: i32) -> (i32, i32) {
    %c0_i32 = arith.constant 0 : i32
    %c0_i32_0 = arith.constant 0 : i32
    %c0_i32_1 = arith.constant 0 : i32
    return %c0_i32, %c0_i32_0 : i32, i32
  }
  func.func @transform_20(%arg0: i32) -> (i32, i32) {
    %c0_i32 = arith.constant 0 : i32
    %c0_i32_0 = arith.constant 0 : i32
    %c0_i32_1 = arith.constant 0 : i32
    return %c0_i32, %c0_i32_0 : i32, i32
  }
  func.func @transform_21(%arg0: i32) -> (i32, i32) {
    %c0_i32 = arith.constant 0 : i32
    %c0_i32_0 = arith.constant 0 : i32
    %c0_i32_1 = arith.constant 0 : i32
    return %c0_i32, %c0_i32_0 : i32, i32
  }
  func.func @transform_22(%arg0: i32) -> (i32, i32) {
    %c0_i32 = arith.constant 0 : i32
    %c0_i32_0 = arith.constant 0 : i32
    %c0_i32_1 = arith.constant 0 : i32
    return %c0_i32, %c0_i32_0 : i32, i32
  }
  func.func @transform_23(%arg0: i32) -> (i32, i32) {
    %c0_i32 = arith.constant 0 : i32
    %c0_i32_0 = arith.constant 0 : i32
    %c0_i32_1 = arith.constant 0 : i32
    return %c0_i32, %c0_i32_0 : i32, i32
  }
  func.func @transform_24(%arg0: i32) -> (i32, i32) {
    %c0_i32 = arith.constant 0 : i32
    %c0_i32_0 = arith.constant 0 : i32
    %c0_i32_1 = arith.constant 0 : i32
    return %c0_i32, %c0_i32_0 : i32, i32
  }
  func.func @transform_25(%arg0: i32) -> (i32, i32, i32) {
    %c0_i32 = arith.constant 0 : i32
    %c0_i32_0 = arith.constant 0 : i32
    %c0_i32_1 = arith.constant 0 : i32
    return %arg0, %c0_i32, %c0_i32_0 : i32, i32, i32
  }
}

</mosaic_0001>

<llo_original>
// kernel: call_predictor_pallas.1
$region0: #{call_predictor_pallas.1}
  #allocation0 [shape = 'u32[]', space=smem, size = 0x4, offset = 0x4, fixed_abs, tag = 'smem constant byte address 0x4 - core index']
  #allocation1 [shape = 'u32[144,128]{1,0:T(1,128)}', space=vmem, size = 0x12000, scoped, tag = 'internal scratch']
  #allocation2 [shape = 'f32[1,1]{1,0:T(1,128)S(1)}', space=vmem, size = 0x200, scoped, tag = 'scoped memory for call_predictor_pallas.1']
  %s0 = inlined_call_operand.vmem [shape: f32[2,32,16], index: 0, kind: input, shape index: {}]
  %s1 = inlined_call_operand.vmem [shape: bf16[32,128], index: 1, kind: input, shape index: {}]
  %s2 = inlined_call_operand.vmem [shape: bf16[256,128], index: 2, kind: input, shape index: {}]
  %s3 = inlined_call_operand.vmem [shape: bf16[256,128], index: 3, kind: input, shape index: {}]
  %s4 = inlined_call_operand.vmem [shape: bf16[256,128], index: 4, kind: input, shape index: {}]
  %s5 = inlined_call_operand.hbm [shape: bf16[256,128], index: 5, kind: input, shape index: {}]
  %s6 = inlined_call_operand.hbm [shape: bf16[256,128], index: 6, kind: input, shape index: {}]
  %s7 = inlined_call_operand.hbm [shape: bf16[256,128], index: 7, kind: input, shape index: {}]
  %s8 = inlined_call_operand.hbm [shape: bf16[256,128], index: 8, kind: input, shape index: {}]
  %s9 = inlined_call_operand.hbm [shape: bf16[256,128], index: 9, kind: input, shape index: {}]
  %s10 = inlined_call_operand.hbm [shape: bf16[256,128], index: 10, kind: input, shape index: {}]
  %s11 = inlined_call_operand.hbm [shape: bf16[128,128], index: 11, kind: input, shape index: {}]
  %s12 = inlined_call_operand.hbm [shape: bf16[128,128], index: 12, kind: input, shape index: {}]
  %s13 = inlined_call_operand.hbm [shape: bf16[128,128], index: 13, kind: input, shape index: {}]
  %s14 = inlined_call_operand.hbm [shape: bf16[128,128], index: 14, kind: input, shape index: {}]
  %s15 = inlined_call_operand.hbm [shape: bf16[128,128], index: 15, kind: input, shape index: {}]
  %s16 = inlined_call_operand.hbm [shape: bf16[128,128], index: 16, kind: input, shape index: {}]
  %s17 = inlined_call_operand.vmem [shape: f32[16,1,128], index: 17, kind: input, shape index: {}]
  %s18 = inlined_call_operand.hbm [shape: bf16[16,128], index: 18, kind: input, shape index: {}]
  %s19 = inlined_call_operand.hbm [shape: f32[1,128], index: 19, kind: input, shape index: {}]
  %s20 = inlined_call_operand.hbm [shape: bf16[128,128], index: 20, kind: input, shape index: {}]
  %s21 = inlined_call_operand.hbm [shape: f32[1,128], index: 21, kind: input, shape index: {}]
  %s22 = inlined_call_operand.vmem [shape: bf16[128,16], index: 22, kind: input, shape index: {}]
  %s23 = inlined_call_operand.vmem [shape: bf16[128,16], index: 23, kind: input, shape index: {}]
  %s24 = inlined_call_operand.<no memory space> [shape: f32[1,1], index: 24, kind: input, shape index: {}]
  %s25 = inlined_call_operand.vmem [shape: f32[2,1,16], index: 25, kind: output, shape index: {}]
  %s26 = sld [smem:[#allocation0]]
  $region197: #{call_predictor_pallas.1} parent=0
    _
  %s28 = ssub.s32 1, %s26
  %s29 = scalar_select 0, %s28, %s26
  %v30 = vstv %s24
  %31 = vst [vmem:[#allocation2] sm:$0x1] %v30
  $region1: #{call_predictor_pallas.1} parent=0
    #allocation3 [shape = 'u8[65536]{0}', space=vmem, size = 0x10000, scoped, tag = 'input window, operand 5, single buffered']
    #allocation4 [shape = 's32[2]{0}', space=sflag, size = 0x8, scoped, tag = 'scoped memory for call_predictor_pallas.1']
    #allocation5 [shape = 'u8[65536]{0}', space=vmem, size = 0x10000, scoped, tag = 'input window, operand 6, single buffered']
    #allocation6 [shape = 's32[1]{0}', space=sflag, size = 0x4, scoped, tag = 'scoped memory for call_predictor_pallas.1']
    #allocation7 [shape = 'u8[65536]{0}', space=vmem, size = 0x10000, scoped, tag = 'input window, operand 7, single buffered']
    #allocation8 [shape = 'u8[65536]{0}', space=vmem, size = 0x10000, scoped, tag = 'input window, operand 8, single buffered']
    #allocation9 [shape = 's32[1]{0}', space=sflag, size = 0x4, scoped, tag = 'scoped memory for call_predictor_pallas.1']
    #allocation10 [shape = 'u8[65536]{0}', space=vmem, size = 0x10000, scoped, tag = 'input window, operand 9, single buffered']
    #allocation11 [shape = 'u8[65536]{0}', space=vmem, size = 0x10000, scoped, tag = 'input window, operand 10, single buffered']
    #allocation12 [shape = 's32[1]{0}', space=sflag, size = 0x4, scoped, tag = 'scoped memory for call_predictor_pallas.1']
    #allocation13 [shape = 'u8[32768]{0}', space=vmem, size = 0x8000, scoped, tag = 'input window, operand 11, single buffered']
    #allocation14 [shape = 'u8[32768]{0}', space=vmem, size = 0x8000, scoped, tag = 'input window, operand 12, single buffered']
    #allocation15 [shape = 's32[1]{0}', space=sflag, size = 0x4, scoped, tag = 'scoped memory for call_predictor_pallas.1']
    #allocation16 [shape = 'u8[32768]{0}', space=vmem, size = 0x8000, scoped, tag = 'input window, operand 13, single buffered']
    #allocation17 [shape = 'u8[32768]{0}', space=vmem, size = 0x8000, scoped, tag = 'input window, operand 14, single buffered']
    #allocation18 [shape = 's32[1]{0}', space=sflag, size = 0x4, scoped, tag = 'scoped memory for call_predictor_pallas.1']
    #allocation19 [shape = 'u8[32768]{0}', space=vmem, size = 0x8000, scoped, tag = 'input window, operand 15, single buffered']
    #allocation20 [shape = 'u8[32768]{0}', space=vmem, size = 0x8000, scoped, tag = 'input window, operand 16, single buffered']
    #allocation21 [shape = 's32[1]{0}', space=sflag, size = 0x4, scoped, tag = 'scoped memory for call_predictor_pallas.1']
    #allocation22 [shape = 'u8[4096]{0}', space=vmem, size = 0x1000, scoped, tag = 'input window, operand 18, single buffered']
    #allocation23 [shape = 'u8[512]{0}', space=vmem, size = 0x400, scoped, tag = 'input window, operand 19, single buffered']
    #allocation24 [shape = 's32[1]{0}', space=sflag, size = 0x4, scoped, tag = 'scoped memory for call_predictor_pallas.1']
    #allocation25 [shape = 'u8[32768]{0}', space=vmem, size = 0x8000, scoped, tag = 'input window, operand 20, single buffered']
    #allocation26 [shape = 'u8[512]{0}', space=vmem, size = 0x400, scoped, tag = 'input window, operand 21, single buffered']
    #allocation27 [shape = 's32[1]{0}', space=sflag, size = 0x4, scoped, tag = 'scoped memory for call_predictor_pallas.1']
    %32 = vsyncpa [#allocation4], 0
    %33 = vsyncpa [#allocation6], 0
    %34 = vsyncpa [#allocation9], 0
    %35 = vsyncpa [#allocation12], 0
    %36 = vsyncpa [#allocation15], 0
    %37 = vsyncpa [#allocation18], 0
    %38 = vsyncpa [#allocation21], 0
    %39 = vsyncpa [#allocation24], 0
    %40 = vsyncpa [#allocation27], 0
    loop: start=0, step=1, limit=4
    $region2: #{call_predictor_pallas.1} parent=1 // loop_pre_header
      _
    $region3: #{call_predictor_pallas.1} parent=1 // loop_header
      %s42 = sphi 0, %s46
      %p43 = scmp.ge.s32.totalorder %s42, 4
      %s52 = sphi 0, %s54
      %s55 = sphi 0, %s52
      %s56 = sphi 0, %s55
      %s72 = sphi 0, %s56
      %s76 = sphi 0, %s76
      %s78 = sphi 0, %s76
      %s79 = sphi 0, %s78
      %s93 = sphi 0, %s79
      %s97 = sphi 0, %s97
      %s99 = sphi 0, %s97
      %s100 = sphi 0, %s99
      %s114 = sphi 0, %s100
      %s118 = sphi 0, %s118
      %s120 = sphi 0, %s118
      %s121 = sphi 0, %s120
      %s135 = sphi 0, %s121
      %s139 = sphi 0, %s139
      %s141 = sphi 0, %s139
      %s142 = sphi 0, %s141
      %s156 = sphi 0, %s142
      %s160 = sphi 0, %s160
      %s162 = sphi 0, %s160
      %s163 = sphi 0, %s162
      %s177 = sphi 0, %s163
      %s181 = sphi 0, %s181
      %s183 = sphi 0, %s181
      %s184 = sphi 0, %s183
      %s198 = sphi 0, %s184
      %s202 = sphi 0, %s202
      %s204 = sphi 0, %s202
      %s205 = sphi 0, %s204
      %s219 = sphi 0, %s205
      %s223 = sphi 0, %s223
      %s225 = sphi 0, %s223
      %s226 = sphi 0, %s225
      %s240 = sphi 0, %s226
      %s244 = sphi 0, %s244
      %s246 = sphi 0, %s244
      %s247 = sphi 0, %s246
      %s261 = sphi 0, %s247
      %s265 = sphi 0, %s265
      %s267 = sphi 0, %s265
      %s268 = sphi 0, %s267
      %s282 = sphi 0, %s268
      %s286 = sphi 0, %s286
      %s288 = sphi 0, %s286
      %s289 = sphi 0, %s288
      %s303 = sphi 0, %s289
      %s307 = sphi 0, %s307
      %s309 = sphi 0, %s307
      %s310 = sphi 0, %s309
      %s324 = sphi 0, %s310
      %s328 = sphi 0, %s328
      %s330 = sphi 0, %s328
      %s331 = sphi 0, %s330
      %s345 = sphi 0, %s331
      %s349 = sphi 0, %s349
      %s351 = sphi 0, %s349
      %s352 = sphi 0, %s351
      %s366 = sphi 0, %s352
      %s370 = sphi 0, %s370
      %s372 = sphi 0, %s370
      %s373 = sphi 0, %s372
      %s387 = sphi 0, %s373
      %s391 = sphi 0, %s391
      %s393 = sphi 0, %s391
      %s394 = sphi 0, %s393
      %s408 = sphi 0, %s394
      %s412 = sphi 0, %s412
      %s414 = sphi 0, %s412
      %s415 = sphi 0, %s414
      %s429 = sphi 0, %s415
      %s433 = sphi 0, %s433
      %s435 = sphi 0, %s433
      %s436 = sphi 0, %s435
      %s450 = sphi 0, %s436
      %s454 = sphi 0, %s454
      %s456 = sphi 0, %s454
      %s457 = sphi 0, %s456
      %s471 = sphi 0, %s457
      %s475 = sphi 0, %s475
      %s477 = sphi 0, %s475
      %s478 = sphi 0, %s477
      %s492 = sphi 0, %s478
      %s496 = sphi 0, %s496
      %s498 = sphi 0, %s496
      %s499 = sphi 0, %s498
      %s513 = sphi 0, %s499
      %s517 = sphi 0, %s517
      %s519 = sphi 0, %s517
      %s520 = sphi 0, %s519
      %s534 = sphi 0, %s520
      %s538 = sphi 0, %s538
      %s540 = sphi 0, %s538
      %s541 = sphi 0, %s540
      %s555 = sphi 0, %s541
      %s559 = sphi 0, %s559
      %s561 = sphi 0, %s559
      %s562 = sphi 0, %s561
      %s576 = sphi 0, %s562
      %s582 = sphi 0, %s584
      %s585 = sphi 0, %s582
      %s586 = sphi 0, %s585
      %s602 = sphi 0, %s586
    $region4: #{call_predictor_pallas.1} parent=1 // loop_header_branch
      %45 = sbr.rel (%p43) target = $region8
    $region5: #{call_predictor_pallas.1} parent=1 // loop_body
      %s47 = ssub.s32 %s42, 1
      %s48 = ssub.s32 %s42, 2
      %s49 = sadd.s32 %s42, 1
      %s50 = ssub.s32 %s42, %s49
      %p51 = scmp.eq.s32.totalorder %s50, 0
      %s53 = sadd.s32 %s52, 1
      %s54 = scalar_select %p51, %s52, %s53
      %p57 = pneg %p51
      %p58 = scmp.eq.s32.totalorder %s42, 1
      %p59 = por %p57, %p58
      %p60 = scmp.ne.s32.totalorder %s52, %s55
      %p61 = scmp.eq.s32.totalorder %s42, 0
      %p62 = por %p60, %p61
      %p63 = scmp.ne.s32.totalorder %s52, %s55
      %p64 = scmp.eq.s32.totalorder %s47, 1
      %p65 = por %p63, %p64
      %p66 = scmp.ne.s32.totalorder %s55, %s56
      %p67 = scmp.eq.s32.totalorder %s47, 0
      %p68 = por %p66, %p67
      %p69 = scmp.ne.s32.totalorder %s55, %s56
      %p70 = scmp.eq.s32.totalorder %s48, 1
      %p71 = por %p69, %p70
      %p73 = scmp.ne.s32.totalorder %s56, %s72
      %p74 = scmp.eq.s32.totalorder %s48, 0
      %p75 = por %p73, %p74
      %s77 = sadd.s32 %s76, 1
      %p80 = scmp.eq.s32.totalorder %s42, 1
      %p81 = scmp.ne.s32.totalorder %s76, %s78
      %p82 = scmp.eq.s32.totalorder %s42, 0
      %p83 = por %p81, %p82
      %p84 = scmp.ne.s32.totalorder %s76, %s78
      %p85 = scmp.eq.s32.totalorder %s47, 1
      %p86 = por %p84, %p85
      %p87 = scmp.ne.s32.totalorder %s78, %s79
      %p88 = scmp.eq.s32.totalorder %s47, 0
      %p89 = por %p87, %p88
      %p90 = scmp.ne.s32.totalorder %s78, %s79
      %p91 = scmp.eq.s32.totalorder %s48, 1
      %p92 = por %p90, %p91
      %p94 = scmp.ne.s32.totalorder %s79, %s93
      %p95 = scmp.eq.s32.totalorder %s48, 0
      %p96 = por %p94, %p95
      %s98 = sadd.s32 %s97, 1
      %p101 = scmp.eq.s32.totalorder %s42, 1
      %p102 = scmp.ne.s32.totalorder %s97, %s99
      %p103 = scmp.eq.s32.totalorder %s42, 0
      %p104 = por %p102, %p103
      %p105 = scmp.ne.s32.totalorder %s97, %s99
      %p106 = scmp.eq.s32.totalorder %s47, 1
      %p107 = por %p105, %p106
      %p108 = scmp.ne.s32.totalorder %s99, %s100
      %p109 = scmp.eq.s32.totalorder %s47, 0
      %p110 = por %p108, %p109
      %p111 = scmp.ne.s32.totalorder %s99, %s100
      %p112 = scmp.eq.s32.totalorder %s48, 1
      %p113 = por %p111, %p112
      %p115 = scmp.ne.s32.totalorder %s100, %s114
      %p116 = scmp.eq.s32.totalorder %s48, 0
      %p117 = por %p115, %p116
      %s119 = sadd.s32 %s118, 1
      %p122 = scmp.eq.s32.totalorder %s42, 1
      %p123 = scmp.ne.s32.totalorder %s118, %s120
      %p124 = scmp.eq.s32.totalorder %s42, 0
      %p125 = por %p123, %p124
      %p126 = scmp.ne.s32.totalorder %s118, %s120
      %p127 = scmp.eq.s32.totalorder %s47, 1
      %p128 = por %p126, %p127
      %p129 = scmp.ne.s32.totalorder %s120, %s121
      %p130 = scmp.eq.s32.totalorder %s47, 0
      %p131 = por %p129, %p130
      %p132 = scmp.ne.s32.totalorder %s120, %s121
      %p133 = scmp.eq.s32.totalorder %s48, 1
      %p134 = por %p132, %p133
      %p136 = scmp.ne.s32.totalorder %s121, %s135
      %p137 = scmp.eq.s32.totalorder %s48, 0
      %p138 = por %p136, %p137
      %s140 = sadd.s32 %s139, 1
      %p143 = scmp.eq.s32.totalorder %s42, 1
      %p144 = scmp.ne.s32.totalorder %s139, %s141
      %p145 = scmp.eq.s32.totalorder %s42, 0
      %p146 = por %p144, %p145
      %p147 = scmp.ne.s32.totalorder %s139, %s141
      %p148 = scmp.eq.s32.totalorder %s47, 1
      %p149 = por %p147, %p148
      %p150 = scmp.ne.s32.totalorder %s141, %s142
      %p151 = scmp.eq.s32.totalorder %s47, 0
      %p152 = por %p150, %p151
      %p153 = scmp.ne.s32.totalorder %s141, %s142
      %p154 = scmp.eq.s32.totalorder %s48, 1
      %p155 = por %p153, %p154
      %p157 = scmp.ne.s32.totalorder %s142, %s156
      %p158 = scmp.eq.s32.totalorder %s48, 0
      %p159 = por %p157, %p158
      %s161 = sadd.s32 %s160, 1
      %p164 = scmp.eq.s32.totalorder %s42, 1
      %p165 = scmp.ne.s32.totalorder %s160, %s162
      %p166 = scmp.eq.s32.totalorder %s42, 0
      %p167 = por %p165, %p166
      %p168 = scmp.ne.s32.totalorder %s160, %s162
      %p169 = scmp.eq.s32.totalorder %s47, 1
      %p170 = por %p168, %p169
      %p171 = scmp.ne.s32.totalorder %s162, %s163
      %p172 = scmp.eq.s32.totalorder %s47, 0
      %p173 = por %p171, %p172
      %p174 = scmp.ne.s32.totalorder %s162, %s163
      %p175 = scmp.eq.s32.totalorder %s48, 1
      %p176 = por %p174, %p175
      %p178 = scmp.ne.s32.totalorder %s163, %s177
      %p179 = scmp.eq.s32.totalorder %s48, 0
      %p180 = por %p178, %p179
      %s182 = sadd.s32 %s181, 1
      %p185 = scmp.eq.s32.totalorder %s42, 1
      %p186 = scmp.ne.s32.totalorder %s181, %s183
      %p187 = scmp.eq.s32.totalorder %s42, 0
      %p188 = por %p186, %p187
      %p189 = scmp.ne.s32.totalorder %s181, %s183
      %p190 = scmp.eq.s32.totalorder %s47, 1
      %p191 = por %p189, %p190
      %p192 = scmp.ne.s32.totalorder %s183, %s184
      %p193 = scmp.eq.s32.totalorder %s47, 0
      %p194 = por %p192, %p193
      %p195 = scmp.ne.s32.totalorder %s183, %s184
      %p196 = scmp.eq.s32.totalorder %s48, 1
      %p197 = por %p195, %p196
      %p199 = scmp.ne.s32.totalorder %s184, %s198
      %p200 = scmp.eq.s32.totalorder %s48, 0
      %p201 = por %p199, %p200
      %s203 = sadd.s32 %s202, 1
      %p206 = scmp.eq.s32.totalorder %s42, 1
      %p207 = scmp.ne.s32.totalorder %s202, %s204
      %p208 = scmp.eq.s32.totalorder %s42, 0
      %p209 = por %p207, %p208
      %p210 = scmp.ne.s32.totalorder %s202, %s204
      %p211 = scmp.eq.s32.totalorder %s47, 1
      %p212 = por %p210, %p211
      %p213 = scmp.ne.s32.totalorder %s204, %s205
      %p214 = scmp.eq.s32.totalorder %s47, 0
      %p215 = por %p213, %p214
      %p216 = scmp.ne.s32.totalorder %s204, %s205
      %p217 = scmp.eq.s32.totalorder %s48, 1
      %p218 = por %p216, %p217
      %p220 = scmp.ne.s32.totalorder %s205, %s219
      %p221 = scmp.eq.s32.totalorder %s48, 0
      %p222 = por %p220, %p221
      %s224 = sadd.s32 %s223, 1
      %p227 = scmp.eq.s32.totalorder %s42, 1
      %p228 = scmp.ne.s32.totalorder %s223, %s225
      %p229 = scmp.eq.s32.totalorder %s42, 0
      %p230 = por %p228, %p229
      %p231 = scmp.ne.s32.totalorder %s223, %s225
      %p232 = scmp.eq.s32.totalorder %s47, 1
      %p233 = por %p231, %p232
      %p234 = scmp.ne.s32.totalorder %s225, %s226
      %p235 = scmp.eq.s32.totalorder %s47, 0
      %p236 = por %p234, %p235
      %p237 = scmp.ne.s32.totalorder %s225, %s226
      %p238 = scmp.eq.s32.totalorder %s48, 1
      %p239 = por %p237, %p238
      %p241 = scmp.ne.s32.totalorder %s226, %s240
      %p242 = scmp.eq.s32.totalorder %s48, 0
      %p243 = por %p241, %p242
      %s245 = sadd.s32 %s244, 1
      %p248 = scmp.eq.s32.totalorder %s42, 1
      %p249 = scmp.ne.s32.totalorder %s244, %s246
      %p250 = scmp.eq.s32.totalorder %s42, 0
      %p251 = por %p249, %p250
      %p252 = scmp.ne.s32.totalorder %s244, %s246
      %p253 = scmp.eq.s32.totalorder %s47, 1
      %p254 = por %p252, %p253
      %p255 = scmp.ne.s32.totalorder %s246, %s247
      %p256 = scmp.eq.s32.totalorder %s47, 0
      %p257 = por %p255, %p256
      %p258 = scmp.ne.s32.totalorder %s246, %s247
      %p259 = scmp.eq.s32.totalorder %s48, 1
      %p260 = por %p258, %p259
      %p262 = scmp.ne.s32.totalorder %s247, %s261
      %p263 = scmp.eq.s32.totalorder %s48, 0
      %p264 = por %p262, %p263
      %s266 = sadd.s32 %s265, 1
      %p269 = scmp.eq.s32.totalorder %s42, 1
      %p270 = scmp.ne.s32.totalorder %s265, %s267
      %p271 = scmp.eq.s32.totalorder %s42, 0
      %p272 = por %p270, %p271
      %p273 = scmp.ne.s32.totalorder %s265, %s267
      %p274 = scmp.eq.s32.totalorder %s47, 1
      %p275 = por %p273, %p274
      %p276 = scmp.ne.s32.totalorder %s267, %s268
      %p277 = scmp.eq.s32.totalorder %s47, 0
      %p278 = por %p276, %p277
      %p279 = scmp.ne.s32.totalorder %s267, %s268
      %p280 = scmp.eq.s32.totalorder %s48, 1
      %p281 = por %p279, %p280
      %p283 = scmp.ne.s32.totalorder %s268, %s282
      %p284 = scmp.eq.s32.totalorder %s48, 0
      %p285 = por %p283, %p284
      %s287 = sadd.s32 %s286, 1
      %p290 = scmp.eq.s32.totalorder %s42, 1
      %p291 = scmp.ne.s32.totalorder %s286, %s288
      %p292 = scmp.eq.s32.totalorder %s42, 0
      %p293 = por %p291, %p292
      %p294 = scmp.ne.s32.totalorder %s286, %s288
      %p295 = scmp.eq.s32.totalorder %s47, 1
      %p296 = por %p294, %p295
      %p297 = scmp.ne.s32.totalorder %s288, %s289
      %p298 = scmp.eq.s32.totalorder %s47, 0
      %p299 = por %p297, %p298
      %p300 = scmp.ne.s32.totalorder %s288, %s289
      %p301 = scmp.eq.s32.totalorder %s48, 1
      %p302 = por %p300, %p301
      %p304 = scmp.ne.s32.totalorder %s289, %s303
      %p305 = scmp.eq.s32.totalorder %s48, 0
      %p306 = por %p304, %p305
      %s308 = sadd.s32 %s307, 1
      %p311 = scmp.eq.s32.totalorder %s42, 1
      %p312 = scmp.ne.s32.totalorder %s307, %s309
      %p313 = scmp.eq.s32.totalorder %s42, 0
      %p314 = por %p312, %p313
      %p315 = scmp.ne.s32.totalorder %s307, %s309
      %p316 = scmp.eq.s32.totalorder %s47, 1
      %p317 = por %p315, %p316
      %p318 = scmp.ne.s32.totalorder %s309, %s310
      %p319 = scmp.eq.s32.totalorder %s47, 0
      %p320 = por %p318, %p319
      %p321 = scmp.ne.s32.totalorder %s309, %s310
      %p322 = scmp.eq.s32.totalorder %s48, 1
      %p323 = por %p321, %p322
      %p325 = scmp.ne.s32.totalorder %s310, %s324
      %p326 = scmp.eq.s32.totalorder %s48, 0
      %p327 = por %p325, %p326
      %s329 = sadd.s32 %s328, 1
      %p332 = scmp.eq.s32.totalorder %s42, 1
      %p333 = scmp.ne.s32.totalorder %s328, %s330
      %p334 = scmp.eq.s32.totalorder %s42, 0
      %p335 = por %p333, %p334
      %p336 = scmp.ne.s32.totalorder %s328, %s330
      %p337 = scmp.eq.s32.totalorder %s47, 1
      %p338 = por %p336, %p337
      %p339 = scmp.ne.s32.totalorder %s330, %s331
      %p340 = scmp.eq.s32.totalorder %s47, 0
      %p341 = por %p339, %p340
      %p342 = scmp.ne.s32.totalorder %s330, %s331
      %p343 = scmp.eq.s32.totalorder %s48, 1
      %p344 = por %p342, %p343
      %p346 = scmp.ne.s32.totalorder %s331, %s345
      %p347 = scmp.eq.s32.totalorder %s48, 0
      %p348 = por %p346, %p347
      %s350 = sadd.s32 %s349, 1
      %p353 = scmp.eq.s32.totalorder %s42, 1
      %p354 = scmp.ne.s32.totalorder %s349, %s351
      %p355 = scmp.eq.s32.totalorder %s42, 0
      %p356 = por %p354, %p355
      %p357 = scmp.ne.s32.totalorder %s349, %s351
      %p358 = scmp.eq.s32.totalorder %s47, 1
      %p359 = por %p357, %p358
      %p360 = scmp.ne.s32.totalorder %s351, %s352
      %p361 = scmp.eq.s32.totalorder %s47, 0
      %p362 = por %p360, %p361
      %p363 = scmp.ne.s32.totalorder %s351, %s352
      %p364 = scmp.eq.s32.totalorder %s48, 1
      %p365 = por %p363, %p364
      %p367 = scmp.ne.s32.totalorder %s352, %s366
      %p368 = scmp.eq.s32.totalorder %s48, 0
      %p369 = por %p367, %p368
      %s371 = sadd.s32 %s370, 1
      %p374 = scmp.eq.s32.totalorder %s42, 1
      %p375 = scmp.ne.s32.totalorder %s370, %s372
      %p376 = scmp.eq.s32.totalorder %s42, 0
      %p377 = por %p375, %p376
      %p378 = scmp.ne.s32.totalorder %s370, %s372
      %p379 = scmp.eq.s32.totalorder %s47, 1
      %p380 = por %p378, %p379
      %p381 = scmp.ne.s32.totalorder %s372, %s373
      %p382 = scmp.eq.s32.totalorder %s47, 0
      %p383 = por %p381, %p382
      %p384 = scmp.ne.s32.totalorder %s372, %s373
      %p385 = scmp.eq.s32.totalorder %s48, 1
      %p386 = por %p384, %p385
      %p388 = scmp.ne.s32.totalorder %s373, %s387
      %p389 = scmp.eq.s32.totalorder %s48, 0
      %p390 = por %p388, %p389
      %s392 = sadd.s32 %s391, 1
      %p395 = scmp.eq.s32.totalorder %s42, 1
      %p396 = scmp.ne.s32.totalorder %s391, %s393
      %p397 = scmp.eq.s32.totalorder %s42, 0
      %p398 = por %p396, %p397
      %p399 = scmp.ne.s32.totalorder %s391, %s393
      %p400 = scmp.eq.s32.totalorder %s47, 1
      %p401 = por %p399, %p400
      %p402 = scmp.ne.s32.totalorder %s393, %s394
      %p403 = scmp.eq.s32.totalorder %s47, 0
      %p404 = por %p402, %p403
      %p405 = scmp.ne.s32.totalorder %s393, %s394
      %p406 = scmp.eq.s32.totalorder %s48, 1
      %p407 = por %p405, %p406
      %p409 = scmp.ne.s32.totalorder %s394, %s408
      %p410 = scmp.eq.s32.totalorder %s48, 0
      %p411 = por %p409, %p410
      %s413 = sadd.s32 %s412, 1
      %p416 = scmp.eq.s32.totalorder %s42, 1
      %p417 = scmp.ne.s32.totalorder %s412, %s414
      %p418 = scmp.eq.s32.totalorder %s42, 0
      %p419 = por %p417, %p418
      %p420 = scmp.ne.s32.totalorder %s412, %s414
      %p421 = scmp.eq.s32.totalorder %s47, 1
      %p422 = por %p420, %p421
      %p423 = scmp.ne.s32.totalorder %s414, %s415
      %p424 = scmp.eq.s32.totalorder %s47, 0
      %p425 = por %p423, %p424
      %p426 = scmp.ne.s32.totalorder %s414, %s415
      %p427 = scmp.eq.s32.totalorder %s48, 1
      %p428 = por %p426, %p427
      %p430 = scmp.ne.s32.totalorder %s415, %s429
      %p431 = scmp.eq.s32.totalorder %s48, 0
      %p432 = por %p430, %p431
      %s434 = sadd.s32 %s433, 1
      %p437 = scmp.eq.s32.totalorder %s42, 1
      %p438 = scmp.ne.s32.totalorder %s433, %s435
      %p439 = scmp.eq.s32.totalorder %s42, 0
      %p440 = por %p438, %p439
      %p441 = scmp.ne.s32.totalorder %s433, %s435
      %p442 = scmp.eq.s32.totalorder %s47, 1
      %p443 = por %p441, %p442
      %p444 = scmp.ne.s32.totalorder %s435, %s436
      %p445 = scmp.eq.s32.totalorder %s47, 0
      %p446 = por %p444, %p445
      %p447 = scmp.ne.s32.totalorder %s435, %s436
      %p448 = scmp.eq.s32.totalorder %s48, 1
      %p449 = por %p447, %p448
      %p451 = scmp.ne.s32.totalorder %s436, %s450
      %p452 = scmp.eq.s32.totalorder %s48, 0
      %p453 = por %p451, %p452
      %s455 = sadd.s32 %s454, 1
      %p458 = scmp.eq.s32.totalorder %s42, 1
      %p459 = scmp.ne.s32.totalorder %s454, %s456
      %p460 = scmp.eq.s32.totalorder %s42, 0
      %p461 = por %p459, %p460
      %p462 = scmp.ne.s32.totalorder %s454, %s456
      %p463 = scmp.eq.s32.totalorder %s47, 1
      %p464 = por %p462, %p463
      %p465 = scmp.ne.s32.totalorder %s456, %s457
      %p466 = scmp.eq.s32.totalorder %s47, 0
      %p467 = por %p465, %p466
      %p468 = scmp.ne.s32.totalorder %s456, %s457
      %p469 = scmp.eq.s32.totalorder %s48, 1
      %p470 = por %p468, %p469
      %p472 = scmp.ne.s32.totalorder %s457, %s471
      %p473 = scmp.eq.s32.totalorder %s48, 0
      %p474 = por %p472, %p473
      %s476 = sadd.s32 %s475, 1
      %p479 = scmp.eq.s32.totalorder %s42, 1
      %p480 = scmp.ne.s32.totalorder %s475, %s477
      %p481 = scmp.eq.s32.totalorder %s42, 0
      %p482 = por %p480, %p481
      %p483 = scmp.ne.s32.totalorder %s475, %s477
      %p484 = scmp.eq.s32.totalorder %s47, 1
      %p485 = por %p483, %p484
      %p486 = scmp.ne.s32.totalorder %s477, %s478
      %p487 = scmp.eq.s32.totalorder %s47, 0
      %p488 = por %p486, %p487
      %p489 = scmp.ne.s32.totalorder %s477, %s478
      %p490 = scmp.eq.s32.totalorder %s48, 1
      %p491 = por %p489, %p490
      %p493 = scmp.ne.s32.totalorder %s478, %s492
      %p494 = scmp.eq.s32.totalorder %s48, 0
      %p495 = por %p493, %p494
      %s497 = sadd.s32 %s496, 1
      %p500 = scmp.eq.s32.totalorder %s42, 1
      %p501 = scmp.ne.s32.totalorder %s496, %s498
      %p502 = scmp.eq.s32.totalorder %s42, 0
      %p503 = por %p501, %p502
      %p504 = scmp.ne.s32.totalorder %s496, %s498
      %p505 = scmp.eq.s32.totalorder %s47, 1
      %p506 = por %p504, %p505
      %p507 = scmp.ne.s32.totalorder %s498, %s499
      %p508 = scmp.eq.s32.totalorder %s47, 0
      %p509 = por %p507, %p508
      %p510 = scmp.ne.s32.totalorder %s498, %s499
      %p511 = scmp.eq.s32.totalorder %s48, 1
      %p512 = por %p510, %p511
      %p514 = scmp.ne.s32.totalorder %s499, %s513
      %p515 = scmp.eq.s32.totalorder %s48, 0
      %p516 = por %p514, %p515
      %s518 = sadd.s32 %s517, 1
      %p521 = scmp.eq.s32.totalorder %s42, 1
      %p522 = scmp.ne.s32.totalorder %s517, %s519
      %p523 = scmp.eq.s32.totalorder %s42, 0
      %p524 = por %p522, %p523
      %p525 = scmp.ne.s32.totalorder %s517, %s519
      %p526 = scmp.eq.s32.totalorder %s47, 1
      %p527 = por %p525, %p526
      %p528 = scmp.ne.s32.totalorder %s519, %s520
      %p529 = scmp.eq.s32.totalorder %s47, 0
      %p530 = por %p528, %p529
      %p531 = scmp.ne.s32.totalorder %s519, %s520
      %p532 = scmp.eq.s32.totalorder %s48, 1
      %p533 = por %p531, %p532
      %p535 = scmp.ne.s32.totalorder %s520, %s534
      %p536 = scmp.eq.s32.totalorder %s48, 0
      %p537 = por %p535, %p536
      %s539 = sadd.s32 %s538, 1
      %p542 = scmp.eq.s32.totalorder %s42, 1
      %p543 = scmp.ne.s32.totalorder %s538, %s540
      %p544 = scmp.eq.s32.totalorder %s42, 0
      %p545 = por %p543, %p544
      %p546 = scmp.ne.s32.totalorder %s538, %s540
      %p547 = scmp.eq.s32.totalorder %s47, 1
      %p548 = por %p546, %p547
      %p549 = scmp.ne.s32.totalorder %s540, %s541
      %p550 = scmp.eq.s32.totalorder %s47, 0
      %p551 = por %p549, %p550
      %p552 = scmp.ne.s32.totalorder %s540, %s541
      %p553 = scmp.eq.s32.totalorder %s48, 1
      %p554 = por %p552, %p553
      %p556 = scmp.ne.s32.totalorder %s541, %s555
      %p557 = scmp.eq.s32.totalorder %s48, 0
      %p558 = por %p556, %p557
      %s560 = sadd.s32 %s559, 1
      %p563 = scmp.eq.s32.totalorder %s42, 1
      %p564 = scmp.ne.s32.totalorder %s559, %s561
      %p565 = scmp.eq.s32.totalorder %s42, 0
      %p566 = por %p564, %p565
      %p567 = scmp.ne.s32.totalorder %s559, %s561
      %p568 = scmp.eq.s32.totalorder %s47, 1
      %p569 = por %p567, %p568
      %p570 = scmp.ne.s32.totalorder %s561, %s562
      %p571 = scmp.eq.s32.totalorder %s47, 0
      %p572 = por %p570, %p571
      %p573 = scmp.ne.s32.totalorder %s561, %s562
      %p574 = scmp.eq.s32.totalorder %s48, 1
      %p575 = por %p573, %p574
      %p577 = scmp.ne.s32.totalorder %s562, %s576
      %p578 = scmp.eq.s32.totalorder %s48, 0
      %p579 = por %p577, %p578
      %s580 = ssub.s32 %s42, %s49
      %p581 = scmp.eq.s32.totalorder %s580, 0
      %s583 = sadd.s32 %s582, 1
      %s584 = scalar_select %p581, %s582, %s583
      %p587 = pneg %p581
      %p588 = scmp.eq.s32.totalorder %s42, 1
      %p589 = por %p587, %p588
      %p590 = scmp.ne.s32.totalorder %s582, %s585
      %p591 = scmp.eq.s32.totalorder %s42, 0
      %p592 = por %p590, %p591
      %p593 = scmp.ne.s32.totalorder %s582, %s585
      %p594 = scmp.eq.s32.totalorder %s47, 1
      %p595 = por %p593, %p594
      %p596 = scmp.ne.s32.totalorder %s585, %s586
      %p597 = scmp.eq.s32.totalorder %s47, 0
      %p598 = por %p596, %p597
      %p599 = scmp.ne.s32.totalorder %s585, %s586
      %p600 = scmp.eq.s32.totalorder %s48, 1
      %p601 = por %p599, %p600
      %p603 = scmp.ne.s32.totalorder %s586, %s602
      %p604 = scmp.eq.s32.totalorder %s48, 0
      %p605 = por %p603, %p604
      %p606 = scmp.le.s32.totalorder 1, %s42
      %p607 = scmp.lt.s32.totalorder %s42, 3
      %p608 = pnand %p606, %p607
      %p609 = pneg %p608
      // Predicated region
      $region9: #{call_predictor_pallas.1} parent=5 // pred_check
        _
      $region10: #{call_predictor_pallas.1} parent=5 // pred_check_branch
        %611 = sbr.rel (%p608) target = $region12
      $region11: #{call_predictor_pallas.1} parent=5 // pred_region
        %s612 = ssub.s32 %s42, 1
        // Predicated region
        $region13: #{call_predictor_pallas.1} parent=11 // pred_check
          %p613 = pneg %p89
        $region14: #{call_predictor_pallas.1} parent=11 // pred_check_branch
          %615 = sbr.rel (%p613) target = $region16
        $region15: #{call_predictor_pallas.1} parent=11 // pred_region
          _
        $region16: #{call_predictor_pallas.1} parent=11 // pred_fallthru
          _
        // Predicated region
        $region17: #{call_predictor_pallas.1} parent=11 // pred_check
          %p616 = pneg %p110
        $region18: #{call_predictor_pallas.1} parent=11 // pred_check_branch
          %618 = sbr.rel (%p616) target = $region20
        $region19: #{call_predictor_pallas.1} parent=11 // pred_region
          _
        $region20: #{call_predictor_pallas.1} parent=11 // pred_fallthru
          _
        // Predicated region
        $region21: #{call_predictor_pallas.1} parent=11 // pred_check
          %p619 = pneg %p131
        $region22: #{call_predictor_pallas.1} parent=11 // pred_check_branch
          %621 = sbr.rel (%p619) target = $region24
        $region23: #{call_predictor_pallas.1} parent=11 // pred_region
          _
        $region24: #{call_predictor_pallas.1} parent=11 // pred_fallthru
          _
        // Predicated region
        $region25: #{call_predictor_pallas.1} parent=11 // pred_check
          %p622 = pneg %p152
        $region26: #{call_predictor_pallas.1} parent=11 // pred_check_branch
          %624 = sbr.rel (%p622) target = $region28
        $region27: #{call_predictor_pallas.1} parent=11 // pred_region
          _
        $region28: #{call_predictor_pallas.1} parent=11 // pred_fallthru
          _
        // Predicated region
        $region29: #{call_predictor_pallas.1} parent=11 // pred_check
          %p625 = pneg %p173
        $region30: #{call_predictor_pallas.1} parent=11 // pred_check_branch
          %627 = sbr.rel (%p625) target = $region32
        $region31: #{call_predictor_pallas.1} parent=11 // pred_region
          %s629 = ssub.s32 2048, 2048
          %630 = vsyncadd [#allocation4], %s629
          %s631 = sshll.u32 [#allocation3], 4
          %s632 = int_to_ptr.vmem [resolvable:$true] %s631
          %637 = dma.hbm_to_vmem [thread:$0]  %s5, 2048, %s632, [#allocation4], 64, 64, 4
        $region32: #{call_predictor_pallas.1} parent=11 // pred_fallthru
          _
        // Predicated region
        $region33: #{call_predictor_pallas.1} parent=11 // pred_check
          %p638 = pneg %p194
        $region34: #{call_predictor_pallas.1} parent=11 // pred_check_branch
          %640 = sbr.rel (%p638) target = $region36
        $region35: #{call_predictor_pallas.1} parent=11 // pred_region
          %s642 = ssub.s32 2048, 2048
          %643 = vsyncadd [#allocation6], %s642
          %s644 = sshll.u32 [#allocation5], 4
          %s645 = int_to_ptr.vmem [resolvable:$true] %s644
          %650 = dma.hbm_to_vmem [thread:$0]  %s6, 2048, %s645, [#allocation6], 64, 64, 4
        $region36: #{call_predictor_pallas.1} parent=11 // pred_fallthru
          _
        // Predicated region
        $region37: #{call_predictor_pallas.1} parent=11 // pred_check
          %p651 = pneg %p215
        $region38: #{call_predictor_pallas.1} parent=11 // pred_check_branch
          %653 = sbr.rel (%p651) target = $region40
        $region39: #{call_predictor_pallas.1} parent=11 // pred_region
          %s655 = ssub.s32 2048, 2048
          %656 = vsyncadd [#allocation6], %s655
          %s657 = sshll.u32 [#allocation7], 4
          %s658 = int_to_ptr.vmem [resolvable:$true] %s657
          %663 = dma.hbm_to_vmem [thread:$0]  %s7, 2048, %s658, [#allocation6], 64, 64, 4
        $region40: #{call_predictor_pallas.1} parent=11 // pred_fallthru
          _
        // Predicated region
        $region41: #{call_predictor_pallas.1} parent=11 // pred_check
          %p664 = pneg %p236
        $region42: #{call_predictor_pallas.1} parent=11 // pred_check_branch
          %666 = sbr.rel (%p664) target = $region44
        $region43: #{call_predictor_pallas.1} parent=11 // pred_region
          %s668 = ssub.s32 2048, 2048
          %669 = vsyncadd [#allocation9], %s668
          %s670 = sshll.u32 [#allocation8], 4
          %s671 = int_to_ptr.vmem [resolvable:$true] %s670
          %676 = dma.hbm_to_vmem [thread:$0]  %s8, 2048, %s671, [#allocation9], 64, 64, 4
        $region44: #{call_predictor_pallas.1} parent=11 // pred_fallthru
          _
        // Predicated region
        $region45: #{call_predictor_pallas.1} parent=11 // pred_check
          %p677 = pneg %p257
        $region46: #{call_predictor_pallas.1} parent=11 // pred_check_branch
          %679 = sbr.rel (%p677) target = $region48
        $region47: #{call_predictor_pallas.1} parent=11 // pred_region
          %s681 = ssub.s32 2048, 2048
          %682 = vsyncadd [#allocation9], %s681
          %s683 = sshll.u32 [#allocation10], 4
          %s684 = int_to_ptr.vmem [resolvable:$true] %s683
          %689 = dma.hbm_to_vmem [thread:$0]  %s9, 2048, %s684, [#allocation9], 64, 64, 4
        $region48: #{call_predictor_pallas.1} parent=11 // pred_fallthru
          _
        // Predicated region
        $region49: #{call_predictor_pallas.1} parent=11 // pred_check
          %p690 = pneg %p278
        $region50: #{call_predictor_pallas.1} parent=11 // pred_check_branch
          %692 = sbr.rel (%p690) target = $region52
        $region51: #{call_predictor_pallas.1} parent=11 // pred_region
          %s694 = ssub.s32 2048, 2048
          %695 = vsyncadd [#allocation12], %s694
          %s696 = sshll.u32 [#allocation11], 4
          %s697 = int_to_ptr.vmem [resolvable:$true] %s696
          %702 = dma.hbm_to_vmem [thread:$0]  %s10, 2048, %s697, [#allocation12], 64, 64, 4
        $region52: #{call_predictor_pallas.1} parent=11 // pred_fallthru
          _
        // Predicated region
        $region53: #{call_predictor_pallas.1} parent=11 // pred_check
          %p703 = pneg %p299
        $region54: #{call_predictor_pallas.1} parent=11 // pred_check_branch
          %705 = sbr.rel (%p703) target = $region56
        $region55: #{call_predictor_pallas.1} parent=11 // pred_region
          %s707 = ssub.s32 1024, 1024
          %708 = vsyncadd [#allocation12], %s707
          %s709 = sshll.u32 [#allocation13], 4
          %s710 = int_to_ptr.vmem [resolvable:$true] %s709
          %715 = dma.hbm_to_vmem [thread:$0]  %s11, 1024, %s710, [#allocation12], 64, 64, 4
        $region56: #{call_predictor_pallas.1} parent=11 // pred_fallthru
          _
        // Predicated region
        $region57: #{call_predictor_pallas.1} parent=11 // pred_check
          %p716 = pneg %p320
        $region58: #{call_predictor_pallas.1} parent=11 // pred_check_branch
          %718 = sbr.rel (%p716) target = $region60
        $region59: #{call_predictor_pallas.1} parent=11 // pred_region
          %s720 = ssub.s32 1024, 1024
          %721 = vsyncadd [#allocation15], %s720
          %s722 = sshll.u32 [#allocation14], 4
          %s723 = int_to_ptr.vmem [resolvable:$true] %s722
          %728 = dma.hbm_to_vmem [thread:$0]  %s12, 1024, %s723, [#allocation15], 64, 64, 4
        $region60: #{call_predictor_pallas.1} parent=11 // pred_fallthru
          _
        // Predicated region
        $region61: #{call_predictor_pallas.1} parent=11 // pred_check
          %p729 = pneg %p341
        $region62: #{call_predictor_pallas.1} parent=11 // pred_check_branch
          %731 = sbr.rel (%p729) target = $region64
        $region63: #{call_predictor_pallas.1} parent=11 // pred_region
          %s733 = ssub.s32 1024, 1024
          %734 = vsyncadd [#allocation15], %s733
          %s735 = sshll.u32 [#allocation16], 4
          %s736 = int_to_ptr.vmem [resolvable:$true] %s735
          %741 = dma.hbm_to_vmem [thread:$0]  %s13, 1024, %s736, [#allocation15], 64, 64, 4
        $region64: #{call_predictor_pallas.1} parent=11 // pred_fallthru
          _
        // Predicated region
        $region65: #{call_predictor_pallas.1} parent=11 // pred_check
          %p742 = pneg %p362
        $region66: #{call_predictor_pallas.1} parent=11 // pred_check_branch
          %744 = sbr.rel (%p742) target = $region68
        $region67: #{call_predictor_pallas.1} parent=11 // pred_region
          %s746 = ssub.s32 1024, 1024
          %747 = vsyncadd [#allocation18], %s746
          %s748 = sshll.u32 [#allocation17], 4
          %s749 = int_to_ptr.vmem [resolvable:$true] %s748
          %754 = dma.hbm_to_vmem [thread:$0]  %s14, 1024, %s749, [#allocation18], 64, 64, 4
        $region68: #{call_predictor_pallas.1} parent=11 // pred_fallthru
          _
        // Predicated region
        $region69: #{call_predictor_pallas.1} parent=11 // pred_check
          %p755 = pneg %p383
        $region70: #{call_predictor_pallas.1} parent=11 // pred_check_branch
          %757 = sbr.rel (%p755) target = $region72
        $region71: #{call_predictor_pallas.1} parent=11 // pred_region
          %s759 = ssub.s32 1024, 1024
          %760 = vsyncadd [#allocation18], %s759
          %s761 = sshll.u32 [#allocation19], 4
          %s762 = int_to_ptr.vmem [resolvable:$true] %s761
          %767 = dma.hbm_to_vmem [thread:$0]  %s15, 1024, %s762, [#allocation18], 64, 64, 4
        $region72: #{call_predictor_pallas.1} parent=11 // pred_fallthru
          _
        // Predicated region
        $region73: #{call_predictor_pallas.1} parent=11 // pred_check
          %p768 = pneg %p404
        $region74: #{call_predictor_pallas.1} parent=11 // pred_check_branch
          %770 = sbr.rel (%p768) target = $region76
        $region75: #{call_predictor_pallas.1} parent=11 // pred_region
          %s772 = ssub.s32 1024, 1024
          %773 = vsyncadd [#allocation21], %s772
          %s774 = sshll.u32 [#allocation20], 4
          %s775 = int_to_ptr.vmem [resolvable:$true] %s774
          %780 = dma.hbm_to_vmem [thread:$0]  %s16, 1024, %s775, [#allocation21], 64, 64, 4
        $region76: #{call_predictor_pallas.1} parent=11 // pred_fallthru
          _
        // Predicated region
        $region77: #{call_predictor_pallas.1} parent=11 // pred_check
          %p781 = pneg %p425
        $region78: #{call_predictor_pallas.1} parent=11 // pred_check_branch
          %783 = sbr.rel (%p781) target = $region80
        $region79: #{call_predictor_pallas.1} parent=11 // pred_region
          _
        $region80: #{call_predictor_pallas.1} parent=11 // pred_fallthru
          _
        // Predicated region
        $region81: #{call_predictor_pallas.1} parent=11 // pred_check
          %p784 = pneg %p446
        $region82: #{call_predictor_pallas.1} parent=11 // pred_check_branch
          %786 = sbr.rel (%p784) target = $region84
        $region83: #{call_predictor_pallas.1} parent=11 // pred_region
          %s788 = ssub.s32 128, 128
          %789 = vsyncadd [#allocation21], %s788
          %s790 = sshll.u32 [#allocation22], 4
          %s791 = int_to_ptr.vmem [resolvable:$true] %s790
          %796 = dma.hbm_to_vmem [thread:$0]  %s18, 128, %s791, [#allocation21], 64, 64, 4
        $region84: #{call_predictor_pallas.1} parent=11 // pred_fallthru
          _
        // Predicated region
        $region85: #{call_predictor_pallas.1} parent=11 // pred_check
          %p797 = pneg %p467
        $region86: #{call_predictor_pallas.1} parent=11 // pred_check_branch
          %799 = sbr.rel (%p797) target = $region88
        $region87: #{call_predictor_pallas.1} parent=11 // pred_region
          %s801 = ssub.s32 16, 16
          %802 = vsyncadd [#allocation24], %s801
          %s804 = sshll.u32 [#allocation23], 4
          %s805 = int_to_ptr.vmem [resolvable:$true] %s804
          %807 = dma.hbm_to_vmem [thread:$0]  %s19, 16, %s805, [#allocation24]
        $region88: #{call_predictor_pallas.1} parent=11 // pred_fallthru
          _
        // Predicated region
        $region89: #{call_predictor_pallas.1} parent=11 // pred_check
          %p808 = pneg %p488
        $region90: #{call_predictor_pallas.1} parent=11 // pred_check_branch
          %810 = sbr.rel (%p808) target = $region92
        $region91: #{call_predictor_pallas.1} parent=11 // pred_region
          %s812 = ssub.s32 1024, 1024
          %813 = vsyncadd [#allocation24], %s812
          %s814 = sshll.u32 [#allocation25], 4
          %s815 = int_to_ptr.vmem [resolvable:$true] %s814
          %820 = dma.hbm_to_vmem [thread:$0]  %s20, 1024, %s815, [#allocation24], 64, 64, 4
        $region92: #{call_predictor_pallas.1} parent=11 // pred_fallthru
          _
        // Predicated region
        $region93: #{call_predictor_pallas.1} parent=11 // pred_check
          %p821 = pneg %p509
        $region94: #{call_predictor_pallas.1} parent=11 // pred_check_branch
          %823 = sbr.rel (%p821) target = $region96
        $region95: #{call_predictor_pallas.1} parent=11 // pred_region
          %s825 = ssub.s32 16, 16
          %826 = vsyncadd [#allocation27], %s825
          %s828 = sshll.u32 [#allocation26], 4
          %s829 = int_to_ptr.vmem [resolvable:$true] %s828
          %831 = dma.hbm_to_vmem [thread:$0]  %s21, 16, %s829, [#allocation27]
        $region96: #{call_predictor_pallas.1} parent=11 // pred_fallthru
          _
        // Predicated region
        $region97: #{call_predictor_pallas.1} parent=11 // pred_check
          %p832 = pneg %p530
        $region98: #{call_predictor_pallas.1} parent=11 // pred_check_branch
          %834 = sbr.rel (%p832) target = $region100
        $region99: #{call_predictor_pallas.1} parent=11 // pred_region
          _
        $region100: #{call_predictor_pallas.1} parent=11 // pred_fallthru
          _
        // Predicated region
        $region101: #{call_predictor_pallas.1} parent=11 // pred_check
          %p835 = pneg %p551
        $region102: #{call_predictor_pallas.1} parent=11 // pred_check_branch
          %837 = sbr.rel (%p835) target = $region104
        $region103: #{call_predictor_pallas.1} parent=11 // pred_region
          _
        $region104: #{call_predictor_pallas.1} parent=11 // pred_fallthru
          _
        // Predicated region
        $region105: #{call_predictor_pallas.1} parent=11 // pred_check
          %p838 = pneg %p572
        $region106: #{call_predictor_pallas.1} parent=11 // pred_check_branch
          %840 = sbr.rel (%p838) target = $region108
        $region107: #{call_predictor_pallas.1} parent=11 // pred_region
          _
        $region108: #{call_predictor_pallas.1} parent=11 // pred_fallthru
          _
      $region12: #{call_predictor_pallas.1} parent=5 // pred_fallthru
        _
      %p841 = scmp.lt.s32.totalorder %s42, 2
      // Predicated region
      $region109: #{call_predictor_pallas.1} parent=5 // pred_check
        %p842 = pneg %p841
      $region110: #{call_predictor_pallas.1} parent=5 // pred_check_branch
        %844 = sbr.rel (%p842) target = $region112
      $region111: #{call_predictor_pallas.1} parent=5 // pred_region
        // Predicated region
        $region113: #{call_predictor_pallas.1} parent=111 // pred_check
          %p845 = pneg %p62
        $region114: #{call_predictor_pallas.1} parent=111 // pred_check_branch
          %847 = sbr.rel (%p845) target = $region116
        $region115: #{call_predictor_pallas.1} parent=111 // pred_region
          %p848 = scmp.lt.s32.totalorder %s42, 1
          %s849 = scalar_select %p848, %s42, 1
          %s850 = smul.addr %s849, 4
          %s851 = smul.addr %s850, 8
          %s852 = scalar_lea.vmem %s0, %s851
        $region116: #{call_predictor_pallas.1} parent=111 // pred_fallthru
          _
      $region112: #{call_predictor_pallas.1} parent=5 // pred_fallthru
        _
      %p853 = scmp.le.s32.totalorder 1, %s42
      %p854 = scmp.lt.s32.totalorder %s42, 3
      %p855 = pnand %p853, %p854
      %p856 = pneg %p855
      // Predicated region
      $region117: #{call_predictor_pallas.1} parent=5 // pred_check
        _
      $region118: #{call_predictor_pallas.1} parent=5 // pred_check_branch
        %858 = sbr.rel (%p855) target = $region120
      $region119: #{call_predictor_pallas.1} parent=5 // pred_region
        %s859 = ssub.s32 %s42, 1
        // Predicated region
        $region121: #{call_predictor_pallas.1} parent=119 // pred_check
          %p860 = pneg %p173
        $region122: #{call_predictor_pallas.1} parent=119 // pred_check_branch
          %862 = sbr.rel (%p860) target = $region124
        $region123: #{call_predictor_pallas.1} parent=119 // pred_region
          %863 = dma.done [#allocation4], 2048
        $region124: #{call_predictor_pallas.1} parent=119 // pred_fallthru
          _
        // Predicated region
        $region125: #{call_predictor_pallas.1} parent=119 // pred_check
          %p864 = pneg %p194
        $region126: #{call_predictor_pallas.1} parent=119 // pred_check_branch
          %866 = sbr.rel (%p864) target = $region128
        $region127: #{call_predictor_pallas.1} parent=119 // pred_region
          %867 = dma.done [#allocation6], 2048
        $region128: #{call_predictor_pallas.1} parent=119 // pred_fallthru
          _
        // Predicated region
        $region129: #{call_predictor_pallas.1} parent=119 // pred_check
          %p868 = pneg %p215
        $region130: #{call_predictor_pallas.1} parent=119 // pred_check_branch
          %870 = sbr.rel (%p868) target = $region132
        $region131: #{call_predictor_pallas.1} parent=119 // pred_region
          %871 = dma.done [#allocation6], 2048
        $region132: #{call_predictor_pallas.1} parent=119 // pred_fallthru
          _
        // Predicated region
        $region133: #{call_predictor_pallas.1} parent=119 // pred_check
          %p872 = pneg %p236
        $region134: #{call_predictor_pallas.1} parent=119 // pred_check_branch
          %874 = sbr.rel (%p872) target = $region136
        $region135: #{call_predictor_pallas.1} parent=119 // pred_region
          %875 = dma.done [#allocation9], 2048
        $region136: #{call_predictor_pallas.1} parent=119 // pred_fallthru
          _
        // Predicated region
        $region137: #{call_predictor_pallas.1} parent=119 // pred_check
          %p876 = pneg %p257
        $region138: #{call_predictor_pallas.1} parent=119 // pred_check_branch
          %878 = sbr.rel (%p876) target = $region140
        $region139: #{call_predictor_pallas.1} parent=119 // pred_region
          %879 = dma.done [#allocation9], 2048
        $region140: #{call_predictor_pallas.1} parent=119 // pred_fallthru
          _
        // Predicated region
        $region141: #{call_predictor_pallas.1} parent=119 // pred_check
          %p880 = pneg %p278
        $region142: #{call_predictor_pallas.1} parent=119 // pred_check_branch
          %882 = sbr.rel (%p880) target = $region144
        $region143: #{call_predictor_pallas.1} parent=119 // pred_region
          %883 = dma.done [#allocation12], 2048
        $region144: #{call_predictor_pallas.1} parent=119 // pred_fallthru
          _
        // Predicated region
        $region145: #{call_predictor_pallas.1} parent=119 // pred_check
          %p884 = pneg %p299
        $region146: #{call_predictor_pallas.1} parent=119 // pred_check_branch
          %886 = sbr.rel (%p884) target = $region148
        $region147: #{call_predictor_pallas.1} parent=119 // pred_region
          %887 = dma.done [#allocation12], 1024
        $region148: #{call_predictor_pallas.1} parent=119 // pred_fallthru
          _
        // Predicated region
        $region149: #{call_predictor_pallas.1} parent=119 // pred_check
          %p888 = pneg %p320
        $region150: #{call_predictor_pallas.1} parent=119 // pred_check_branch
          %890 = sbr.rel (%p888) target = $region152
        $region151: #{call_predictor_pallas.1} parent=119 // pred_region
          %891 = dma.done [#allocation15], 1024
        $region152: #{call_predictor_pallas.1} parent=119 // pred_fallthru
          _
        // Predicated region
        $region153: #{call_predictor_pallas.1} parent=119 // pred_check
          %p892 = pneg %p341
        $region154: #{call_predictor_pallas.1} parent=119 // pred_check_branch
          %894 = sbr.rel (%p892) target = $region156
        $region155: #{call_predictor_pallas.1} parent=119 // pred_region
          %895 = dma.done [#allocation15], 1024
        $region156: #{call_predictor_pallas.1} parent=119 // pred_fallthru
          _
        // Predicated region
        $region157: #{call_predictor_pallas.1} parent=119 // pred_check
          %p896 = pneg %p362
        $region158: #{call_predictor_pallas.1} parent=119 // pred_check_branch
          %898 = sbr.rel (%p896) target = $region160
        $region159: #{call_predictor_pallas.1} parent=119 // pred_region
          %899 = dma.done [#allocation18], 1024
        $region160: #{call_predictor_pallas.1} parent=119 // pred_fallthru
          _
        // Predicated region
        $region161: #{call_predictor_pallas.1} parent=119 // pred_check
          %p900 = pneg %p383
        $region162: #{call_predictor_pallas.1} parent=119 // pred_check_branch
          %902 = sbr.rel (%p900) target = $region164
        $region163: #{call_predictor_pallas.1} parent=119 // pred_region
          %903 = dma.done [#allocation18], 1024
        $region164: #{call_predictor_pallas.1} parent=119 // pred_fallthru
          _
        // Predicated region
        $region165: #{call_predictor_pallas.1} parent=119 // pred_check
          %p904 = pneg %p404
        $region166: #{call_predictor_pallas.1} parent=119 // pred_check_branch
          %906 = sbr.rel (%p904) target = $region168
        $region167: #{call_predictor_pallas.1} parent=119 // pred_region
          %907 = dma.done [#allocation21], 1024
        $region168: #{call_predictor_pallas.1} parent=119 // pred_fallthru
          _
        // Predicated region
        $region169: #{call_predictor_pallas.1} parent=119 // pred_check
          %p908 = pneg %p446
        $region170: #{call_predictor_pallas.1} parent=119 // pred_check_branch
          %910 = sbr.rel (%p908) target = $region172
        $region171: #{call_predictor_pallas.1} parent=119 // pred_region
          %911 = dma.done [#allocation21], 128
        $region172: #{call_predictor_pallas.1} parent=119 // pred_fallthru
          _
        // Predicated region
        $region173: #{call_predictor_pallas.1} parent=119 // pred_check
          %p912 = pneg %p467
        $region174: #{call_predictor_pallas.1} parent=119 // pred_check_branch
          %914 = sbr.rel (%p912) target = $region176
        $region175: #{call_predictor_pallas.1} parent=119 // pred_region
          %915 = dma.done [#allocation24], 16
        $region176: #{call_predictor_pallas.1} parent=119 // pred_fallthru
          _
        // Predicated region
        $region177: #{call_predictor_pallas.1} parent=119 // pred_check
          %p916 = pneg %p488
        $region178: #{call_predictor_pallas.1} parent=119 // pred_check_branch
          %918 = sbr.rel (%p916) target = $region180
        $region179: #{call_predictor_pallas.1} parent=119 // pred_region
          %919 = dma.done [#allocation24], 1024
        $region180: #{call_predictor_pallas.1} parent=119 // pred_fallthru
          _
        // Predicated region
        $region181: #{call_predictor_pallas.1} parent=119 // pred_check
          %p920 = pneg %p509
        $region182: #{call_predictor_pallas.1} parent=119 // pred_check_branch
          %922 = sbr.rel (%p920) target = $region184
        $region183: #{call_predictor_pallas.1} parent=119 // pred_region
          %923 = dma.done [#allocation27], 16
        $region184: #{call_predictor_pallas.1} parent=119 // pred_fallthru
          _
        %p924 = scmp.lt.s32.totalorder %s47, 1
        %s925 = scalar_select %p924, %s47, 1
        %s926 = smul.addr %s925, 4
        %s927 = smul.addr %s926, 8
        %s928 = scalar_lea.vmem %s0, %s927
        %p929 = pneg %p68
        %p930 = pneg %p65
        %p931 = pneg %p89
        %p932 = pneg %p86
        %p933 = pneg %p110
        %p934 = pneg %p107
        %p935 = pneg %p131
        %p936 = pneg %p128
        %p937 = pneg %p152
        %p938 = pneg %p149
        %p939 = pneg %p173
        %p940 = pneg %p170
        %p941 = pneg %p194
        %p942 = pneg %p191
        %p943 = pneg %p215
        %p944 = pneg %p212
        %p945 = pneg %p236
        %p946 = pneg %p233
        %p947 = pneg %p257
        %p948 = pneg %p254
        %p949 = pneg %p278
        %p950 = pneg %p275
        %p951 = pneg %p299
        %p952 = pneg %p296
        %p953 = pneg %p320
        %p954 = pneg %p317
        %p955 = pneg %p341
        %p956 = pneg %p338
        %p957 = pneg %p362
        %p958 = pneg %p359
        %p959 = pneg %p383
        %p960 = pneg %p380
        %p961 = pneg %p404
        %p962 = pneg %p401
        %p963 = pneg %p425
        %p964 = pneg %p422
        %p965 = pneg %p446
        %p966 = pneg %p443
        %p967 = pneg %p467
        %p968 = pneg %p464
        %p969 = pneg %p488
        %p970 = pneg %p485
        %p971 = pneg %p509
        %p972 = pneg %p506
        %p973 = pneg %p530
        %p974 = pneg %p527
        %p975 = pneg %p551
        %p976 = pneg %p548
        %p977 = pneg %p572
        %p978 = pneg %p569
        %p979 = pneg %p598
        %p980 = pneg %p595
        %p981 = scmp.lt.s32.totalorder %s47, 1
        %s982 = scalar_select %p981, %s47, 1
        %s983 = scalar_lea.vmem %s25, %s982
        %p984 = scmp.lt.s32.totalorder %s47, 1
        %s985 = scalar_select %p984, %s47, 1
        %s986 = smul.addr %s985, 4
        %s987 = smul.addr %s986, 8
        %s988 = scalar_lea.vmem %s0, %s987
        %p989 = scmp.lt.s32.totalorder %s47, 1
        %s990 = scalar_select %p989, %s47, 1
        %s991 = scalar_lea.vmem %s25, %s990
        %v993 = vld [vmem:[%s988] sm:$0xff]
        %v994 = vld [vmem:[%s988 + $0x8] sm:$0xff]
        %v995 = vld [vmem:[%s988 + $0x10] sm:$0xff]
        %v996 = vld [vmem:[%s988 + $0x18] sm:$0xff]
        %v997 = vld [vmem:[%s17] sm:$0x1]
        %vm1002 = vcmask 1040384
        %v1003 = vrot.slane %v993, 7
        %v1004 = vrot.slane %v994, 7
        %v1005 = vsel %vm1002, %v1003, %v1004
        %v1006 = vrot.slane %v995, 7
        %v1007 = vsel %vm1002, %v1004, %v1006
        %v1008 = vrot.slane %v996, 7
        %v1009 = vsel %vm1002, %v1006, %v1008
        %v1014 = vsel %vm1002, 0.0, %v1003
        %v1015 = vld [vmem:[%s1] sm:$0xf]
        %v1016 = vld [vmem:[%s1 + $0x4] sm:$0xf]
        %v1017 = vld [vmem:[%s1 + $0x8] sm:$0xf]
        %v1018 = vld [vmem:[%s1 + $0xc] sm:$0xf]
        %v1019 = vpack.c.bf16 %v1005, %v1014
        %v1020 = vpack.c.bf16 %v1009, %v1007
        %v1021 = vpack.c.bf16 %v994, %v993
        %v1022 = vpack.c.bf16 %v996, %v995
        %v1025 = vunpack.c.l.b16 %v1017
        %v1026 = vunpack.c.l.b16 %v1018
        %v1027 = vpack.c.b16 %v1026, %v1025
        %vm1029 = vcmask 130048
        %v1031 = vsel %vm1029, %v1021, 0
        %v1034 = vsel %vm1029, %v1022, 0
        %1036 = vmatprep.subr.bf16.mxu0 0
        %1037 = vmatpush1.bf16.msra.mxu0 %v1027
        %1038 = vmatprep.subr.bf16.mxu0 0
        %1039 = vmatpush1.bf16.msra.mxu0 0
        %1040 = vmatprep.subr.bf16.mxu0 0
        %1041 = vmatpush1.bf16.msra.mxu0 0
        %1042 = vmatprep.subr.bf16.mxu0 0
        %1043 = vmatpush1.bf16.msra.mxu0 0
        %1044 = vmatprep.subr.bf16.mxu0 0
        %1045 = vmatpush1.bf16.msra.mxu0 0
        %1046 = vmatprep.subr.bf16.mxu0 0
        %1047 = vmatpush1.bf16.msra.mxu0 0
        %1048 = vmatprep.subr.bf16.mxu0 0
        %1049 = vmatpush1.bf16.msra.mxu0 0
        %1050 = vmatprep.subr.bf16.mxu0 0
        %1051 = vmatpush1.bf16.msra.mxu0 0
        %1052 = vmatprep.subr.bf16.mxu0 0
        %1053 = vmatpush1.bf16.msra.mxu0 0
        %1054 = vmatprep.subr.bf16.mxu0 0
        %1055 = vmatpush1.bf16.msra.mxu0 0
        %1056 = vmatprep.subr.bf16.mxu0 0
        %1057 = vmatpush1.bf16.msra.mxu0 0
        %1058 = vmatprep.subr.bf16.mxu0 0
        %1059 = vmatpush1.bf16.msra.mxu0 0
        %1060 = vmatprep.subr.bf16.mxu0 0
        %1061 = vmatpush1.bf16.msra.mxu0 0
        %1062 = vmatprep.subr.bf16.mxu0 0
        %1063 = vmatpush1.bf16.msra.mxu0 0
        %1064 = vmatprep.subr.bf16.mxu0 0
        %1065 = vmatpush1.bf16.msra.mxu0 0
        %1066 = vmatprep.subr.bf16.mxu0 0
        %1067 = vmatpush1.bf16.msra.mxu0 0
        %1068 = vmatprep.mubr.bf16.mxu0 0
        %1069 = vmatmul.mubr.bf16.gmra.mrb[0].mxu0 %v1031
        %v1070 = vpop.f32.mrb[0].mxu0
        %v1071 = vadd.f32 0.0, %v1070
        %v1072 = vpop.f32.mrb[0].mxu0
        %v1073 = vpop.f32.mrb[0].mxu0
        %v1074 = vadd.f32 0.0, %v1073
        %v1075 = vpop.f32.mrb[0].mxu0
        %1076 = vmatprep.mubr.bf16.mxu0 0
        %1077 = vmatmul.mubr.bf16.gmra.mrb[0].mxu0 %v1034
        %v1078 = vpop.f32.mrb[0].mxu0
        %v1079 = vadd.f32 0.0, %v1078
        %v1080 = vpop.f32.mrb[0].mxu0
        %v1081 = vpop.f32.mrb[0].mxu0
        %v1082 = vadd.f32 0.0, %v1081
        %v1083 = vpop.f32.mrb[0].mxu0
        %1084 = vdwg.mxu0
        %v1087 = vunpack.c.l.b16 %v1015
        %v1088 = vunpack.c.l.b16 %v1016
        %v1089 = vpack.c.b16 %v1088, %v1087
        %v1092 = vsel %vm1029, %v1019, 0
        %v1095 = vsel %vm1029, %v1020, 0
        %1097 = vmatprep.subr.bf16.mxu0 0
        %1098 = vmatpush1.bf16.msra.mxu0 %v1089
        %1099 = vmatprep.subr.bf16.mxu0 0
        %1100 = vmatpush1.bf16.msra.mxu0 0
        %1101 = vmatprep.subr.bf16.mxu0 0
        %1102 = vmatpush1.bf16.msra.mxu0 0
        %1103 = vmatprep.subr.bf16.mxu0 0
        %1104 = vmatpush1.bf16.msra.mxu0 0
        %1105 = vmatprep.subr.bf16.mxu0 0
        %1106 = vmatpush1.bf16.msra.mxu0 0
        %1107 = vmatprep.subr.bf16.mxu0 0
        %1108 = vmatpush1.bf16.msra.mxu0 0
        %1109 = vmatprep.subr.bf16.mxu0 0
        %1110 = vmatpush1.bf16.msra.mxu0 0
        %1111 = vmatprep.subr.bf16.mxu0 0
        %1112 = vmatpush1.bf16.msra.mxu0 0
        %1113 = vmatprep.subr.bf16.mxu0 0
        %1114 = vmatpush1.bf16.msra.mxu0 0
        %1115 = vmatprep.subr.bf16.mxu0 0
        %1116 = vmatpush1.bf16.msra.mxu0 0
        %1117 = vmatprep.subr.bf16.mxu0 0
        %1118 = vmatpush1.bf16.msra.mxu0 0
        %1119 = vmatprep.subr.bf16.mxu0 0
        %1120 = vmatpush1.bf16.msra.mxu0 0
        %1121 = vmatprep.subr.bf16.mxu0 0
        %1122 = vmatpush1.bf16.msra.mxu0 0
        %1123 = vmatprep.subr.bf16.mxu0 0
        %1124 = vmatpush1.bf16.msra.mxu0 0
        %1125 = vmatprep.subr.bf16.mxu0 0
        %1126 = vmatpush1.bf16.msra.mxu0 0
        %1127 = vmatprep.subr.bf16.mxu0 0
        %1128 = vmatpush1.bf16.msra.mxu0 0
        %1129 = vmatprep.mubr.bf16.mxu0 0
        %1130 = vmatmul.mubr.bf16.gmra.mrb[0].mxu0 %v1092
        %v1131 = vpop.f32.mrb[0].mxu0
        %v1132 = vadd.f32 %v1071, %v1131
        %v1133 = vpop.f32.mrb[0].mxu0
        %v1134 = vpop.f32.mrb[0].mxu0
        %v1135 = vadd.f32 %v1074, %v1134
        %v1136 = vpop.f32.mrb[0].mxu0
        %1137 = vmatprep.mubr.bf16.mxu0 0
        %1138 = vmatmul.mubr.bf16.gmra.mrb[0].mxu0 %v1095
        %v1139 = vpop.f32.mrb[0].mxu0
        %v1140 = vadd.f32 %v1079, %v1139
        %v1141 = vpop.f32.mrb[0].mxu0
        %v1142 = vpop.f32.mrb[0].mxu0
        %v1143 = vadd.f32 %v1082, %v1142
        %v1144 = vpop.f32.mrb[0].mxu0
        %1145 = vdwg.mxu0
        %v1147 = vlaneseq
        %v1148 = vshrl.u32 %v1147, 7
        %v1149 = vsub.s32 0, %v1148
        %v1150 = vrot.slane %v997, %v1149
        %v1152 = vadd.f32 %v1132, %v1150
        %v1153 = vadd.f32 %v1135, %v1150
        %v1154 = vadd.f32 %v1140, %v1150
        %v1155 = vadd.f32 %v1143, %v1150
        %v1156 = vmax.f32 %v1152, 0.0
        %v1157 = vmax.f32 %v1153, 0.0
        %v1158 = vmax.f32 %v1154, 0.0
        %v1159 = vmax.f32 %v1155, 0.0
        %s1160 = scalar_lea.vmem %s17, 1
        %v1161 = vld [vmem:[%s1160] sm:$0x1]
        %v1166 = vrot.slane %v1156, 7
        %v1167 = vrot.slane %v1157, 7
        %v1168 = vsel %vm1002, %v1166, %v1167
        %v1169 = vrot.slane %v1158, 7
        %v1170 = vsel %vm1002, %v1167, %v1169
        %v1171 = vrot.slane %v1159, 7
        %v1172 = vsel %vm1002, %v1169, %v1171
        %v1177 = vsel %vm1002, 0.0, %v1166
        %v1178 = vpack.c.bf16 %v1168, %v1177
        %v1179 = vpack.c.bf16 %v1157, %v1156
        %v1180 = vpack.c.bf16 %v1172, %v1170
        %v1181 = vpack.c.bf16 %v1159, %v1158
        %v1182 = vld [vmem:[%s2] sm:$0xf]
        %v1183 = vld [vmem:[%s2 + $0x4] sm:$0xf]
        %v1184 = vld [vmem:[%s2 + $0x8] sm:$0xf]
        %v1185 = vld [vmem:[%s2 + $0xc] sm:$0xf]
        %v1186 = vld [vmem:[%s2 + $0x10] sm:$0xf]
        %v1187 = vld [vmem:[%s2 + $0x14] sm:$0xf]
        %v1188 = vld [vmem:[%s2 + $0x18] sm:$0xf]
        %v1189 = vld [vmem:[%s2 + $0x1c] sm:$0xf]
        %v1190 = vld [vmem:[%s2 + $0x20] sm:$0xf]
        %v1191 = vld [vmem:[%s2 + $0x24] sm:$0xf]
        %v1192 = vld [vmem:[%s2 + $0x28] sm:$0xf]
        %v1193 = vld [vmem:[%s2 + $0x2c] sm:$0xf]
        %v1194 = vld [vmem:[%s2 + $0x30] sm:$0xf]
        %v1195 = vld [vmem:[%s2 + $0x34] sm:$0xf]
        %v1196 = vld [vmem:[%s2 + $0x38] sm:$0xf]
        %v1197 = vld [vmem:[%s2 + $0x3c] sm:$0xf]
        %v1198 = vld [vmem:[%s2 + $0x40] sm:$0xf]
        %v1199 = vld [vmem:[%s2 + $0x44] sm:$0xf]
        %v1200 = vld [vmem:[%s2 + $0x48] sm:$0xf]
        %v1201 = vld [vmem:[%s2 + $0x4c] sm:$0xf]
        %v1202 = vld [vmem:[%s2 + $0x50] sm:$0xf]
        %v1203 = vld [vmem:[%s2 + $0x54] sm:$0xf]
        %v1204 = vld [vmem:[%s2 + $0x58] sm:$0xf]
        %v1205 = vld [vmem:[%s2 + $0x5c] sm:$0xf]
        %v1206 = vld [vmem:[%s2 + $0x60] sm:$0xf]
        %v1207 = vld [vmem:[%s2 + $0x64] sm:$0xf]
        %v1208 = vld [vmem:[%s2 + $0x68] sm:$0xf]
        %v1209 = vld [vmem:[%s2 + $0x6c] sm:$0xf]
        %v1210 = vld [vmem:[%s2 + $0x70] sm:$0xf]
        %v1211 = vld [vmem:[%s2 + $0x74] sm:$0xf]
        %v1212 = vld [vmem:[%s2 + $0x78] sm:$0xf]
        %v1213 = vld [vmem:[%s2 + $0x7c] sm:$0xf]
        %v1215 = vlaneseq
        %v1216 = vshrl.u32 %v1215, 7
        %v1217 = vsub.s32 0, %v1216
        %v1218 = vrot.slane %v1161, %v1217
        %v1252 = vunpack.c.l.b16 %v1182
        %v1253 = vunpack.c.l.b16 %v1183
        %v1254 = vunpack.c.l.b16 %v1184
        %v1255 = vunpack.c.l.b16 %v1185
        %v1256 = vunpack.c.l.b16 %v1186
        %v1257 = vunpack.c.l.b16 %v1187
        %v1258 = vunpack.c.l.b16 %v1188
        %v1259 = vunpack.c.l.b16 %v1189
        %v1260 = vunpack.c.l.b16 %v1190
        %v1261 = vunpack.c.l.b16 %v1191
        %v1262 = vunpack.c.l.b16 %v1192
        %v1263 = vunpack.c.l.b16 %v1193
        %v1264 = vunpack.c.l.b16 %v1194
        %v1265 = vunpack.c.l.b16 %v1195
        %v1266 = vunpack.c.l.b16 %v1196
        %v1267 = vunpack.c.l.b16 %v1197
        %v1268 = vunpack.c.l.b16 %v1198
        %v1269 = vunpack.c.l.b16 %v1199
        %v1270 = vunpack.c.l.b16 %v1200
        %v1271 = vunpack.c.l.b16 %v1201
        %v1272 = vunpack.c.l.b16 %v1202
        %v1273 = vunpack.c.l.b16 %v1203
        %v1274 = vunpack.c.l.b16 %v1204
        %v1275 = vunpack.c.l.b16 %v1205
        %v1276 = vunpack.c.l.b16 %v1206
        %v1277 = vunpack.c.l.b16 %v1207
        %v1278 = vunpack.c.l.b16 %v1208
        %v1279 = vunpack.c.l.b16 %v1209
        %v1280 = vunpack.c.l.b16 %v1210
        %v1281 = vunpack.c.l.b16 %v1211
        %v1282 = vunpack.c.l.b16 %v1212
        %v1283 = vunpack.c.l.b16 %v1213
        %v1284 = vpack.c.b16 %v1253, %v1252
        %v1285 = vpack.c.b16 %v1255, %v1254
        %v1286 = vpack.c.b16 %v1257, %v1256
        %v1287 = vpack.c.b16 %v1259, %v1258
        %v1288 = vpack.c.b16 %v1261, %v1260
        %v1289 = vpack.c.b16 %v1263, %v1262
        %v1290 = vpack.c.b16 %v1265, %v1264
        %v1291 = vpack.c.b16 %v1267, %v1266
        %v1292 = vpack.c.b16 %v1269, %v1268
        %v1293 = vpack.c.b16 %v1271, %v1270
        %v1294 = vpack.c.b16 %v1273, %v1272
        %v1295 = vpack.c.b16 %v1275, %v1274
        %v1296 = vpack.c.b16 %v1277, %v1276
        %v1297 = vpack.c.b16 %v1279, %v1278
        %v1298 = vpack.c.b16 %v1281, %v1280
        %v1299 = vpack.c.b16 %v1283, %v1282
        %1316 = vmatprep.subr.bf16.mxu0 0
        %1317 = vmatpush1.bf16.msra.mxu0 %v1284
        %1318 = vmatprep.subr.bf16.mxu0 0
        %1319 = vmatpush1.bf16.msra.mxu0 %v1285
        %1320 = vmatprep.subr.bf16.mxu0 0
        %1321 = vmatpush1.bf16.msra.mxu0 %v1286
        %1322 = vmatprep.subr.bf16.mxu0 0
        %1323 = vmatpush1.bf16.msra.mxu0 %v1287
        %1324 = vmatprep.subr.bf16.mxu0 0
        %1325 = vmatpush1.bf16.msra.mxu0 %v1288
        %1326 = vmatprep.subr.bf16.mxu0 0
        %1327 = vmatpush1.bf16.msra.mxu0 %v1289
        %1328 = vmatprep.subr.bf16.mxu0 0
        %1329 = vmatpush1.bf16.msra.mxu0 %v1290
        %1330 = vmatprep.subr.bf16.mxu0 0
        %1331 = vmatpush1.bf16.msra.mxu0 %v1291
        %1332 = vmatprep.subr.bf16.mxu0 0
        %1333 = vmatpush1.bf16.msra.mxu0 %v1292
        %1334 = vmatprep.subr.bf16.mxu0 0
        %1335 = vmatpush1.bf16.msra.mxu0 %v1293
        %1336 = vmatprep.subr.bf16.mxu0 0
        %1337 = vmatpush1.bf16.msra.mxu0 %v1294
        %1338 = vmatprep.subr.bf16.mxu0 0
        %1339 = vmatpush1.bf16.msra.mxu0 %v1295
        %1340 = vmatprep.subr.bf16.mxu0 0
        %1341 = vmatpush1.bf16.msra.mxu0 %v1296
        %1342 = vmatprep.subr.bf16.mxu0 0
        %1343 = vmatpush1.bf16.msra.mxu0 %v1297
        %1344 = vmatprep.subr.bf16.mxu0 0
        %1345 = vmatpush1.bf16.msra.mxu0 %v1298
        %1346 = vmatprep.subr.bf16.mxu0 0
        %1347 = vmatpush1.bf16.msra.mxu0 %v1299
        %1348 = vmatprep.mubr.bf16.mxu0 %v1179
        %1349 = vmatmul.mubr.bf16.gmra.mrb[0].mxu0 %v1178
        %v1350 = vpop.f32.mrb[0].mxu0
        %v1351 = vadd.f32 %v1218, %v1350
        %v1352 = vpop.f32.mrb[0].mxu0
        %v1353 = vpop.f32.mrb[0].mxu0
        %v1354 = vadd.f32 %v1218, %v1353
        %v1355 = vpop.f32.mrb[0].mxu0
        %1356 = vmatprep.mubr.bf16.mxu0 %v1181
        %1357 = vmatmul.mubr.bf16.gmra.mrb[0].mxu0 %v1180
        %v1358 = vpop.f32.mrb[0].mxu0
        %v1359 = vadd.f32 %v1218, %v1358
        %v1360 = vpop.f32.mrb[0].mxu0
        %v1361 = vpop.f32.mrb[0].mxu0
        %v1362 = vadd.f32 %v1218, %v1361
        %v1363 = vpop.f32.mrb[0].mxu0
        %1364 = vdwg.mxu0
        %v1365 = vmax.f32 %v1351, 0.0
        %v1366 = vmax.f32 %v1354, 0.0
        %v1367 = vmax.f32 %v1359, 0.0
        %v1368 = vmax.f32 %v1362, 0.0
        %v1369 = vld [vmem:[#allocation22] sm:$0xf]
        %v1370 = vld [vmem:[#allocation22 + $0x4] sm:$0xf]
        %v1371 = vld [vmem:[#allocation23] sm:$0x1]
        %v1373 = vlaneseq
        %v1374 = vshrl.u32 %v1373, 7
        %v1375 = vsub.s32 0, %v1374
        %v1376 = vrot.slane %v1371, %v1375
        %v1380 = vunpack.c.l.b16 %v1369
        %v1381 = vunpack.c.l.b16 %v1370
        %v1382 = vpack.c.b16 %v1381, %v1380
        %1384 = vmatprep.subr.bf16.mxu0 0
        %1385 = vmatpush1.bf16.msra.mxu0 %v1382
        %1386 = vmatprep.subr.bf16.mxu0 0
        %1387 = vmatpush1.bf16.msra.mxu0 0
        %1388 = vmatprep.subr.bf16.mxu0 0
        %1389 = vmatpush1.bf16.msra.mxu0 0
        %1390 = vmatprep.subr.bf16.mxu0 0
        %1391 = vmatpush1.bf16.msra.mxu0 0
        %1392 = vmatprep.subr.bf16.mxu0 0
        %1393 = vmatpush1.bf16.msra.mxu0 0
        %1394 = vmatprep.subr.bf16.mxu0 0
        %1395 = vmatpush1.bf16.msra.mxu0 0
        %1396 = vmatprep.subr.bf16.mxu0 0
        %1397 = vmatpush1.bf16.msra.mxu0 0
        %1398 = vmatprep.subr.bf16.mxu0 0
        %1399 = vmatpush1.bf16.msra.mxu0 0
        %1400 = vmatprep.subr.bf16.mxu0 0
        %1401 = vmatpush1.bf16.msra.mxu0 0
        %1402 = vmatprep.subr.bf16.mxu0 0
        %1403 = vmatpush1.bf16.msra.mxu0 0
        %1404 = vmatprep.subr.bf16.mxu0 0
        %1405 = vmatpush1.bf16.msra.mxu0 0
        %1406 = vmatprep.subr.bf16.mxu0 0
        %1407 = vmatpush1.bf16.msra.mxu0 0
        %1408 = vmatprep.subr.bf16.mxu0 0
        %1409 = vmatpush1.bf16.msra.mxu0 0
        %1410 = vmatprep.subr.bf16.mxu0 0
        %1411 = vmatpush1.bf16.msra.mxu0 0
        %1412 = vmatprep.subr.bf16.mxu0 0
        %1413 = vmatpush1.bf16.msra.mxu0 0
        %1414 = vmatprep.subr.bf16.mxu0 0
        %1415 = vmatpush1.bf16.msra.mxu0 0
        %1416 = vmatprep.mubr.bf16.mxu0 0
        %1417 = vmatmul.mubr.bf16.gmra.mrb[0].mxu0 %v1031
        %v1418 = vpop.f32.mrb[0].mxu0
        %v1419 = vadd.f32 %v1376, %v1418
        %v1420 = vpop.f32.mrb[0].mxu0
        %v1421 = vpop.f32.mrb[0].mxu0
        %v1422 = vadd.f32 %v1376, %v1421
        %v1423 = vpop.f32.mrb[0].mxu0
        %1424 = vmatprep.mubr.bf16.mxu0 0
        %1425 = vmatmul.mubr.bf16.gmra.mrb[0].mxu0 %v1034
        %v1426 = vpop.f32.mrb[0].mxu0
        %v1427 = vadd.f32 %v1376, %v1426
        %v1428 = vpop.f32.mrb[0].mxu0
        %v1429 = vpop.f32.mrb[0].mxu0
        %v1430 = vadd.f32 %v1376, %v1429
        %v1431 = vpop.f32.mrb[0].mxu0
        %1432 = vdwg.mxu0
        %v1433 = vadd.f32 %v1365, %v1419
        %v1434 = vadd.f32 %v1366, %v1422
        %v1435 = vadd.f32 %v1367, %v1427
        %v1436 = vadd.f32 %v1368, %v1430
        %v1437 = vmax.f32 %v1433, 0.0
        %v1438 = vmax.f32 %v1434, 0.0
        %v1439 = vmax.f32 %v1435, 0.0
        %v1440 = vmax.f32 %v1436, 0.0
        %s1441 = scalar_lea.vmem %s17, 2
        %v1442 = vld [vmem:[%s1441] sm:$0x1]
        %vm1447 = vcmask 1041408
        %v1448 = vrot.slane %v1437, 6
        %v1449 = vrot.slane %v1438, 6
        %v1450 = vsel %vm1447, %v1448, %v1449
        %v1451 = vrot.slane %v1439, 6
        %v1452 = vsel %vm1447, %v1449, %v1451
        %v1453 = vrot.slane %v1440, 6
        %v1454 = vsel %vm1447, %v1451, %v1453
        %v1459 = vsel %vm1447, 0.0, %v1448
        %v1460 = vpack.c.bf16 %v1450, %v1459
        %v1461 = vpack.c.bf16 %v1438, %v1437
        %v1462 = vpack.c.bf16 %v1454, %v1452
        %v1463 = vpack.c.bf16 %v1440, %v1439
        %v1464 = vld [vmem:[%s3] sm:$0xf]
        %v1465 = vld [vmem:[%s3 + $0x4] sm:$0xf]
        %v1466 = vld [vmem:[%s3 + $0x8] sm:$0xf]
        %v1467 = vld [vmem:[%s3 + $0xc] sm:$0xf]
        %v1468 = vld [vmem:[%s3 + $0x10] sm:$0xf]
        %v1469 = vld [vmem:[%s3 + $0x14] sm:$0xf]
        %v1470 = vld [vmem:[%s3 + $0x18] sm:$0xf]
        %v1471 = vld [vmem:[%s3 + $0x1c] sm:$0xf]
        %v1472 = vld [vmem:[%s3 + $0x20] sm:$0xf]
        %v1473 = vld [vmem:[%s3 + $0x24] sm:$0xf]
        %v1474 = vld [vmem:[%s3 + $0x28] sm:$0xf]
        %v1475 = vld [vmem:[%s3 + $0x2c] sm:$0xf]
        %v1476 = vld [vmem:[%s3 + $0x30] sm:$0xf]
        %v1477 = vld [vmem:[%s3 + $0x34] sm:$0xf]
        %v1478 = vld [vmem:[%s3 + $0x38] sm:$0xf]
        %v1479 = vld [vmem:[%s3 + $0x3c] sm:$0xf]
        %v1480 = vld [vmem:[%s3 + $0x40] sm:$0xf]
        %v1481 = vld [vmem:[%s3 + $0x44] sm:$0xf]
        %v1482 = vld [vmem:[%s3 + $0x48] sm:$0xf]
        %v1483 = vld [vmem:[%s3 + $0x4c] sm:$0xf]
        %v1484 = vld [vmem:[%s3 + $0x50] sm:$0xf]
        %v1485 = vld [vmem:[%s3 + $0x54] sm:$0xf]
        %v1486 = vld [vmem:[%s3 + $0x58] sm:$0xf]
        %v1487 = vld [vmem:[%s3 + $0x5c] sm:$0xf]
        %v1488 = vld [vmem:[%s3 + $0x60] sm:$0xf]
        %v1489 = vld [vmem:[%s3 + $0x64] sm:$0xf]
        %v1490 = vld [vmem:[%s3 + $0x68] sm:$0xf]
        %v1491 = vld [vmem:[%s3 + $0x6c] sm:$0xf]
        %v1492 = vld [vmem:[%s3 + $0x70] sm:$0xf]
        %v1493 = vld [vmem:[%s3 + $0x74] sm:$0xf]
        %v1494 = vld [vmem:[%s3 + $0x78] sm:$0xf]
        %v1495 = vld [vmem:[%s3 + $0x7c] sm:$0xf]
        %v1497 = vlaneseq
        %v1498 = vshrl.u32 %v1497, 7
        %v1499 = vsub.s32 0, %v1498
        %v1500 = vrot.slane %v1442, %v1499
        %v1534 = vunpack.c.l.b16 %v1464
        %v1535 = vunpack.c.l.b16 %v1465
        %v1536 = vunpack.c.l.b16 %v1466
        %v1537 = vunpack.c.l.b16 %v1467
        %v1538 = vunpack.c.l.b16 %v1468
        %v1539 = vunpack.c.l.b16 %v1469
        %v1540 = vunpack.c.l.b16 %v1470
        %v1541 = vunpack.c.l.b16 %v1471
        %v1542 = vunpack.c.l.b16 %v1472
        %v1543 = vunpack.c.l.b16 %v1473
        %v1544 = vunpack.c.l.b16 %v1474
        %v1545 = vunpack.c.l.b16 %v1475
        %v1546 = vunpack.c.l.b16 %v1476
        %v1547 = vunpack.c.l.b16 %v1477
        %v1548 = vunpack.c.l.b16 %v1478
        %v1549 = vunpack.c.l.b16 %v1479
        %v1550 = vunpack.c.l.b16 %v1480
        %v1551 = vunpack.c.l.b16 %v1481
        %v1552 = vunpack.c.l.b16 %v1482
        %v1553 = vunpack.c.l.b16 %v1483
        %v1554 = vunpack.c.l.b16 %v1484
        %v1555 = vunpack.c.l.b16 %v1485
        %v1556 = vunpack.c.l.b16 %v1486
        %v1557 = vunpack.c.l.b16 %v1487
        %v1558 = vunpack.c.l.b16 %v1488
        %v1559 = vunpack.c.l.b16 %v1489
        %v1560 = vunpack.c.l.b16 %v1490
        %v1561 = vunpack.c.l.b16 %v1491
        %v1562 = vunpack.c.l.b16 %v1492
        %v1563 = vunpack.c.l.b16 %v1493
        %v1564 = vunpack.c.l.b16 %v1494
        %v1565 = vunpack.c.l.b16 %v1495
        %v1566 = vpack.c.b16 %v1535, %v1534
        %v1567 = vpack.c.b16 %v1537, %v1536
        %v1568 = vpack.c.b16 %v1539, %v1538
        %v1569 = vpack.c.b16 %v1541, %v1540
        %v1570 = vpack.c.b16 %v1543, %v1542
        %v1571 = vpack.c.b16 %v1545, %v1544
        %v1572 = vpack.c.b16 %v1547, %v1546
        %v1573 = vpack.c.b16 %v1549, %v1548
        %v1574 = vpack.c.b16 %v1551, %v1550
        %v1575 = vpack.c.b16 %v1553, %v1552
        %v1576 = vpack.c.b16 %v1555, %v1554
        %v1577 = vpack.c.b16 %v1557, %v1556
        %v1578 = vpack.c.b16 %v1559, %v1558
        %v1579 = vpack.c.b16 %v1561, %v1560
        %v1580 = vpack.c.b16 %v1563, %v1562
        %v1581 = vpack.c.b16 %v1565, %v1564
        %1598 = vmatprep.subr.bf16.mxu0 0
        %1599 = vmatpush1.bf16.msra.mxu0 %v1566
        %1600 = vmatprep.subr.bf16.mxu0 0
        %1601 = vmatpush1.bf16.msra.mxu0 %v1567
        %1602 = vmatprep.subr.bf16.mxu0 0
        %1603 = vmatpush1.bf16.msra.mxu0 %v1568
        %1604 = vmatprep.subr.bf16.mxu0 0
        %1605 = vmatpush1.bf16.msra.mxu0 %v1569
        %1606 = vmatprep.subr.bf16.mxu0 0
        %1607 = vmatpush1.bf16.msra.mxu0 %v1570
        %1608 = vmatprep.subr.bf16.mxu0 0
        %1609 = vmatpush1.bf16.msra.mxu0 %v1571
        %1610 = vmatprep.subr.bf16.mxu0 0
        %1611 = vmatpush1.bf16.msra.mxu0 %v1572
        %1612 = vmatprep.subr.bf16.mxu0 0
        %1613 = vmatpush1.bf16.msra.mxu0 %v1573
        %1614 = vmatprep.subr.bf16.mxu0 0
        %1615 = vmatpush1.bf16.msra.mxu0 %v1574
        %1616 = vmatprep.subr.bf16.mxu0 0
        %1617 = vmatpush1.bf16.msra.mxu0 %v1575
        %1618 = vmatprep.subr.bf16.mxu0 0
        %1619 = vmatpush1.bf16.msra.mxu0 %v1576
        %1620 = vmatprep.subr.bf16.mxu0 0
        %1621 = vmatpush1.bf16.msra.mxu0 %v1577
        %1622 = vmatprep.subr.bf16.mxu0 0
        %1623 = vmatpush1.bf16.msra.mxu0 %v1578
        %1624 = vmatprep.subr.bf16.mxu0 0
        %1625 = vmatpush1.bf16.msra.mxu0 %v1579
        %1626 = vmatprep.subr.bf16.mxu0 0
        %1627 = vmatpush1.bf16.msra.mxu0 %v1580
        %1628 = vmatprep.subr.bf16.mxu0 0
        %1629 = vmatpush1.bf16.msra.mxu0 %v1581
        %1630 = vmatprep.mubr.bf16.mxu0 %v1461
        %1631 = vmatmul.mubr.bf16.gmra.mrb[0].mxu0 %v1460
        %v1632 = vpop.f32.mrb[0].mxu0
        %v1633 = vadd.f32 %v1500, %v1632
        %v1634 = vpop.f32.mrb[0].mxu0
        %v1635 = vpop.f32.mrb[0].mxu0
        %v1636 = vadd.f32 %v1500, %v1635
        %v1637 = vpop.f32.mrb[0].mxu0
        %1638 = vmatprep.mubr.bf16.mxu0 %v1463
        %1639 = vmatmul.mubr.bf16.gmra.mrb[0].mxu0 %v1462
        %v1640 = vpop.f32.mrb[0].mxu0
        %v1641 = vadd.f32 %v1500, %v1640
        %v1642 = vpop.f32.mrb[0].mxu0
        %v1643 = vpop.f32.mrb[0].mxu0
        %v1644 = vadd.f32 %v1500, %v1643
        %v1645 = vpop.f32.mrb[0].mxu0
        %1646 = vdwg.mxu0
        %v1647 = vmax.f32 %v1633, 0.0
        %v1648 = vmax.f32 %v1636, 0.0
        %v1649 = vmax.f32 %v1641, 0.0
        %v1650 = vmax.f32 %v1644, 0.0
        %s1651 = scalar_lea.vmem %s17, 3
        %v1652 = vld [vmem:[%s1651] sm:$0x1]
        %v1657 = vrot.slane %v1647, 6
        %v1658 = vrot.slane %v1648, 6
        %v1659 = vsel %vm1447, %v1657, %v1658
        %v1660 = vrot.slane %v1649, 6
        %v1661 = vsel %vm1447, %v1658, %v1660
        %v1662 = vrot.slane %v1650, 6
        %v1663 = vsel %vm1447, %v1660, %v1662
        %v1668 = vsel %vm1447, 0.0, %v1657
        %v1669 = vpack.c.bf16 %v1659, %v1668
        %v1670 = vpack.c.bf16 %v1648, %v1647
        %v1671 = vpack.c.bf16 %v1663, %v1661
        %v1672 = vpack.c.bf16 %v1650, %v1649
        %v1673 = vld [vmem:[%s4] sm:$0xf]
        %v1674 = vld [vmem:[%s4 + $0x4] sm:$0xf]
        %v1675 = vld [vmem:[%s4 + $0x8] sm:$0xf]
        %v1676 = vld [vmem:[%s4 + $0xc] sm:$0xf]
        %v1677 = vld [vmem:[%s4 + $0x10] sm:$0xf]
        %v1678 = vld [vmem:[%s4 + $0x14] sm:$0xf]
        %v1679 = vld [vmem:[%s4 + $0x18] sm:$0xf]
        %v1680 = vld [vmem:[%s4 + $0x1c] sm:$0xf]
        %v1681 = vld [vmem:[%s4 + $0x20] sm:$0xf]
        %v1682 = vld [vmem:[%s4 + $0x24] sm:$0xf]
        %v1683 = vld [vmem:[%s4 + $0x28] sm:$0xf]
        %v1684 = vld [vmem:[%s4 + $0x2c] sm:$0xf]
        %v1685 = vld [vmem:[%s4 + $0x30] sm:$0xf]
        %v1686 = vld [vmem:[%s4 + $0x34] sm:$0xf]
        %v1687 = vld [vmem:[%s4 + $0x38] sm:$0xf]
        %v1688 = vld [vmem:[%s4 + $0x3c] sm:$0xf]
        %v1689 = vld [vmem:[%s4 + $0x40] sm:$0xf]
        %v1690 = vld [vmem:[%s4 + $0x44] sm:$0xf]
        %v1691 = vld [vmem:[%s4 + $0x48] sm:$0xf]
        %v1692 = vld [vmem:[%s4 + $0x4c] sm:$0xf]
        %v1693 = vld [vmem:[%s4 + $0x50] sm:$0xf]
        %v1694 = vld [vmem:[%s4 + $0x54] sm:$0xf]
        %v1695 = vld [vmem:[%s4 + $0x58] sm:$0xf]
        %v1696 = vld [vmem:[%s4 + $0x5c] sm:$0xf]
        %v1697 = vld [vmem:[%s4 + $0x60] sm:$0xf]
        %v1698 = vld [vmem:[%s4 + $0x64] sm:$0xf]
        %v1699 = vld [vmem:[%s4 + $0x68] sm:$0xf]
        %v1700 = vld [vmem:[%s4 + $0x6c] sm:$0xf]
        %v1701 = vld [vmem:[%s4 + $0x70] sm:$0xf]
        %v1702 = vld [vmem:[%s4 + $0x74] sm:$0xf]
        %v1703 = vld [vmem:[%s4 + $0x78] sm:$0xf]
        %v1704 = vld [vmem:[%s4 + $0x7c] sm:$0xf]
        %v1706 = vlaneseq
        %v1707 = vshrl.u32 %v1706, 7
        %v1708 = vsub.s32 0, %v1707
        %v1709 = vrot.slane %v1652, %v1708
        %v1743 = vunpack.c.l.b16 %v1673
        %v1744 = vunpack.c.l.b16 %v1674
        %v1745 = vunpack.c.l.b16 %v1675
        %v1746 = vunpack.c.l.b16 %v1676
        %v1747 = vunpack.c.l.b16 %v1677
        %v1748 = vunpack.c.l.b16 %v1678
        %v1749 = vunpack.c.l.b16 %v1679
        %v1750 = vunpack.c.l.b16 %v1680
        %v1751 = vunpack.c.l.b16 %v1681
        %v1752 = vunpack.c.l.b16 %v1682
        %v1753 = vunpack.c.l.b16 %v1683
        %v1754 = vunpack.c.l.b16 %v1684
        %v1755 = vunpack.c.l.b16 %v1685
        %v1756 = vunpack.c.l.b16 %v1686
        %v1757 = vunpack.c.l.b16 %v1687
        %v1758 = vunpack.c.l.b16 %v1688
        %v1759 = vunpack.c.l.b16 %v1689
        %v1760 = vunpack.c.l.b16 %v1690
        %v1761 = vunpack.c.l.b16 %v1691
        %v1762 = vunpack.c.l.b16 %v1692
        %v1763 = vunpack.c.l.b16 %v1693
        %v1764 = vunpack.c.l.b16 %v1694
        %v1765 = vunpack.c.l.b16 %v1695
        %v1766 = vunpack.c.l.b16 %v1696
        %v1767 = vunpack.c.l.b16 %v1697
        %v1768 = vunpack.c.l.b16 %v1698
        %v1769 = vunpack.c.l.b16 %v1699
        %v1770 = vunpack.c.l.b16 %v1700
        %v1771 = vunpack.c.l.b16 %v1701
        %v1772 = vunpack.c.l.b16 %v1702
        %v1773 = vunpack.c.l.b16 %v1703
        %v1774 = vunpack.c.l.b16 %v1704
        %v1775 = vpack.c.b16 %v1744, %v1743
        %v1776 = vpack.c.b16 %v1746, %v1745
        %v1777 = vpack.c.b16 %v1748, %v1747
        %v1778 = vpack.c.b16 %v1750, %v1749
        %v1779 = vpack.c.b16 %v1752, %v1751
        %v1780 = vpack.c.b16 %v1754, %v1753
        %v1781 = vpack.c.b16 %v1756, %v1755
        %v1782 = vpack.c.b16 %v1758, %v1757
        %v1783 = vpack.c.b16 %v1760, %v1759
        %v1784 = vpack.c.b16 %v1762, %v1761
        %v1785 = vpack.c.b16 %v1764, %v1763
        %v1786 = vpack.c.b16 %v1766, %v1765
        %v1787 = vpack.c.b16 %v1768, %v1767
        %v1788 = vpack.c.b16 %v1770, %v1769
        %v1789 = vpack.c.b16 %v1772, %v1771
        %v1790 = vpack.c.b16 %v1774, %v1773
        %1807 = vmatprep.subr.bf16.mxu0 0
        %1808 = vmatpush1.bf16.msra.mxu0 %v1775
        %1809 = vmatprep.subr.bf16.mxu0 0
        %1810 = vmatpush1.bf16.msra.mxu0 %v1776
        %1811 = vmatprep.subr.bf16.mxu0 0
        %1812 = vmatpush1.bf16.msra.mxu0 %v1777
        %1813 = vmatprep.subr.bf16.mxu0 0
        %1814 = vmatpush1.bf16.msra.mxu0 %v1778
        %1815 = vmatprep.subr.bf16.mxu0 0
        %1816 = vmatpush1.bf16.msra.mxu0 %v1779
        %1817 = vmatprep.subr.bf16.mxu0 0
        %1818 = vmatpush1.bf16.msra.mxu0 %v1780
        %1819 = vmatprep.subr.bf16.mxu0 0
        %1820 = vmatpush1.bf16.msra.mxu0 %v1781
        %1821 = vmatprep.subr.bf16.mxu0 0
        %1822 = vmatpush1.bf16.msra.mxu0 %v1782
        %1823 = vmatprep.subr.bf16.mxu0 0
        %1824 = vmatpush1.bf16.msra.mxu0 %v1783
        %1825 = vmatprep.subr.bf16.mxu0 0
        %1826 = vmatpush1.bf16.msra.mxu0 %v1784
        %1827 = vmatprep.subr.bf16.mxu0 0
        %1828 = vmatpush1.bf16.msra.mxu0 %v1785
        %1829 = vmatprep.subr.bf16.mxu0 0
        %1830 = vmatpush1.bf16.msra.mxu0 %v1786
        %1831 = vmatprep.subr.bf16.mxu0 0
        %1832 = vmatpush1.bf16.msra.mxu0 %v1787
        %1833 = vmatprep.subr.bf16.mxu0 0
        %1834 = vmatpush1.bf16.msra.mxu0 %v1788
        %1835 = vmatprep.subr.bf16.mxu0 0
        %1836 = vmatpush1.bf16.msra.mxu0 %v1789
        %1837 = vmatprep.subr.bf16.mxu0 0
        %1838 = vmatpush1.bf16.msra.mxu0 %v1790
        %1839 = vmatprep.mubr.bf16.mxu0 %v1670
        %1840 = vmatmul.mubr.bf16.gmra.mrb[0].mxu0 %v1669
        %v1841 = vpop.f32.mrb[0].mxu0
        %v1842 = vadd.f32 %v1709, %v1841
        %v1843 = vpop.f32.mrb[0].mxu0
        %v1844 = vpop.f32.mrb[0].mxu0
        %v1845 = vadd.f32 %v1709, %v1844
        %v1846 = vpop.f32.mrb[0].mxu0
        %1847 = vmatprep.mubr.bf16.mxu0 %v1672
        %1848 = vmatmul.mubr.bf16.gmra.mrb[0].mxu0 %v1671
        %v1849 = vpop.f32.mrb[0].mxu0
        %v1850 = vadd.f32 %v1709, %v1849
        %v1851 = vpop.f32.mrb[0].mxu0
        %v1852 = vpop.f32.mrb[0].mxu0
        %v1853 = vadd.f32 %v1709, %v1852
        %v1854 = vpop.f32.mrb[0].mxu0
        %1855 = vdwg.mxu0
        %v1856 = vmax.f32 %v1842, 0.0
        %v1857 = vmax.f32 %v1845, 0.0
        %v1858 = vmax.f32 %v1850, 0.0
        %v1859 = vmax.f32 %v1853, 0.0
        %v1860 = vadd.f32 %v1856, %v1437
        %v1861 = vadd.f32 %v1857, %v1438
        %v1862 = vadd.f32 %v1858, %v1439
        %v1863 = vadd.f32 %v1859, %v1440
        %v1864 = vmax.f32 %v1860, 0.0
        %v1865 = vmax.f32 %v1861, 0.0
        %v1866 = vmax.f32 %v1862, 0.0
        %v1867 = vmax.f32 %v1863, 0.0
        %s1868 = scalar_lea.vmem %s17, 4
        %v1869 = vld [vmem:[%s1868] sm:$0x1]
        %vm1874 = vcmask 1043456
        %v1875 = vrot.slane %v1864, 4
        %v1876 = vrot.slane %v1865, 4
        %v1877 = vsel %vm1874, %v1875, %v1876
        %v1878 = vrot.slane %v1866, 4
        %v1879 = vsel %vm1874, %v1876, %v1878
        %v1880 = vrot.slane %v1867, 4
        %v1881 = vsel %vm1874, %v1878, %v1880
        %v1886 = vsel %vm1874, 0.0, %v1875
        %v1887 = vpack.c.bf16 %v1877, %v1886
        %v1888 = vpack.c.bf16 %v1865, %v1864
        %v1889 = vpack.c.bf16 %v1881, %v1879
        %v1890 = vpack.c.bf16 %v1867, %v1866
        %v1891 = vld [vmem:[#allocation3] sm:$0xf]
        %v1892 = vld [vmem:[#allocation3 + $0x4] sm:$0xf]
        %v1893 = vld [vmem:[#allocation3 + $0x8] sm:$0xf]
        %v1894 = vld [vmem:[#allocation3 + $0xc] sm:$0xf]
        %v1895 = vld [vmem:[#allocation3 + $0x10] sm:$0xf]
        %v1896 = vld [vmem:[#allocation3 + $0x14] sm:$0xf]
        %v1897 = vld [vmem:[#allocation3 + $0x18] sm:$0xf]
        %v1898 = vld [vmem:[#allocation3 + $0x1c] sm:$0xf]
        %v1899 = vld [vmem:[#allocation3 + $0x20] sm:$0xf]
        %v1900 = vld [vmem:[#allocation3 + $0x24] sm:$0xf]
        %v1901 = vld [vmem:[#allocation3 + $0x28] sm:$0xf]
        %v1902 = vld [vmem:[#allocation3 + $0x2c] sm:$0xf]
        %v1903 = vld [vmem:[#allocation3 + $0x30] sm:$0xf]
        %v1904 = vld [vmem:[#allocation3 + $0x34] sm:$0xf]
        %v1905 = vld [vmem:[#allocation3 + $0x38] sm:$0xf]
        %v1906 = vld [vmem:[#allocation3 + $0x3c] sm:$0xf]
        %v1907 = vld [vmem:[#allocation3 + $0x40] sm:$0xf]
        %v1908 = vld [vmem:[#allocation3 + $0x44] sm:$0xf]
        %v1909 = vld [vmem:[#allocation3 + $0x48] sm:$0xf]
        %v1910 = vld [vmem:[#allocation3 + $0x4c] sm:$0xf]
        %v1911 = vld [vmem:[#allocation3 + $0x50] sm:$0xf]
        %v1912 = vld [vmem:[#allocation3 + $0x54] sm:$0xf]
        %v1913 = vld [vmem:[#allocation3 + $0x58] sm:$0xf]
        %v1914 = vld [vmem:[#allocation3 + $0x5c] sm:$0xf]
        %v1915 = vld [vmem:[#allocation3 + $0x60] sm:$0xf]
        %v1916 = vld [vmem:[#allocation3 + $0x64] sm:$0xf]
        %v1917 = vld [vmem:[#allocation3 + $0x68] sm:$0xf]
        %v1918 = vld [vmem:[#allocation3 + $0x6c] sm:$0xf]
        %v1919 = vld [vmem:[#allocation3 + $0x70] sm:$0xf]
        %v1920 = vld [vmem:[#allocation3 + $0x74] sm:$0xf]
        %v1921 = vld [vmem:[#allocation3 + $0x78] sm:$0xf]
        %v1922 = vld [vmem:[#allocation3 + $0x7c] sm:$0xf]
        %v1924 = vlaneseq
        %v1925 = vshrl.u32 %v1924, 7
        %v1926 = vsub.s32 0, %v1925
        %v1927 = vrot.slane %v1869, %v1926
        %v1961 = vunpack.c.l.b16 %v1891
        %v1962 = vunpack.c.l.b16 %v1892
        %v1963 = vunpack.c.l.b16 %v1893
        %v1964 = vunpack.c.l.b16 %v1894
        %v1965 = vunpack.c.l.b16 %v1895
        %v1966 = vunpack.c.l.b16 %v1896
        %v1967 = vunpack.c.l.b16 %v1897
        %v1968 = vunpack.c.l.b16 %v1898
        %v1969 = vunpack.c.l.b16 %v1899
        %v1970 = vunpack.c.l.b16 %v1900
        %v1971 = vunpack.c.l.b16 %v1901
        %v1972 = vunpack.c.l.b16 %v1902
        %v1973 = vunpack.c.l.b16 %v1903
        %v1974 = vunpack.c.l.b16 %v1904
        %v1975 = vunpack.c.l.b16 %v1905
        %v1976 = vunpack.c.l.b16 %v1906
        %v1977 = vunpack.c.l.b16 %v1907
        %v1978 = vunpack.c.l.b16 %v1908
        %v1979 = vunpack.c.l.b16 %v1909
        %v1980 = vunpack.c.l.b16 %v1910
        %v1981 = vunpack.c.l.b16 %v1911
        %v1982 = vunpack.c.l.b16 %v1912
        %v1983 = vunpack.c.l.b16 %v1913
        %v1984 = vunpack.c.l.b16 %v1914
        %v1985 = vunpack.c.l.b16 %v1915
        %v1986 = vunpack.c.l.b16 %v1916
        %v1987 = vunpack.c.l.b16 %v1917
        %v1988 = vunpack.c.l.b16 %v1918
        %v1989 = vunpack.c.l.b16 %v1919
        %v1990 = vunpack.c.l.b16 %v1920
        %v1991 = vunpack.c.l.b16 %v1921
        %v1992 = vunpack.c.l.b16 %v1922
        %v1993 = vpack.c.b16 %v1962, %v1961
        %v1994 = vpack.c.b16 %v1964, %v1963
        %v1995 = vpack.c.b16 %v1966, %v1965
        %v1996 = vpack.c.b16 %v1968, %v1967
        %v1997 = vpack.c.b16 %v1970, %v1969
        %v1998 = vpack.c.b16 %v1972, %v1971
        %v1999 = vpack.c.b16 %v1974, %v1973
        %v2000 = vpack.c.b16 %v1976, %v1975
        %v2001 = vpack.c.b16 %v1978, %v1977
        %v2002 = vpack.c.b16 %v1980, %v1979
        %v2003 = vpack.c.b16 %v1982, %v1981
        %v2004 = vpack.c.b16 %v1984, %v1983
        %v2005 = vpack.c.b16 %v1986, %v1985
        %v2006 = vpack.c.b16 %v1988, %v1987
        %v2007 = vpack.c.b16 %v1990, %v1989
        %v2008 = vpack.c.b16 %v1992, %v1991
        %2025 = vmatprep.subr.bf16.mxu0 0
        %2026 = vmatpush1.bf16.msra.mxu0 %v1993
        %2027 = vmatprep.subr.bf16.mxu0 0
        %2028 = vmatpush1.bf16.msra.mxu0 %v1994
        %2029 = vmatprep.subr.bf16.mxu0 0
        %2030 = vmatpush1.bf16.msra.mxu0 %v1995
        %2031 = vmatprep.subr.bf16.mxu0 0
        %2032 = vmatpush1.bf16.msra.mxu0 %v1996
        %2033 = vmatprep.subr.bf16.mxu0 0
        %2034 = vmatpush1.bf16.msra.mxu0 %v1997
        %2035 = vmatprep.subr.bf16.mxu0 0
        %2036 = vmatpush1.bf16.msra.mxu0 %v1998
        %2037 = vmatprep.subr.bf16.mxu0 0
        %2038 = vmatpush1.bf16.msra.mxu0 %v1999
        %2039 = vmatprep.subr.bf16.mxu0 0
        %2040 = vmatpush1.bf16.msra.mxu0 %v2000
        %2041 = vmatprep.subr.bf16.mxu0 0
        %2042 = vmatpush1.bf16.msra.mxu0 %v2001
        %2043 = vmatprep.subr.bf16.mxu0 0
        %2044 = vmatpush1.bf16.msra.mxu0 %v2002
        %2045 = vmatprep.subr.bf16.mxu0 0
        %2046 = vmatpush1.bf16.msra.mxu0 %v2003
        %2047 = vmatprep.subr.bf16.mxu0 0
        %2048 = vmatpush1.bf16.msra.mxu0 %v2004
        %2049 = vmatprep.subr.bf16.mxu0 0
        %2050 = vmatpush1.bf16.msra.mxu0 %v2005
        %2051 = vmatprep.subr.bf16.mxu0 0
        %2052 = vmatpush1.bf16.msra.mxu0 %v2006
        %2053 = vmatprep.subr.bf16.mxu0 0
        %2054 = vmatpush1.bf16.msra.mxu0 %v2007
        %2055 = vmatprep.subr.bf16.mxu0 0
        %2056 = vmatpush1.bf16.msra.mxu0 %v2008
        %2057 = vmatprep.mubr.bf16.mxu0 %v1888
        %2058 = vmatmul.mubr.bf16.gmra.mrb[0].mxu0 %v1887
        %v2059 = vpop.f32.mrb[0].mxu0
        %v2060 = vadd.f32 %v1927, %v2059
        %v2061 = vpop.f32.mrb[0].mxu0
        %v2062 = vpop.f32.mrb[0].mxu0
        %v2063 = vadd.f32 %v1927, %v2062
        %v2064 = vpop.f32.mrb[0].mxu0
        %2065 = vmatprep.mubr.bf16.mxu0 %v1890
        %2066 = vmatmul.mubr.bf16.gmra.mrb[0].mxu0 %v1889
        %v2067 = vpop.f32.mrb[0].mxu0
        %v2068 = vadd.f32 %v1927, %v2067
        %v2069 = vpop.f32.mrb[0].mxu0
        %v2070 = vpop.f32.mrb[0].mxu0
        %v2071 = vadd.f32 %v1927, %v2070
        %v2072 = vpop.f32.mrb[0].mxu0
        %2073 = vdwg.mxu0
        %v2074 = vmax.f32 %v2060, 0.0
        %v2075 = vmax.f32 %v2063, 0.0
        %v2076 = vmax.f32 %v2068, 0.0
        %v2077 = vmax.f32 %v2071, 0.0
        %s2078 = scalar_lea.vmem %s17, 5
        %v2079 = vld [vmem:[%s2078] sm:$0x1]
        %v2084 = vrot.slane %v2074, 4
        %v2085 = vrot.slane %v2075, 4
        %v2086 = vsel %vm1874, %v2084, %v2085
        %v2087 = vrot.slane %v2076, 4
        %v2088 = vsel %vm1874, %v2085, %v2087
        %v2089 = vrot.slane %v2077, 4
        %v2090 = vsel %vm1874, %v2087, %v2089
        %v2095 = vsel %vm1874, 0.0, %v2084
        %v2096 = vpack.c.bf16 %v2086, %v2095
        %v2097 = vpack.c.bf16 %v2075, %v2074
        %v2098 = vpack.c.bf16 %v2090, %v2088
        %v2099 = vpack.c.bf16 %v2077, %v2076
        %v2100 = vld [vmem:[#allocation5] sm:$0xf]
        %v2101 = vld [vmem:[#allocation5 + $0x4] sm:$0xf]
        %v2102 = vld [vmem:[#allocation5 + $0x8] sm:$0xf]
        %v2103 = vld [vmem:[#allocation5 + $0xc] sm:$0xf]
        %v2104 = vld [vmem:[#allocation5 + $0x10] sm:$0xf]
        %v2105 = vld [vmem:[#allocation5 + $0x14] sm:$0xf]
        %v2106 = vld [vmem:[#allocation5 + $0x18] sm:$0xf]
        %v2107 = vld [vmem:[#allocation5 + $0x1c] sm:$0xf]
        %v2108 = vld [vmem:[#allocation5 + $0x20] sm:$0xf]
        %v2109 = vld [vmem:[#allocation5 + $0x24] sm:$0xf]
        %v2110 = vld [vmem:[#allocation5 + $0x28] sm:$0xf]
        %v2111 = vld [vmem:[#allocation5 + $0x2c] sm:$0xf]
        %v2112 = vld [vmem:[#allocation5 + $0x30] sm:$0xf]
        %v2113 = vld [vmem:[#allocation5 + $0x34] sm:$0xf]
        %v2114 = vld [vmem:[#allocation5 + $0x38] sm:$0xf]
        %v2115 = vld [vmem:[#allocation5 + $0x3c] sm:$0xf]
        %v2116 = vld [vmem:[#allocation5 + $0x40] sm:$0xf]
        %v2117 = vld [vmem:[#allocation5 + $0x44] sm:$0xf]
        %v2118 = vld [vmem:[#allocation5 + $0x48] sm:$0xf]
        %v2119 = vld [vmem:[#allocation5 + $0x4c] sm:$0xf]
        %v2120 = vld [vmem:[#allocation5 + $0x50] sm:$0xf]
        %v2121 = vld [vmem:[#allocation5 + $0x54] sm:$0xf]
        %v2122 = vld [vmem:[#allocation5 + $0x58] sm:$0xf]
        %v2123 = vld [vmem:[#allocation5 + $0x5c] sm:$0xf]
        %v2124 = vld [vmem:[#allocation5 + $0x60] sm:$0xf]
        %v2125 = vld [vmem:[#allocation5 + $0x64] sm:$0xf]
        %v2126 = vld [vmem:[#allocation5 + $0x68] sm:$0xf]
        %v2127 = vld [vmem:[#allocation5 + $0x6c] sm:$0xf]
        %v2128 = vld [vmem:[#allocation5 + $0x70] sm:$0xf]
        %v2129 = vld [vmem:[#allocation5 + $0x74] sm:$0xf]
        %v2130 = vld [vmem:[#allocation5 + $0x78] sm:$0xf]
        %v2131 = vld [vmem:[#allocation5 + $0x7c] sm:$0xf]
        %v2133 = vlaneseq
        %v2134 = vshrl.u32 %v2133, 7
        %v2135 = vsub.s32 0, %v2134
        %v2136 = vrot.slane %v2079, %v2135
        %v2170 = vunpack.c.l.b16 %v2100
        %v2171 = vunpack.c.l.b16 %v2101
        %v2172 = vunpack.c.l.b16 %v2102
        %v2173 = vunpack.c.l.b16 %v2103
        %v2174 = vunpack.c.l.b16 %v2104
        %v2175 = vunpack.c.l.b16 %v2105
        %v2176 = vunpack.c.l.b16 %v2106
        %v2177 = vunpack.c.l.b16 %v2107
        %v2178 = vunpack.c.l.b16 %v2108
        %v2179 = vunpack.c.l.b16 %v2109
        %v2180 = vunpack.c.l.b16 %v2110
        %v2181 = vunpack.c.l.b16 %v2111
        %v2182 = vunpack.c.l.b16 %v2112
        %v2183 = vunpack.c.l.b16 %v2113
        %v2184 = vunpack.c.l.b16 %v2114
        %v2185 = vunpack.c.l.b16 %v2115
        %v2186 = vunpack.c.l.b16 %v2116
        %v2187 = vunpack.c.l.b16 %v2117
        %v2188 = vunpack.c.l.b16 %v2118
        %v2189 = vunpack.c.l.b16 %v2119
        %v2190 = vunpack.c.l.b16 %v2120
        %v2191 = vunpack.c.l.b16 %v2121
        %v2192 = vunpack.c.l.b16 %v2122
        %v2193 = vunpack.c.l.b16 %v2123
        %v2194 = vunpack.c.l.b16 %v2124
        %v2195 = vunpack.c.l.b16 %v2125
        %v2196 = vunpack.c.l.b16 %v2126
        %v2197 = vunpack.c.l.b16 %v2127
        %v2198 = vunpack.c.l.b16 %v2128
        %v2199 = vunpack.c.l.b16 %v2129
        %v2200 = vunpack.c.l.b16 %v2130
        %v2201 = vunpack.c.l.b16 %v2131
        %v2202 = vpack.c.b16 %v2171, %v2170
        %v2203 = vpack.c.b16 %v2173, %v2172
        %v2204 = vpack.c.b16 %v2175, %v2174
        %v2205 = vpack.c.b16 %v2177, %v2176
        %v2206 = vpack.c.b16 %v2179, %v2178
        %v2207 = vpack.c.b16 %v2181, %v2180
        %v2208 = vpack.c.b16 %v2183, %v2182
        %v2209 = vpack.c.b16 %v2185, %v2184
        %v2210 = vpack.c.b16 %v2187, %v2186
        %v2211 = vpack.c.b16 %v2189, %v2188
        %v2212 = vpack.c.b16 %v2191, %v2190
        %v2213 = vpack.c.b16 %v2193, %v2192
        %v2214 = vpack.c.b16 %v2195, %v2194
        %v2215 = vpack.c.b16 %v2197, %v2196
        %v2216 = vpack.c.b16 %v2199, %v2198
        %v2217 = vpack.c.b16 %v2201, %v2200
        %2234 = vmatprep.subr.bf16.mxu0 0
        %2235 = vmatpush1.bf16.msra.mxu0 %v2202
        %2236 = vmatprep.subr.bf16.mxu0 0
        %2237 = vmatpush1.bf16.msra.mxu0 %v2203
        %2238 = vmatprep.subr.bf16.mxu0 0
        %2239 = vmatpush1.bf16.msra.mxu0 %v2204
        %2240 = vmatprep.subr.bf16.mxu0 0
        %2241 = vmatpush1.bf16.msra.mxu0 %v2205
        %2242 = vmatprep.subr.bf16.mxu0 0
        %2243 = vmatpush1.bf16.msra.mxu0 %v2206
        %2244 = vmatprep.subr.bf16.mxu0 0
        %2245 = vmatpush1.bf16.msra.mxu0 %v2207
        %2246 = vmatprep.subr.bf16.mxu0 0
        %2247 = vmatpush1.bf16.msra.mxu0 %v2208
        %2248 = vmatprep.subr.bf16.mxu0 0
        %2249 = vmatpush1.bf16.msra.mxu0 %v2209
        %2250 = vmatprep.subr.bf16.mxu0 0
        %2251 = vmatpush1.bf16.msra.mxu0 %v2210
        %2252 = vmatprep.subr.bf16.mxu0 0
        %2253 = vmatpush1.bf16.msra.mxu0 %v2211
        %2254 = vmatprep.subr.bf16.mxu0 0
        %2255 = vmatpush1.bf16.msra.mxu0 %v2212
        %2256 = vmatprep.subr.bf16.mxu0 0
        %2257 = vmatpush1.bf16.msra.mxu0 %v2213
        %2258 = vmatprep.subr.bf16.mxu0 0
        %2259 = vmatpush1.bf16.msra.mxu0 %v2214
        %2260 = vmatprep.subr.bf16.mxu0 0
        %2261 = vmatpush1.bf16.msra.mxu0 %v2215
        %2262 = vmatprep.subr.bf16.mxu0 0
        %2263 = vmatpush1.bf16.msra.mxu0 %v2216
        %2264 = vmatprep.subr.bf16.mxu0 0
        %2265 = vmatpush1.bf16.msra.mxu0 %v2217
        %2266 = vmatprep.mubr.bf16.mxu0 %v2097
        %2267 = vmatmul.mubr.bf16.gmra.mrb[0].mxu0 %v2096
        %v2268 = vpop.f32.mrb[0].mxu0
        %v2269 = vadd.f32 %v2136, %v2268
        %v2270 = vpop.f32.mrb[0].mxu0
        %v2271 = vpop.f32.mrb[0].mxu0
        %v2272 = vadd.f32 %v2136, %v2271
        %v2273 = vpop.f32.mrb[0].mxu0
        %2274 = vmatprep.mubr.bf16.mxu0 %v2099
        %2275 = vmatmul.mubr.bf16.gmra.mrb[0].mxu0 %v2098
        %v2276 = vpop.f32.mrb[0].mxu0
        %v2277 = vadd.f32 %v2136, %v2276
        %v2278 = vpop.f32.mrb[0].mxu0
        %v2279 = vpop.f32.mrb[0].mxu0
        %v2280 = vadd.f32 %v2136, %v2279
        %v2281 = vpop.f32.mrb[0].mxu0
        %2282 = vdwg.mxu0
        %v2283 = vmax.f32 %v2269, 0.0
        %v2284 = vmax.f32 %v2272, 0.0
        %v2285 = vmax.f32 %v2277, 0.0
        %v2286 = vmax.f32 %v2280, 0.0
        %v2287 = vadd.f32 %v2283, %v1864
        %v2288 = vadd.f32 %v2284, %v1865
        %v2289 = vadd.f32 %v2285, %v1866
        %v2290 = vadd.f32 %v2286, %v1867
        %v2291 = vmax.f32 %v2287, 0.0
        %v2292 = vmax.f32 %v2288, 0.0
        %v2293 = vmax.f32 %v2289, 0.0
        %v2294 = vmax.f32 %v2290, 0.0
        %s2295 = scalar_lea.vmem %s17, 6
        %v2296 = vld [vmem:[%s2295] sm:$0x1]
        %v2297 = vpack.c.bf16 %v2291, 0.0
        %v2298 = vpack.c.bf16 %v2292, %v2291
        %v2299 = vpack.c.bf16 %v2293, %v2292
        %v2300 = vpack.c.bf16 %v2294, %v2293
        %v2301 = vld [vmem:[#allocation7] sm:$0xf]
        %v2302 = vld [vmem:[#allocation7 + $0x4] sm:$0xf]
        %v2303 = vld [vmem:[#allocation7 + $0x8] sm:$0xf]
        %v2304 = vld [vmem:[#allocation7 + $0xc] sm:$0xf]
        %v2305 = vld [vmem:[#allocation7 + $0x10] sm:$0xf]
        %v2306 = vld [vmem:[#allocation7 + $0x14] sm:$0xf]
        %v2307 = vld [vmem:[#allocation7 + $0x18] sm:$0xf]
        %v2308 = vld [vmem:[#allocation7 + $0x1c] sm:$0xf]
        %v2309 = vld [vmem:[#allocation7 + $0x20] sm:$0xf]
        %v2310 = vld [vmem:[#allocation7 + $0x24] sm:$0xf]
        %v2311 = vld [vmem:[#allocation7 + $0x28] sm:$0xf]
        %v2312 = vld [vmem:[#allocation7 + $0x2c] sm:$0xf]
        %v2313 = vld [vmem:[#allocation7 + $0x30] sm:$0xf]
        %v2314 = vld [vmem:[#allocation7 + $0x34] sm:$0xf]
        %v2315 = vld [vmem:[#allocation7 + $0x38] sm:$0xf]
        %v2316 = vld [vmem:[#allocation7 + $0x3c] sm:$0xf]
        %v2317 = vld [vmem:[#allocation7 + $0x40] sm:$0xf]
        %v2318 = vld [vmem:[#allocation7 + $0x44] sm:$0xf]
        %v2319 = vld [vmem:[#allocation7 + $0x48] sm:$0xf]
        %v2320 = vld [vmem:[#allocation7 + $0x4c] sm:$0xf]
        %v2321 = vld [vmem:[#allocation7 + $0x50] sm:$0xf]
        %v2322 = vld [vmem:[#allocation7 + $0x54] sm:$0xf]
        %v2323 = vld [vmem:[#allocation7 + $0x58] sm:$0xf]
        %v2324 = vld [vmem:[#allocation7 + $0x5c] sm:$0xf]
        %v2325 = vld [vmem:[#allocation7 + $0x60] sm:$0xf]
        %v2326 = vld [vmem:[#allocation7 + $0x64] sm:$0xf]
        %v2327 = vld [vmem:[#allocation7 + $0x68] sm:$0xf]
        %v2328 = vld [vmem:[#allocation7 + $0x6c] sm:$0xf]
        %v2329 = vld [vmem:[#allocation7 + $0x70] sm:$0xf]
        %v2330 = vld [vmem:[#allocation7 + $0x74] sm:$0xf]
        %v2331 = vld [vmem:[#allocation7 + $0x78] sm:$0xf]
        %v2332 = vld [vmem:[#allocation7 + $0x7c] sm:$0xf]
        %v2334 = vlaneseq
        %v2335 = vshrl.u32 %v2334, 7
        %v2336 = vsub.s32 0, %v2335
        %v2337 = vrot.slane %v2296, %v2336
        %v2371 = vunpack.c.l.b16 %v2301
        %v2372 = vunpack.c.l.b16 %v2302
        %v2373 = vunpack.c.l.b16 %v2303
        %v2374 = vunpack.c.l.b16 %v2304
        %v2375 = vunpack.c.l.b16 %v2305
        %v2376 = vunpack.c.l.b16 %v2306
        %v2377 = vunpack.c.l.b16 %v2307
        %v2378 = vunpack.c.l.b16 %v2308
        %v2379 = vunpack.c.l.b16 %v2309
        %v2380 = vunpack.c.l.b16 %v2310
        %v2381 = vunpack.c.l.b16 %v2311
        %v2382 = vunpack.c.l.b16 %v2312
        %v2383 = vunpack.c.l.b16 %v2313
        %v2384 = vunpack.c.l.b16 %v2314
        %v2385 = vunpack.c.l.b16 %v2315
        %v2386 = vunpack.c.l.b16 %v2316
        %v2387 = vunpack.c.l.b16 %v2317
        %v2388 = vunpack.c.l.b16 %v2318
        %v2389 = vunpack.c.l.b16 %v2319
        %v2390 = vunpack.c.l.b16 %v2320
        %v2391 = vunpack.c.l.b16 %v2321
        %v2392 = vunpack.c.l.b16 %v2322
        %v2393 = vunpack.c.l.b16 %v2323
        %v2394 = vunpack.c.l.b16 %v2324
        %v2395 = vunpack.c.l.b16 %v2325
        %v2396 = vunpack.c.l.b16 %v2326
        %v2397 = vunpack.c.l.b16 %v2327
        %v2398 = vunpack.c.l.b16 %v2328
        %v2399 = vunpack.c.l.b16 %v2329
        %v2400 = vunpack.c.l.b16 %v2330
        %v2401 = vunpack.c.l.b16 %v2331
        %v2402 = vunpack.c.l.b16 %v2332
        %v2403 = vpack.c.b16 %v2372, %v2371
        %v2404 = vpack.c.b16 %v2374, %v2373
        %v2405 = vpack.c.b16 %v2376, %v2375
        %v2406 = vpack.c.b16 %v2378, %v2377
        %v2407 = vpack.c.b16 %v2380, %v2379
        %v2408 = vpack.c.b16 %v2382, %v2381
        %v2409 = vpack.c.b16 %v2384, %v2383
        %v2410 = vpack.c.b16 %v2386, %v2385
        %v2411 = vpack.c.b16 %v2388, %v2387
        %v2412 = vpack.c.b16 %v2390, %v2389
        %v2413 = vpack.c.b16 %v2392, %v2391
        %v2414 = vpack.c.b16 %v2394, %v2393
        %v2415 = vpack.c.b16 %v2396, %v2395
        %v2416 = vpack.c.b16 %v2398, %v2397
        %v2417 = vpack.c.b16 %v2400, %v2399
        %v2418 = vpack.c.b16 %v2402, %v2401
        %2435 = vmatprep.subr.bf16.mxu0 0
        %2436 = vmatpush1.bf16.msra.mxu0 %v2403
        %2437 = vmatprep.subr.bf16.mxu0 0
        %2438 = vmatpush1.bf16.msra.mxu0 %v2404
        %2439 = vmatprep.subr.bf16.mxu0 0
        %2440 = vmatpush1.bf16.msra.mxu0 %v2405
        %2441 = vmatprep.subr.bf16.mxu0 0
        %2442 = vmatpush1.bf16.msra.mxu0 %v2406
        %2443 = vmatprep.subr.bf16.mxu0 0
        %2444 = vmatpush1.bf16.msra.mxu0 %v2407
        %2445 = vmatprep.subr.bf16.mxu0 0
        %2446 = vmatpush1.bf16.msra.mxu0 %v2408
        %2447 = vmatprep.subr.bf16.mxu0 0
        %2448 = vmatpush1.bf16.msra.mxu0 %v2409
        %2449 = vmatprep.subr.bf16.mxu0 0
        %2450 = vmatpush1.bf16.msra.mxu0 %v2410
        %2451 = vmatprep.subr.bf16.mxu0 0
        %2452 = vmatpush1.bf16.msra.mxu0 %v2411
        %2453 = vmatprep.subr.bf16.mxu0 0
        %2454 = vmatpush1.bf16.msra.mxu0 %v2412
        %2455 = vmatprep.subr.bf16.mxu0 0
        %2456 = vmatpush1.bf16.msra.mxu0 %v2413
        %2457 = vmatprep.subr.bf16.mxu0 0
        %2458 = vmatpush1.bf16.msra.mxu0 %v2414
        %2459 = vmatprep.subr.bf16.mxu0 0
        %2460 = vmatpush1.bf16.msra.mxu0 %v2415
        %2461 = vmatprep.subr.bf16.mxu0 0
        %2462 = vmatpush1.bf16.msra.mxu0 %v2416
        %2463 = vmatprep.subr.bf16.mxu0 0
        %2464 = vmatpush1.bf16.msra.mxu0 %v2417
        %2465 = vmatprep.subr.bf16.mxu0 0
        %2466 = vmatpush1.bf16.msra.mxu0 %v2418
        %2467 = vmatprep.mubr.bf16.mxu0 %v2298
        %2468 = vmatmul.mubr.bf16.gmra.mrb[0].mxu0 %v2297
        %v2469 = vpop.f32.mrb[0].mxu0
        %v2470 = vadd.f32 %v2337, %v2469
        %v2471 = vpop.f32.mrb[0].mxu0
        %v2472 = vpop.f32.mrb[0].mxu0
        %v2473 = vadd.f32 %v2337, %v2472
        %v2474 = vpop.f32.mrb[0].mxu0
        %2475 = vmatprep.mubr.bf16.mxu0 %v2300
        %2476 = vmatmul.mubr.bf16.gmra.mrb[0].mxu0 %v2299
        %v2477 = vpop.f32.mrb[0].mxu0
        %v2478 = vadd.f32 %v2337, %v2477
        %v2479 = vpop.f32.mrb[0].mxu0
        %v2480 = vpop.f32.mrb[0].mxu0
        %v2481 = vadd.f32 %v2337, %v2480
        %v2482 = vpop.f32.mrb[0].mxu0
        %2483 = vdwg.mxu0
        %v2484 = vmax.f32 %v2470, 0.0
        %v2485 = vmax.f32 %v2473, 0.0
        %v2486 = vmax.f32 %v2478, 0.0
        %v2487 = vmax.f32 %v2481, 0.0
        %s2488 = scalar_lea.vmem %s17, 7
        %v2489 = vld [vmem:[%s2488] sm:$0x1]
        %v2490 = vpack.c.bf16 %v2484, 0.0
        %v2491 = vpack.c.bf16 %v2485, %v2484
        %v2492 = vpack.c.bf16 %v2486, %v2485
        %v2493 = vpack.c.bf16 %v2487, %v2486
        %v2494 = vld [vmem:[#allocation8] sm:$0xf]
        %v2495 = vld [vmem:[#allocation8 + $0x4] sm:$0xf]
        %v2496 = vld [vmem:[#allocation8 + $0x8] sm:$0xf]
        %v2497 = vld [vmem:[#allocation8 + $0xc] sm:$0xf]
        %v2498 = vld [vmem:[#allocation8 + $0x10] sm:$0xf]
        %v2499 = vld [vmem:[#allocation8 + $0x14] sm:$0xf]
        %v2500 = vld [vmem:[#allocation8 + $0x18] sm:$0xf]
        %v2501 = vld [vmem:[#allocation8 + $0x1c] sm:$0xf]
        %v2502 = vld [vmem:[#allocation8 + $0x20] sm:$0xf]
        %v2503 = vld [vmem:[#allocation8 + $0x24] sm:$0xf]
        %v2504 = vld [vmem:[#allocation8 + $0x28] sm:$0xf]
        %v2505 = vld [vmem:[#allocation8 + $0x2c] sm:$0xf]
        %v2506 = vld [vmem:[#allocation8 + $0x30] sm:$0xf]
        %v2507 = vld [vmem:[#allocation8 + $0x34] sm:$0xf]
        %v2508 = vld [vmem:[#allocation8 + $0x38] sm:$0xf]
        %v2509 = vld [vmem:[#allocation8 + $0x3c] sm:$0xf]
        %v2510 = vld [vmem:[#allocation8 + $0x40] sm:$0xf]
        %v2511 = vld [vmem:[#allocation8 + $0x44] sm:$0xf]
        %v2512 = vld [vmem:[#allocation8 + $0x48] sm:$0xf]
        %v2513 = vld [vmem:[#allocation8 + $0x4c] sm:$0xf]
        %v2514 = vld [vmem:[#allocation8 + $0x50] sm:$0xf]
        %v2515 = vld [vmem:[#allocation8 + $0x54] sm:$0xf]
        %v2516 = vld [vmem:[#allocation8 + $0x58] sm:$0xf]
        %v2517 = vld [vmem:[#allocation8 + $0x5c] sm:$0xf]
        %v2518 = vld [vmem:[#allocation8 + $0x60] sm:$0xf]
        %v2519 = vld [vmem:[#allocation8 + $0x64] sm:$0xf]
        %v2520 = vld [vmem:[#allocation8 + $0x68] sm:$0xf]
        %v2521 = vld [vmem:[#allocation8 + $0x6c] sm:$0xf]
        %v2522 = vld [vmem:[#allocation8 + $0x70] sm:$0xf]
        %v2523 = vld [vmem:[#allocation8 + $0x74] sm:$0xf]
        %v2524 = vld [vmem:[#allocation8 + $0x78] sm:$0xf]
        %v2525 = vld [vmem:[#allocation8 + $0x7c] sm:$0xf]
        %v2527 = vlaneseq
        %v2528 = vshrl.u32 %v2527, 7
        %v2529 = vsub.s32 0, %v2528
        %v2530 = vrot.slane %v2489, %v2529
        %v2564 = vunpack.c.l.b16 %v2494
        %v2565 = vunpack.c.l.b16 %v2495
        %v2566 = vunpack.c.l.b16 %v2496
        %v2567 = vunpack.c.l.b16 %v2497
        %v2568 = vunpack.c.l.b16 %v2498
        %v2569 = vunpack.c.l.b16 %v2499
        %v2570 = vunpack.c.l.b16 %v2500
        %v2571 = vunpack.c.l.b16 %v2501
        %v2572 = vunpack.c.l.b16 %v2502
        %v2573 = vunpack.c.l.b16 %v2503
        %v2574 = vunpack.c.l.b16 %v2504
        %v2575 = vunpack.c.l.b16 %v2505
        %v2576 = vunpack.c.l.b16 %v2506
        %v2577 = vunpack.c.l.b16 %v2507
        %v2578 = vunpack.c.l.b16 %v2508
        %v2579 = vunpack.c.l.b16 %v2509
        %v2580 = vunpack.c.l.b16 %v2510
        %v2581 = vunpack.c.l.b16 %v2511
        %v2582 = vunpack.c.l.b16 %v2512
        %v2583 = vunpack.c.l.b16 %v2513
        %v2584 = vunpack.c.l.b16 %v2514
        %v2585 = vunpack.c.l.b16 %v2515
        %v2586 = vunpack.c.l.b16 %v2516
        %v2587 = vunpack.c.l.b16 %v2517
        %v2588 = vunpack.c.l.b16 %v2518
        %v2589 = vunpack.c.l.b16 %v2519
        %v2590 = vunpack.c.l.b16 %v2520
        %v2591 = vunpack.c.l.b16 %v2521
        %v2592 = vunpack.c.l.b16 %v2522
        %v2593 = vunpack.c.l.b16 %v2523
        %v2594 = vunpack.c.l.b16 %v2524
        %v2595 = vunpack.c.l.b16 %v2525
        %v2596 = vpack.c.b16 %v2565, %v2564
        %v2597 = vpack.c.b16 %v2567, %v2566
        %v2598 = vpack.c.b16 %v2569, %v2568
        %v2599 = vpack.c.b16 %v2571, %v2570
        %v2600 = vpack.c.b16 %v2573, %v2572
        %v2601 = vpack.c.b16 %v2575, %v2574
        %v2602 = vpack.c.b16 %v2577, %v2576
        %v2603 = vpack.c.b16 %v2579, %v2578
        %v2604 = vpack.c.b16 %v2581, %v2580
        %v2605 = vpack.c.b16 %v2583, %v2582
        %v2606 = vpack.c.b16 %v2585, %v2584
        %v2607 = vpack.c.b16 %v2587, %v2586
        %v2608 = vpack.c.b16 %v2589, %v2588
        %v2609 = vpack.c.b16 %v2591, %v2590
        %v2610 = vpack.c.b16 %v2593, %v2592
        %v2611 = vpack.c.b16 %v2595, %v2594
        %2628 = vmatprep.subr.bf16.mxu0 0
        %2629 = vmatpush1.bf16.msra.mxu0 %v2596
        %2630 = vmatprep.subr.bf16.mxu0 0
        %2631 = vmatpush1.bf16.msra.mxu0 %v2597
        %2632 = vmatprep.subr.bf16.mxu0 0
        %2633 = vmatpush1.bf16.msra.mxu0 %v2598
        %2634 = vmatprep.subr.bf16.mxu0 0
        %2635 = vmatpush1.bf16.msra.mxu0 %v2599
        %2636 = vmatprep.subr.bf16.mxu0 0
        %2637 = vmatpush1.bf16.msra.mxu0 %v2600
        %2638 = vmatprep.subr.bf16.mxu0 0
        %2639 = vmatpush1.bf16.msra.mxu0 %v2601
        %2640 = vmatprep.subr.bf16.mxu0 0
        %2641 = vmatpush1.bf16.msra.mxu0 %v2602
        %2642 = vmatprep.subr.bf16.mxu0 0
        %2643 = vmatpush1.bf16.msra.mxu0 %v2603
        %2644 = vmatprep.subr.bf16.mxu0 0
        %2645 = vmatpush1.bf16.msra.mxu0 %v2604
        %2646 = vmatprep.subr.bf16.mxu0 0
        %2647 = vmatpush1.bf16.msra.mxu0 %v2605
        %2648 = vmatprep.subr.bf16.mxu0 0
        %2649 = vmatpush1.bf16.msra.mxu0 %v2606
        %2650 = vmatprep.subr.bf16.mxu0 0
        %2651 = vmatpush1.bf16.msra.mxu0 %v2607
        %2652 = vmatprep.subr.bf16.mxu0 0
        %2653 = vmatpush1.bf16.msra.mxu0 %v2608
        %2654 = vmatprep.subr.bf16.mxu0 0
        %2655 = vmatpush1.bf16.msra.mxu0 %v2609
        %2656 = vmatprep.subr.bf16.mxu0 0
        %2657 = vmatpush1.bf16.msra.mxu0 %v2610
        %2658 = vmatprep.subr.bf16.mxu0 0
        %2659 = vmatpush1.bf16.msra.mxu0 %v2611
        %2660 = vmatprep.mubr.bf16.mxu0 %v2491
        %2661 = vmatmul.mubr.bf16.gmra.mrb[0].mxu0 %v2490
        %v2662 = vpop.f32.mrb[0].mxu0
        %v2663 = vadd.f32 %v2530, %v2662
        %v2664 = vpop.f32.mrb[0].mxu0
        %v2665 = vpop.f32.mrb[0].mxu0
        %v2666 = vadd.f32 %v2530, %v2665
        %v2667 = vpop.f32.mrb[0].mxu0
        %2668 = vmatprep.mubr.bf16.mxu0 %v2493
        %2669 = vmatmul.mubr.bf16.gmra.mrb[0].mxu0 %v2492
        %v2670 = vpop.f32.mrb[0].mxu0
        %v2671 = vadd.f32 %v2530, %v2670
        %v2672 = vpop.f32.mrb[0].mxu0
        %v2673 = vpop.f32.mrb[0].mxu0
        %v2674 = vadd.f32 %v2530, %v2673
        %v2675 = vpop.f32.mrb[0].mxu0
        %2676 = vdwg.mxu0
        %v2677 = vmax.f32 %v2663, 0.0
        %v2678 = vmax.f32 %v2666, 0.0
        %v2679 = vmax.f32 %v2671, 0.0
        %v2680 = vmax.f32 %v2674, 0.0
        %v2681 = vadd.f32 %v2677, %v2291
        %v2682 = vadd.f32 %v2678, %v2292
        %v2683 = vadd.f32 %v2679, %v2293
        %v2684 = vadd.f32 %v2680, %v2294
        %v2685 = vmax.f32 %v2681, 0.0
        %v2686 = vmax.f32 %v2682, 0.0
        %v2687 = vmax.f32 %v2683, 0.0
        %v2688 = vmax.f32 %v2684, 0.0
        %s2689 = scalar_lea.vmem %s17, 8
        %v2690 = vld [vmem:[%s2689] sm:$0x1]
        %v2691 = vpack.c.bf16 0.0, 0.0
        %v2692 = vpack.c.bf16 %v2686, %v2685
        %v2693 = vpack.c.bf16 %v2688, %v2687
        %v2694 = vld [vmem:[#allocation10] sm:$0xf]
        %v2695 = vld [vmem:[#allocation10 + $0x4] sm:$0xf]
        %v2696 = vld [vmem:[#allocation10 + $0x8] sm:$0xf]
        %v2697 = vld [vmem:[#allocation10 + $0xc] sm:$0xf]
        %v2698 = vld [vmem:[#allocation10 + $0x10] sm:$0xf]
        %v2699 = vld [vmem:[#allocation10 + $0x14] sm:$0xf]
        %v2700 = vld [vmem:[#allocation10 + $0x18] sm:$0xf]
        %v2701 = vld [vmem:[#allocation10 + $0x1c] sm:$0xf]
        %v2702 = vld [vmem:[#allocation10 + $0x20] sm:$0xf]
        %v2703 = vld [vmem:[#allocation10 + $0x24] sm:$0xf]
        %v2704 = vld [vmem:[#allocation10 + $0x28] sm:$0xf]
        %v2705 = vld [vmem:[#allocation10 + $0x2c] sm:$0xf]
        %v2706 = vld [vmem:[#allocation10 + $0x30] sm:$0xf]
        %v2707 = vld [vmem:[#allocation10 + $0x34] sm:$0xf]
        %v2708 = vld [vmem:[#allocation10 + $0x38] sm:$0xf]
        %v2709 = vld [vmem:[#allocation10 + $0x3c] sm:$0xf]
        %v2710 = vld [vmem:[#allocation10 + $0x40] sm:$0xf]
        %v2711 = vld [vmem:[#allocation10 + $0x44] sm:$0xf]
        %v2712 = vld [vmem:[#allocation10 + $0x48] sm:$0xf]
        %v2713 = vld [vmem:[#allocation10 + $0x4c] sm:$0xf]
        %v2714 = vld [vmem:[#allocation10 + $0x50] sm:$0xf]
        %v2715 = vld [vmem:[#allocation10 + $0x54] sm:$0xf]
        %v2716 = vld [vmem:[#allocation10 + $0x58] sm:$0xf]
        %v2717 = vld [vmem:[#allocation10 + $0x5c] sm:$0xf]
        %v2718 = vld [vmem:[#allocation10 + $0x60] sm:$0xf]
        %v2719 = vld [vmem:[#allocation10 + $0x64] sm:$0xf]
        %v2720 = vld [vmem:[#allocation10 + $0x68] sm:$0xf]
        %v2721 = vld [vmem:[#allocation10 + $0x6c] sm:$0xf]
        %v2722 = vld [vmem:[#allocation10 + $0x70] sm:$0xf]
        %v2723 = vld [vmem:[#allocation10 + $0x74] sm:$0xf]
        %v2724 = vld [vmem:[#allocation10 + $0x78] sm:$0xf]
        %v2725 = vld [vmem:[#allocation10 + $0x7c] sm:$0xf]
        %v2727 = vlaneseq
        %v2728 = vshrl.u32 %v2727, 7
        %v2729 = vsub.s32 0, %v2728
        %v2730 = vrot.slane %v2690, %v2729
        %v2764 = vunpack.c.l.b16 %v2694
        %v2765 = vunpack.c.l.b16 %v2695
        %v2766 = vunpack.c.l.b16 %v2696
        %v2767 = vunpack.c.l.b16 %v2697
        %v2768 = vunpack.c.l.b16 %v2698
        %v2769 = vunpack.c.l.b16 %v2699
        %v2770 = vunpack.c.l.b16 %v2700
        %v2771 = vunpack.c.l.b16 %v2701
        %v2772 = vunpack.c.l.b16 %v2702
        %v2773 = vunpack.c.l.b16 %v2703
        %v2774 = vunpack.c.l.b16 %v2704
        %v2775 = vunpack.c.l.b16 %v2705
        %v2776 = vunpack.c.l.b16 %v2706
        %v2777 = vunpack.c.l.b16 %v2707
        %v2778 = vunpack.c.l.b16 %v2708
        %v2779 = vunpack.c.l.b16 %v2709
        %v2780 = vunpack.c.l.b16 %v2710
        %v2781 = vunpack.c.l.b16 %v2711
        %v2782 = vunpack.c.l.b16 %v2712
        %v2783 = vunpack.c.l.b16 %v2713
        %v2784 = vunpack.c.l.b16 %v2714
        %v2785 = vunpack.c.l.b16 %v2715
        %v2786 = vunpack.c.l.b16 %v2716
        %v2787 = vunpack.c.l.b16 %v2717
        %v2788 = vunpack.c.l.b16 %v2718
        %v2789 = vunpack.c.l.b16 %v2719
        %v2790 = vunpack.c.l.b16 %v2720
        %v2791 = vunpack.c.l.b16 %v2721
        %v2792 = vunpack.c.l.b16 %v2722
        %v2793 = vunpack.c.l.b16 %v2723
        %v2794 = vunpack.c.l.b16 %v2724
        %v2795 = vunpack.c.l.b16 %v2725
        %v2796 = vpack.c.b16 %v2765, %v2764
        %v2797 = vpack.c.b16 %v2767, %v2766
        %v2798 = vpack.c.b16 %v2769, %v2768
        %v2799 = vpack.c.b16 %v2771, %v2770
        %v2800 = vpack.c.b16 %v2773, %v2772
        %v2801 = vpack.c.b16 %v2775, %v2774
        %v2802 = vpack.c.b16 %v2777, %v2776
        %v2803 = vpack.c.b16 %v2779, %v2778
        %v2804 = vpack.c.b16 %v2781, %v2780
        %v2805 = vpack.c.b16 %v2783, %v2782
        %v2806 = vpack.c.b16 %v2785, %v2784
        %v2807 = vpack.c.b16 %v2787, %v2786
        %v2808 = vpack.c.b16 %v2789, %v2788
        %v2809 = vpack.c.b16 %v2791, %v2790
        %v2810 = vpack.c.b16 %v2793, %v2792
        %v2811 = vpack.c.b16 %v2795, %v2794
        %2828 = vmatprep.subr.bf16.mxu0 0
        %2829 = vmatpush1.bf16.msra.mxu0 %v2796
        %2830 = vmatprep.subr.bf16.mxu0 0
        %2831 = vmatpush1.bf16.msra.mxu0 %v2797
        %2832 = vmatprep.subr.bf16.mxu0 0
        %2833 = vmatpush1.bf16.msra.mxu0 %v2798
        %2834 = vmatprep.subr.bf16.mxu0 0
        %2835 = vmatpush1.bf16.msra.mxu0 %v2799
        %2836 = vmatprep.subr.bf16.mxu0 0
        %2837 = vmatpush1.bf16.msra.mxu0 %v2800
        %2838 = vmatprep.subr.bf16.mxu0 0
        %2839 = vmatpush1.bf16.msra.mxu0 %v2801
        %2840 = vmatprep.subr.bf16.mxu0 0
        %2841 = vmatpush1.bf16.msra.mxu0 %v2802
        %2842 = vmatprep.subr.bf16.mxu0 0
        %2843 = vmatpush1.bf16.msra.mxu0 %v2803
        %2844 = vmatprep.subr.bf16.mxu0 0
        %2845 = vmatpush1.bf16.msra.mxu0 %v2804
        %2846 = vmatprep.subr.bf16.mxu0 0
        %2847 = vmatpush1.bf16.msra.mxu0 %v2805
        %2848 = vmatprep.subr.bf16.mxu0 0
        %2849 = vmatpush1.bf16.msra.mxu0 %v2806
        %2850 = vmatprep.subr.bf16.mxu0 0
        %2851 = vmatpush1.bf16.msra.mxu0 %v2807
        %2852 = vmatprep.subr.bf16.mxu0 0
        %2853 = vmatpush1.bf16.msra.mxu0 %v2808
        %2854 = vmatprep.subr.bf16.mxu0 0
        %2855 = vmatpush1.bf16.msra.mxu0 %v2809
        %2856 = vmatprep.subr.bf16.mxu0 0
        %2857 = vmatpush1.bf16.msra.mxu0 %v2810
        %2858 = vmatprep.subr.bf16.mxu0 0
        %2859 = vmatpush1.bf16.msra.mxu0 %v2811
        %2860 = vmatprep.mubr.bf16.mxu0 %v2692
        %2861 = vmatmul.mubr.bf16.gmra.mrb[0].mxu0 %v2691
        %v2862 = vpop.f32.mrb[0].mxu0
        %v2863 = vadd.f32 %v2730, %v2862
        %v2864 = vpop.f32.mrb[0].mxu0
        %v2865 = vpop.f32.mrb[0].mxu0
        %v2866 = vadd.f32 %v2730, %v2865
        %v2867 = vpop.f32.mrb[0].mxu0
        %2868 = vmatprep.mubr.bf16.mxu0 %v2693
        %2869 = vmatmul.mubr.bf16.gmra.mrb[0].mxu0 %v2692
        %v2870 = vpop.f32.mrb[0].mxu0
        %v2871 = vadd.f32 %v2730, %v2870
        %v2872 = vpop.f32.mrb[0].mxu0
        %v2873 = vpop.f32.mrb[0].mxu0
        %v2874 = vadd.f32 %v2730, %v2873
        %v2875 = vpop.f32.mrb[0].mxu0
        %2876 = vdwg.mxu0
        %v2877 = vmax.f32 %v2863, 0.0
        %v2878 = vmax.f32 %v2866, 0.0
        %v2879 = vmax.f32 %v2871, 0.0
        %v2880 = vmax.f32 %v2874, 0.0
        %s2881 = scalar_lea.vmem %s17, 9
        %v2882 = vld [vmem:[%s2881] sm:$0x1]
        %v2883 = vpack.c.bf16 %v2878, %v2877
        %v2884 = vpack.c.bf16 %v2880, %v2879
        %v2885 = vld [vmem:[#allocation11] sm:$0xf]
        %v2886 = vld [vmem:[#allocation11 + $0x4] sm:$0xf]
        %v2887 = vld [vmem:[#allocation11 + $0x8] sm:$0xf]
        %v2888 = vld [vmem:[#allocation11 + $0xc] sm:$0xf]
        %v2889 = vld [vmem:[#allocation11 + $0x10] sm:$0xf]
        %v2890 = vld [vmem:[#allocation11 + $0x14] sm:$0xf]
        %v2891 = vld [vmem:[#allocation11 + $0x18] sm:$0xf]
        %v2892 = vld [vmem:[#allocation11 + $0x1c] sm:$0xf]
        %v2893 = vld [vmem:[#allocation11 + $0x20] sm:$0xf]
        %v2894 = vld [vmem:[#allocation11 + $0x24] sm:$0xf]
        %v2895 = vld [vmem:[#allocation11 + $0x28] sm:$0xf]
        %v2896 = vld [vmem:[#allocation11 + $0x2c] sm:$0xf]
        %v2897 = vld [vmem:[#allocation11 + $0x30] sm:$0xf]
        %v2898 = vld [vmem:[#allocation11 + $0x34] sm:$0xf]
        %v2899 = vld [vmem:[#allocation11 + $0x38] sm:$0xf]
        %v2900 = vld [vmem:[#allocation11 + $0x3c] sm:$0xf]
        %v2901 = vld [vmem:[#allocation11 + $0x40] sm:$0xf]
        %v2902 = vld [vmem:[#allocation11 + $0x44] sm:$0xf]
        %v2903 = vld [vmem:[#allocation11 + $0x48] sm:$0xf]
        %v2904 = vld [vmem:[#allocation11 + $0x4c] sm:$0xf]
        %v2905 = vld [vmem:[#allocation11 + $0x50] sm:$0xf]
        %v2906 = vld [vmem:[#allocation11 + $0x54] sm:$0xf]
        %v2907 = vld [vmem:[#allocation11 + $0x58] sm:$0xf]
        %v2908 = vld [vmem:[#allocation11 + $0x5c] sm:$0xf]
        %v2909 = vld [vmem:[#allocation11 + $0x60] sm:$0xf]
        %v2910 = vld [vmem:[#allocation11 + $0x64] sm:$0xf]
        %v2911 = vld [vmem:[#allocation11 + $0x68] sm:$0xf]
        %v2912 = vld [vmem:[#allocation11 + $0x6c] sm:$0xf]
        %v2913 = vld [vmem:[#allocation11 + $0x70] sm:$0xf]
        %v2914 = vld [vmem:[#allocation11 + $0x74] sm:$0xf]
        %v2915 = vld [vmem:[#allocation11 + $0x78] sm:$0xf]
        %v2916 = vld [vmem:[#allocation11 + $0x7c] sm:$0xf]
        %v2918 = vlaneseq
        %v2919 = vshrl.u32 %v2918, 7
        %v2920 = vsub.s32 0, %v2919
        %v2921 = vrot.slane %v2882, %v2920
        %v2955 = vunpack.c.l.b16 %v2885
        %v2956 = vunpack.c.l.b16 %v2886
        %v2957 = vunpack.c.l.b16 %v2887
        %v2958 = vunpack.c.l.b16 %v2888
        %v2959 = vunpack.c.l.b16 %v2889
        %v2960 = vunpack.c.l.b16 %v2890
        %v2961 = vunpack.c.l.b16 %v2891
        %v2962 = vunpack.c.l.b16 %v2892
        %v2963 = vunpack.c.l.b16 %v2893
        %v2964 = vunpack.c.l.b16 %v2894
        %v2965 = vunpack.c.l.b16 %v2895
        %v2966 = vunpack.c.l.b16 %v2896
        %v2967 = vunpack.c.l.b16 %v2897
        %v2968 = vunpack.c.l.b16 %v2898
        %v2969 = vunpack.c.l.b16 %v2899
        %v2970 = vunpack.c.l.b16 %v2900
        %v2971 = vunpack.c.l.b16 %v2901
        %v2972 = vunpack.c.l.b16 %v2902
        %v2973 = vunpack.c.l.b16 %v2903
        %v2974 = vunpack.c.l.b16 %v2904
        %v2975 = vunpack.c.l.b16 %v2905
        %v2976 = vunpack.c.l.b16 %v2906
        %v2977 = vunpack.c.l.b16 %v2907
        %v2978 = vunpack.c.l.b16 %v2908
        %v2979 = vunpack.c.l.b16 %v2909
        %v2980 = vunpack.c.l.b16 %v2910
        %v2981 = vunpack.c.l.b16 %v2911
        %v2982 = vunpack.c.l.b16 %v2912
        %v2983 = vunpack.c.l.b16 %v2913
        %v2984 = vunpack.c.l.b16 %v2914
        %v2985 = vunpack.c.l.b16 %v2915
        %v2986 = vunpack.c.l.b16 %v2916
        %v2987 = vpack.c.b16 %v2956, %v2955
        %v2988 = vpack.c.b16 %v2958, %v2957
        %v2989 = vpack.c.b16 %v2960, %v2959
        %v2990 = vpack.c.b16 %v2962, %v2961
        %v2991 = vpack.c.b16 %v2964, %v2963
        %v2992 = vpack.c.b16 %v2966, %v2965
        %v2993 = vpack.c.b16 %v2968, %v2967
        %v2994 = vpack.c.b16 %v2970, %v2969
        %v2995 = vpack.c.b16 %v2972, %v2971
        %v2996 = vpack.c.b16 %v2974, %v2973
        %v2997 = vpack.c.b16 %v2976, %v2975
        %v2998 = vpack.c.b16 %v2978, %v2977
        %v2999 = vpack.c.b16 %v2980, %v2979
        %v3000 = vpack.c.b16 %v2982, %v2981
        %v3001 = vpack.c.b16 %v2984, %v2983
        %v3002 = vpack.c.b16 %v2986, %v2985
        %3019 = vmatprep.subr.bf16.mxu0 0
        %3020 = vmatpush1.bf16.msra.mxu0 %v2987
        %3021 = vmatprep.subr.bf16.mxu0 0
        %3022 = vmatpush1.bf16.msra.mxu0 %v2988
        %3023 = vmatprep.subr.bf16.mxu0 0
        %3024 = vmatpush1.bf16.msra.mxu0 %v2989
        %3025 = vmatprep.subr.bf16.mxu0 0
        %3026 = vmatpush1.bf16.msra.mxu0 %v2990
        %3027 = vmatprep.subr.bf16.mxu0 0
        %3028 = vmatpush1.bf16.msra.mxu0 %v2991
        %3029 = vmatprep.subr.bf16.mxu0 0
        %3030 = vmatpush1.bf16.msra.mxu0 %v2992
        %3031 = vmatprep.subr.bf16.mxu0 0
        %3032 = vmatpush1.bf16.msra.mxu0 %v2993
        %3033 = vmatprep.subr.bf16.mxu0 0
        %3034 = vmatpush1.bf16.msra.mxu0 %v2994
        %3035 = vmatprep.subr.bf16.mxu0 0
        %3036 = vmatpush1.bf16.msra.mxu0 %v2995
        %3037 = vmatprep.subr.bf16.mxu0 0
        %3038 = vmatpush1.bf16.msra.mxu0 %v2996
        %3039 = vmatprep.subr.bf16.mxu0 0
        %3040 = vmatpush1.bf16.msra.mxu0 %v2997
        %3041 = vmatprep.subr.bf16.mxu0 0
        %3042 = vmatpush1.bf16.msra.mxu0 %v2998
        %3043 = vmatprep.subr.bf16.mxu0 0
        %3044 = vmatpush1.bf16.msra.mxu0 %v2999
        %3045 = vmatprep.subr.bf16.mxu0 0
        %3046 = vmatpush1.bf16.msra.mxu0 %v3000
        %3047 = vmatprep.subr.bf16.mxu0 0
        %3048 = vmatpush1.bf16.msra.mxu0 %v3001
        %3049 = vmatprep.subr.bf16.mxu0 0
        %3050 = vmatpush1.bf16.msra.mxu0 %v3002
        %3051 = vmatprep.mubr.bf16.mxu0 %v2883
        %3052 = vmatmul.mubr.bf16.gmra.mrb[0].mxu0 %v2691
        %v3053 = vpop.f32.mrb[0].mxu0
        %v3054 = vadd.f32 %v2921, %v3053
        %v3055 = vpop.f32.mrb[0].mxu0
        %v3056 = vpop.f32.mrb[0].mxu0
        %v3057 = vadd.f32 %v2921, %v3056
        %v3058 = vpop.f32.mrb[0].mxu0
        %3059 = vmatprep.mubr.bf16.mxu0 %v2884
        %3060 = vmatmul.mubr.bf16.gmra.mrb[0].mxu0 %v2883
        %v3061 = vpop.f32.mrb[0].mxu0
        %v3062 = vadd.f32 %v2921, %v3061
        %v3063 = vpop.f32.mrb[0].mxu0
        %v3064 = vpop.f32.mrb[0].mxu0
        %v3065 = vadd.f32 %v2921, %v3064
        %v3066 = vpop.f32.mrb[0].mxu0
        %3067 = vdwg.mxu0
        %v3068 = vmax.f32 %v3054, 0.0
        %v3069 = vmax.f32 %v3057, 0.0
        %v3070 = vmax.f32 %v3062, 0.0
        %v3071 = vmax.f32 %v3065, 0.0
        %v3072 = vadd.f32 %v3068, %v2685
        %v3073 = vadd.f32 %v3069, %v2686
        %v3074 = vadd.f32 %v3070, %v2687
        %v3075 = vadd.f32 %v3071, %v2688
        %v3076 = vmax.f32 %v3072, 0.0
        %v3077 = vmax.f32 %v3073, 0.0
        %v3078 = vmax.f32 %v3074, 0.0
        %v3079 = vmax.f32 %v3075, 0.0
        %s3080 = scalar_lea.vmem %s17, 10
        %v3081 = vld [vmem:[%s3080] sm:$0x1]
        %v3082 = vpack.c.bf16 %v3077, %v3076
        %v3083 = vpack.c.bf16 %v3079, %v3078
        %v3084 = vld [vmem:[#allocation13] sm:$0xf]
        %v3085 = vld [vmem:[#allocation13 + $0x4] sm:$0xf]
        %v3086 = vld [vmem:[#allocation13 + $0x8] sm:$0xf]
        %v3087 = vld [vmem:[#allocation13 + $0xc] sm:$0xf]
        %v3088 = vld [vmem:[#allocation13 + $0x10] sm:$0xf]
        %v3089 = vld [vmem:[#allocation13 + $0x14] sm:$0xf]
        %v3090 = vld [vmem:[#allocation13 + $0x18] sm:$0xf]
        %v3091 = vld [vmem:[#allocation13 + $0x1c] sm:$0xf]
        %v3092 = vld [vmem:[#allocation13 + $0x20] sm:$0xf]
        %v3093 = vld [vmem:[#allocation13 + $0x24] sm:$0xf]
        %v3094 = vld [vmem:[#allocation13 + $0x28] sm:$0xf]
        %v3095 = vld [vmem:[#allocation13 + $0x2c] sm:$0xf]
        %v3096 = vld [vmem:[#allocation13 + $0x30] sm:$0xf]
        %v3097 = vld [vmem:[#allocation13 + $0x34] sm:$0xf]
        %v3098 = vld [vmem:[#allocation13 + $0x38] sm:$0xf]
        %v3099 = vld [vmem:[#allocation13 + $0x3c] sm:$0xf]
        %v3101 = vlaneseq
        %v3102 = vshrl.u32 %v3101, 7
        %v3103 = vsub.s32 0, %v3102
        %v3104 = vrot.slane %v3081, %v3103
        %v3122 = vunpack.c.l.b16 %v3084
        %v3123 = vunpack.c.l.b16 %v3085
        %v3124 = vunpack.c.l.b16 %v3086
        %v3125 = vunpack.c.l.b16 %v3087
        %v3126 = vunpack.c.l.b16 %v3088
        %v3127 = vunpack.c.l.b16 %v3089
        %v3128 = vunpack.c.l.b16 %v3090
        %v3129 = vunpack.c.l.b16 %v3091
        %v3130 = vunpack.c.l.b16 %v3092
        %v3131 = vunpack.c.l.b16 %v3093
        %v3132 = vunpack.c.l.b16 %v3094
        %v3133 = vunpack.c.l.b16 %v3095
        %v3134 = vunpack.c.l.b16 %v3096
        %v3135 = vunpack.c.l.b16 %v3097
        %v3136 = vunpack.c.l.b16 %v3098
        %v3137 = vunpack.c.l.b16 %v3099
        %v3138 = vpack.c.b16 %v3123, %v3122
        %v3139 = vpack.c.b16 %v3125, %v3124
        %v3140 = vpack.c.b16 %v3127, %v3126
        %v3141 = vpack.c.b16 %v3129, %v3128
        %v3142 = vpack.c.b16 %v3131, %v3130
        %v3143 = vpack.c.b16 %v3133, %v3132
        %v3144 = vpack.c.b16 %v3135, %v3134
        %v3145 = vpack.c.b16 %v3137, %v3136
        %3154 = vmatprep.subr.bf16.mxu0 0
        %3155 = vmatpush1.bf16.msra.mxu0 %v3138
        %3156 = vmatprep.subr.bf16.mxu0 0
        %3157 = vmatpush1.bf16.msra.mxu0 %v3139
        %3158 = vmatprep.subr.bf16.mxu0 0
        %3159 = vmatpush1.bf16.msra.mxu0 %v3140
        %3160 = vmatprep.subr.bf16.mxu0 0
        %3161 = vmatpush1.bf16.msra.mxu0 %v3141
        %3162 = vmatprep.subr.bf16.mxu0 0
        %3163 = vmatpush1.bf16.msra.mxu0 %v3142
        %3164 = vmatprep.subr.bf16.mxu0 0
        %3165 = vmatpush1.bf16.msra.mxu0 %v3143
        %3166 = vmatprep.subr.bf16.mxu0 0
        %3167 = vmatpush1.bf16.msra.mxu0 %v3144
        %3168 = vmatprep.subr.bf16.mxu0 0
        %3169 = vmatpush1.bf16.msra.mxu0 %v3145
        %3170 = vmatprep.subr.bf16.mxu0 0
        %3171 = vmatpush1.bf16.msra.mxu0 0
        %3172 = vmatprep.subr.bf16.mxu0 0
        %3173 = vmatpush1.bf16.msra.mxu0 0
        %3174 = vmatprep.subr.bf16.mxu0 0
        %3175 = vmatpush1.bf16.msra.mxu0 0
        %3176 = vmatprep.subr.bf16.mxu0 0
        %3177 = vmatpush1.bf16.msra.mxu0 0
        %3178 = vmatprep.subr.bf16.mxu0 0
        %3179 = vmatpush1.bf16.msra.mxu0 0
        %3180 = vmatprep.subr.bf16.mxu0 0
        %3181 = vmatpush1.bf16.msra.mxu0 0
        %3182 = vmatprep.subr.bf16.mxu0 0
        %3183 = vmatpush1.bf16.msra.mxu0 0
        %3184 = vmatprep.subr.bf16.mxu0 0
        %3185 = vmatpush1.bf16.msra.mxu0 0
        %3186 = vmatprep.mubr.bf16.mxu0 0
        %3187 = vmatmul.mubr.bf16.gmra.mrb[0].mxu0 %v3082
        %v3188 = vpop.f32.mrb[0].mxu0
        %v3189 = vadd.f32 %v3104, %v3188
        %v3190 = vpop.f32.mrb[0].mxu0
        %v3191 = vpop.f32.mrb[0].mxu0
        %v3192 = vadd.f32 %v3104, %v3191
        %v3193 = vpop.f32.mrb[0].mxu0
        %3194 = vmatprep.mubr.bf16.mxu0 0
        %3195 = vmatmul.mubr.bf16.gmra.mrb[0].mxu0 %v3083
        %v3196 = vpop.f32.mrb[0].mxu0
        %v3197 = vadd.f32 %v3104, %v3196
        %v3198 = vpop.f32.mrb[0].mxu0
        %v3199 = vpop.f32.mrb[0].mxu0
        %v3200 = vadd.f32 %v3104, %v3199
        %v3201 = vpop.f32.mrb[0].mxu0
        %3202 = vdwg.mxu0
        %v3203 = vmax.f32 %v3189, 0.0
        %v3204 = vmax.f32 %v3192, 0.0
        %v3205 = vmax.f32 %v3197, 0.0
        %v3206 = vmax.f32 %v3200, 0.0
        %s3207 = scalar_lea.vmem %s17, 11
        %v3208 = vld [vmem:[%s3207] sm:$0x1]
        %v3209 = vpack.c.bf16 %v3204, %v3203
        %v3210 = vpack.c.bf16 %v3206, %v3205
        %v3211 = vld [vmem:[#allocation14] sm:$0xf]
        %v3212 = vld [vmem:[#allocation14 + $0x4] sm:$0xf]
        %v3213 = vld [vmem:[#allocation14 + $0x8] sm:$0xf]
        %v3214 = vld [vmem:[#allocation14 + $0xc] sm:$0xf]
        %v3215 = vld [vmem:[#allocation14 + $0x10] sm:$0xf]
        %v3216 = vld [vmem:[#allocation14 + $0x14] sm:$0xf]
        %v3217 = vld [vmem:[#allocation14 + $0x18] sm:$0xf]
        %v3218 = vld [vmem:[#allocation14 + $0x1c] sm:$0xf]
        %v3219 = vld [vmem:[#allocation14 + $0x20] sm:$0xf]
        %v3220 = vld [vmem:[#allocation14 + $0x24] sm:$0xf]
        %v3221 = vld [vmem:[#allocation14 + $0x28] sm:$0xf]
        %v3222 = vld [vmem:[#allocation14 + $0x2c] sm:$0xf]
        %v3223 = vld [vmem:[#allocation14 + $0x30] sm:$0xf]
        %v3224 = vld [vmem:[#allocation14 + $0x34] sm:$0xf]
        %v3225 = vld [vmem:[#allocation14 + $0x38] sm:$0xf]
        %v3226 = vld [vmem:[#allocation14 + $0x3c] sm:$0xf]
        %v3228 = vlaneseq
        %v3229 = vshrl.u32 %v3228, 7
        %v3230 = vsub.s32 0, %v3229
        %v3231 = vrot.slane %v3208, %v3230
        %v3249 = vunpack.c.l.b16 %v3211
        %v3250 = vunpack.c.l.b16 %v3212
        %v3251 = vunpack.c.l.b16 %v3213
        %v3252 = vunpack.c.l.b16 %v3214
        %v3253 = vunpack.c.l.b16 %v3215
        %v3254 = vunpack.c.l.b16 %v3216
        %v3255 = vunpack.c.l.b16 %v3217
        %v3256 = vunpack.c.l.b16 %v3218
        %v3257 = vunpack.c.l.b16 %v3219
        %v3258 = vunpack.c.l.b16 %v3220
        %v3259 = vunpack.c.l.b16 %v3221
        %v3260 = vunpack.c.l.b16 %v3222
        %v3261 = vunpack.c.l.b16 %v3223
        %v3262 = vunpack.c.l.b16 %v3224
        %v3263 = vunpack.c.l.b16 %v3225
        %v3264 = vunpack.c.l.b16 %v3226
        %v3265 = vpack.c.b16 %v3250, %v3249
        %v3266 = vpack.c.b16 %v3252, %v3251
        %v3267 = vpack.c.b16 %v3254, %v3253
        %v3268 = vpack.c.b16 %v3256, %v3255
        %v3269 = vpack.c.b16 %v3258, %v3257
        %v3270 = vpack.c.b16 %v3260, %v3259
        %v3271 = vpack.c.b16 %v3262, %v3261
        %v3272 = vpack.c.b16 %v3264, %v3263
        %3281 = vmatprep.subr.bf16.mxu0 0
        %3282 = vmatpush1.bf16.msra.mxu0 %v3265
        %3283 = vmatprep.subr.bf16.mxu0 0
        %3284 = vmatpush1.bf16.msra.mxu0 %v3266
        %3285 = vmatprep.subr.bf16.mxu0 0
        %3286 = vmatpush1.bf16.msra.mxu0 %v3267
        %3287 = vmatprep.subr.bf16.mxu0 0
        %3288 = vmatpush1.bf16.msra.mxu0 %v3268
        %3289 = vmatprep.subr.bf16.mxu0 0
        %3290 = vmatpush1.bf16.msra.mxu0 %v3269
        %3291 = vmatprep.subr.bf16.mxu0 0
        %3292 = vmatpush1.bf16.msra.mxu0 %v3270
        %3293 = vmatprep.subr.bf16.mxu0 0
        %3294 = vmatpush1.bf16.msra.mxu0 %v3271
        %3295 = vmatprep.subr.bf16.mxu0 0
        %3296 = vmatpush1.bf16.msra.mxu0 %v3272
        %3297 = vmatprep.subr.bf16.mxu0 0
        %3298 = vmatpush1.bf16.msra.mxu0 0
        %3299 = vmatprep.subr.bf16.mxu0 0
        %3300 = vmatpush1.bf16.msra.mxu0 0
        %3301 = vmatprep.subr.bf16.mxu0 0
        %3302 = vmatpush1.bf16.msra.mxu0 0
        %3303 = vmatprep.subr.bf16.mxu0 0
        %3304 = vmatpush1.bf16.msra.mxu0 0
        %3305 = vmatprep.subr.bf16.mxu0 0
        %3306 = vmatpush1.bf16.msra.mxu0 0
        %3307 = vmatprep.subr.bf16.mxu0 0
        %3308 = vmatpush1.bf16.msra.mxu0 0
        %3309 = vmatprep.subr.bf16.mxu0 0
        %3310 = vmatpush1.bf16.msra.mxu0 0
        %3311 = vmatprep.subr.bf16.mxu0 0
        %3312 = vmatpush1.bf16.msra.mxu0 0
        %3313 = vmatprep.mubr.bf16.mxu0 0
        %3314 = vmatmul.mubr.bf16.gmra.mrb[0].mxu0 %v3209
        %v3315 = vpop.f32.mrb[0].mxu0
        %v3316 = vadd.f32 %v3231, %v3315
        %v3317 = vpop.f32.mrb[0].mxu0
        %v3318 = vpop.f32.mrb[0].mxu0
        %v3319 = vadd.f32 %v3231, %v3318
        %v3320 = vpop.f32.mrb[0].mxu0
        %3321 = vmatprep.mubr.bf16.mxu0 0
        %3322 = vmatmul.mubr.bf16.gmra.mrb[0].mxu0 %v3210
        %v3323 = vpop.f32.mrb[0].mxu0
        %v3324 = vadd.f32 %v3231, %v3323
        %v3325 = vpop.f32.mrb[0].mxu0
        %v3326 = vpop.f32.mrb[0].mxu0
        %v3327 = vadd.f32 %v3231, %v3326
        %v3328 = vpop.f32.mrb[0].mxu0
        %3329 = vdwg.mxu0
        %v3330 = vmax.f32 %v3316, 0.0
        %v3331 = vmax.f32 %v3319, 0.0
        %v3332 = vmax.f32 %v3324, 0.0
        %v3333 = vmax.f32 %v3327, 0.0
        %v3334 = vadd.f32 %v3330, %v3076
        %v3335 = vadd.f32 %v3331, %v3077
        %v3336 = vadd.f32 %v3332, %v3078
        %v3337 = vadd.f32 %v3333, %v3079
        %v3338 = vmax.f32 %v3334, 0.0
        %v3339 = vmax.f32 %v3335, 0.0
        %v3340 = vmax.f32 %v3336, 0.0
        %v3341 = vmax.f32 %v3337, 0.0
        %s3342 = scalar_lea.vmem %s17, 12
        %v3343 = vld [vmem:[%s3342] sm:$0x1]
        %v3344 = vpack.c.bf16 %v3339, %v3338
        %v3345 = vpack.c.bf16 %v3341, %v3340
        %v3346 = vld [vmem:[#allocation16] sm:$0xf]
        %v3347 = vld [vmem:[#allocation16 + $0x4] sm:$0xf]
        %v3348 = vld [vmem:[#allocation16 + $0x8] sm:$0xf]
        %v3349 = vld [vmem:[#allocation16 + $0xc] sm:$0xf]
        %v3350 = vld [vmem:[#allocation16 + $0x10] sm:$0xf]
        %v3351 = vld [vmem:[#allocation16 + $0x14] sm:$0xf]
        %v3352 = vld [vmem:[#allocation16 + $0x18] sm:$0xf]
        %v3353 = vld [vmem:[#allocation16 + $0x1c] sm:$0xf]
        %v3354 = vld [vmem:[#allocation16 + $0x20] sm:$0xf]
        %v3355 = vld [vmem:[#allocation16 + $0x24] sm:$0xf]
        %v3356 = vld [vmem:[#allocation16 + $0x28] sm:$0xf]
        %v3357 = vld [vmem:[#allocation16 + $0x2c] sm:$0xf]
        %v3358 = vld [vmem:[#allocation16 + $0x30] sm:$0xf]
        %v3359 = vld [vmem:[#allocation16 + $0x34] sm:$0xf]
        %v3360 = vld [vmem:[#allocation16 + $0x38] sm:$0xf]
        %v3361 = vld [vmem:[#allocation16 + $0x3c] sm:$0xf]
        %v3363 = vlaneseq
        %v3364 = vshrl.u32 %v3363, 7
        %v3365 = vsub.s32 0, %v3364
        %v3366 = vrot.slane %v3343, %v3365
        %v3384 = vunpack.c.l.b16 %v3346
        %v3385 = vunpack.c.l.b16 %v3347
        %v3386 = vunpack.c.l.b16 %v3348
        %v3387 = vunpack.c.l.b16 %v3349
        %v3388 = vunpack.c.l.b16 %v3350
        %v3389 = vunpack.c.l.b16 %v3351
        %v3390 = vunpack.c.l.b16 %v3352
        %v3391 = vunpack.c.l.b16 %v3353
        %v3392 = vunpack.c.l.b16 %v3354
        %v3393 = vunpack.c.l.b16 %v3355
        %v3394 = vunpack.c.l.b16 %v3356
        %v3395 = vunpack.c.l.b16 %v3357
        %v3396 = vunpack.c.l.b16 %v3358
        %v3397 = vunpack.c.l.b16 %v3359
        %v3398 = vunpack.c.l.b16 %v3360
        %v3399 = vunpack.c.l.b16 %v3361
        %v3400 = vpack.c.b16 %v3385, %v3384
        %v3401 = vpack.c.b16 %v3387, %v3386
        %v3402 = vpack.c.b16 %v3389, %v3388
        %v3403 = vpack.c.b16 %v3391, %v3390
        %v3404 = vpack.c.b16 %v3393, %v3392
        %v3405 = vpack.c.b16 %v3395, %v3394
        %v3406 = vpack.c.b16 %v3397, %v3396
        %v3407 = vpack.c.b16 %v3399, %v3398
        %3416 = vmatprep.subr.bf16.mxu0 0
        %3417 = vmatpush1.bf16.msra.mxu0 %v3400
        %3418 = vmatprep.subr.bf16.mxu0 0
        %3419 = vmatpush1.bf16.msra.mxu0 %v3401
        %3420 = vmatprep.subr.bf16.mxu0 0
        %3421 = vmatpush1.bf16.msra.mxu0 %v3402
        %3422 = vmatprep.subr.bf16.mxu0 0
        %3423 = vmatpush1.bf16.msra.mxu0 %v3403
        %3424 = vmatprep.subr.bf16.mxu0 0
        %3425 = vmatpush1.bf16.msra.mxu0 %v3404
        %3426 = vmatprep.subr.bf16.mxu0 0
        %3427 = vmatpush1.bf16.msra.mxu0 %v3405
        %3428 = vmatprep.subr.bf16.mxu0 0
        %3429 = vmatpush1.bf16.msra.mxu0 %v3406
        %3430 = vmatprep.subr.bf16.mxu0 0
        %3431 = vmatpush1.bf16.msra.mxu0 %v3407
        %3432 = vmatprep.subr.bf16.mxu0 0
        %3433 = vmatpush1.bf16.msra.mxu0 0
        %3434 = vmatprep.subr.bf16.mxu0 0
        %3435 = vmatpush1.bf16.msra.mxu0 0
        %3436 = vmatprep.subr.bf16.mxu0 0
        %3437 = vmatpush1.bf16.msra.mxu0 0
        %3438 = vmatprep.subr.bf16.mxu0 0
        %3439 = vmatpush1.bf16.msra.mxu0 0
        %3440 = vmatprep.subr.bf16.mxu0 0
        %3441 = vmatpush1.bf16.msra.mxu0 0
        %3442 = vmatprep.subr.bf16.mxu0 0
        %3443 = vmatpush1.bf16.msra.mxu0 0
        %3444 = vmatprep.subr.bf16.mxu0 0
        %3445 = vmatpush1.bf16.msra.mxu0 0
        %3446 = vmatprep.subr.bf16.mxu0 0
        %3447 = vmatpush1.bf16.msra.mxu0 0
        %3448 = vmatprep.mubr.bf16.mxu0 0
        %3449 = vmatmul.mubr.bf16.gmra.mrb[0].mxu0 %v3344
        %v3450 = vpop.f32.mrb[0].mxu0
        %v3451 = vadd.f32 %v3366, %v3450
        %v3452 = vpop.f32.mrb[0].mxu0
        %v3453 = vpop.f32.mrb[0].mxu0
        %v3454 = vadd.f32 %v3366, %v3453
        %v3455 = vpop.f32.mrb[0].mxu0
        %3456 = vmatprep.mubr.bf16.mxu0 0
        %3457 = vmatmul.mubr.bf16.gmra.mrb[0].mxu0 %v3345
        %v3458 = vpop.f32.mrb[0].mxu0
        %v3459 = vadd.f32 %v3366, %v3458
        %v3460 = vpop.f32.mrb[0].mxu0
        %v3461 = vpop.f32.mrb[0].mxu0
        %v3462 = vadd.f32 %v3366, %v3461
        %v3463 = vpop.f32.mrb[0].mxu0
        %3464 = vdwg.mxu0
        %v3465 = vmax.f32 %v3451, 0.0
        %v3466 = vmax.f32 %v3454, 0.0
        %v3467 = vmax.f32 %v3459, 0.0
        %v3468 = vmax.f32 %v3462, 0.0
        %s3469 = scalar_lea.vmem %s17, 13
        %v3470 = vld [vmem:[%s3469] sm:$0x1]
        %v3471 = vpack.c.bf16 %v3466, %v3465
        %v3472 = vpack.c.bf16 %v3468, %v3467
        %v3473 = vld [vmem:[#allocation17] sm:$0xf]
        %v3474 = vld [vmem:[#allocation17 + $0x4] sm:$0xf]
        %v3475 = vld [vmem:[#allocation17 + $0x8] sm:$0xf]
        %v3476 = vld [vmem:[#allocation17 + $0xc] sm:$0xf]
        %v3477 = vld [vmem:[#allocation17 + $0x10] sm:$0xf]
        %v3478 = vld [vmem:[#allocation17 + $0x14] sm:$0xf]
        %v3479 = vld [vmem:[#allocation17 + $0x18] sm:$0xf]
        %v3480 = vld [vmem:[#allocation17 + $0x1c] sm:$0xf]
        %v3481 = vld [vmem:[#allocation17 + $0x20] sm:$0xf]
        %v3482 = vld [vmem:[#allocation17 + $0x24] sm:$0xf]
        %v3483 = vld [vmem:[#allocation17 + $0x28] sm:$0xf]
        %v3484 = vld [vmem:[#allocation17 + $0x2c] sm:$0xf]
        %v3485 = vld [vmem:[#allocation17 + $0x30] sm:$0xf]
        %v3486 = vld [vmem:[#allocation17 + $0x34] sm:$0xf]
        %v3487 = vld [vmem:[#allocation17 + $0x38] sm:$0xf]
        %v3488 = vld [vmem:[#allocation17 + $0x3c] sm:$0xf]
        %v3490 = vlaneseq
        %v3491 = vshrl.u32 %v3490, 7
        %v3492 = vsub.s32 0, %v3491
        %v3493 = vrot.slane %v3470, %v3492
        %v3511 = vunpack.c.l.b16 %v3473
        %v3512 = vunpack.c.l.b16 %v3474
        %v3513 = vunpack.c.l.b16 %v3475
        %v3514 = vunpack.c.l.b16 %v3476
        %v3515 = vunpack.c.l.b16 %v3477
        %v3516 = vunpack.c.l.b16 %v3478
        %v3517 = vunpack.c.l.b16 %v3479
        %v3518 = vunpack.c.l.b16 %v3480
        %v3519 = vunpack.c.l.b16 %v3481
        %v3520 = vunpack.c.l.b16 %v3482
        %v3521 = vunpack.c.l.b16 %v3483
        %v3522 = vunpack.c.l.b16 %v3484
        %v3523 = vunpack.c.l.b16 %v3485
        %v3524 = vunpack.c.l.b16 %v3486
        %v3525 = vunpack.c.l.b16 %v3487
        %v3526 = vunpack.c.l.b16 %v3488
        %v3527 = vpack.c.b16 %v3512, %v3511
        %v3528 = vpack.c.b16 %v3514, %v3513
        %v3529 = vpack.c.b16 %v3516, %v3515
        %v3530 = vpack.c.b16 %v3518, %v3517
        %v3531 = vpack.c.b16 %v3520, %v3519
        %v3532 = vpack.c.b16 %v3522, %v3521
        %v3533 = vpack.c.b16 %v3524, %v3523
        %v3534 = vpack.c.b16 %v3526, %v3525
        %3543 = vmatprep.subr.bf16.mxu0 0
        %3544 = vmatpush1.bf16.msra.mxu0 %v3527
        %3545 = vmatprep.subr.bf16.mxu0 0
        %3546 = vmatpush1.bf16.msra.mxu0 %v3528
        %3547 = vmatprep.subr.bf16.mxu0 0
        %3548 = vmatpush1.bf16.msra.mxu0 %v3529
        %3549 = vmatprep.subr.bf16.mxu0 0
        %3550 = vmatpush1.bf16.msra.mxu0 %v3530
        %3551 = vmatprep.subr.bf16.mxu0 0
        %3552 = vmatpush1.bf16.msra.mxu0 %v3531
        %3553 = vmatprep.subr.bf16.mxu0 0
        %3554 = vmatpush1.bf16.msra.mxu0 %v3532
        %3555 = vmatprep.subr.bf16.mxu0 0
        %3556 = vmatpush1.bf16.msra.mxu0 %v3533
        %3557 = vmatprep.subr.bf16.mxu0 0
        %3558 = vmatpush1.bf16.msra.mxu0 %v3534
        %3559 = vmatprep.subr.bf16.mxu0 0
        %3560 = vmatpush1.bf16.msra.mxu0 0
        %3561 = vmatprep.subr.bf16.mxu0 0
        %3562 = vmatpush1.bf16.msra.mxu0 0
        %3563 = vmatprep.subr.bf16.mxu0 0
        %3564 = vmatpush1.bf16.msra.mxu0 0
        %3565 = vmatprep.subr.bf16.mxu0 0
        %3566 = vmatpush1.bf16.msra.mxu0 0
        %3567 = vmatprep.subr.bf16.mxu0 0
        %3568 = vmatpush1.bf16.msra.mxu0 0
        %3569 = vmatprep.subr.bf16.mxu0 0
        %3570 = vmatpush1.bf16.msra.mxu0 0
        %3571 = vmatprep.subr.bf16.mxu0 0
        %3572 = vmatpush1.bf16.msra.mxu0 0
        %3573 = vmatprep.subr.bf16.mxu0 0
        %3574 = vmatpush1.bf16.msra.mxu0 0
        %3575 = vmatprep.mubr.bf16.mxu0 0
        %3576 = vmatmul.mubr.bf16.gmra.mrb[0].mxu0 %v3471
        %v3577 = vpop.f32.mrb[0].mxu0
        %v3578 = vadd.f32 %v3493, %v3577
        %v3579 = vpop.f32.mrb[0].mxu0
        %v3580 = vpop.f32.mrb[0].mxu0
        %v3581 = vadd.f32 %v3493, %v3580
        %v3582 = vpop.f32.mrb[0].mxu0
        %3583 = vmatprep.mubr.bf16.mxu0 0
        %3584 = vmatmul.mubr.bf16.gmra.mrb[0].mxu0 %v3472
        %v3585 = vpop.f32.mrb[0].mxu0
        %v3586 = vadd.f32 %v3493, %v3585
        %v3587 = vpop.f32.mrb[0].mxu0
        %v3588 = vpop.f32.mrb[0].mxu0
        %v3589 = vadd.f32 %v3493, %v3588
        %v3590 = vpop.f32.mrb[0].mxu0
        %3591 = vdwg.mxu0
        %v3592 = vmax.f32 %v3578, 0.0
        %v3593 = vmax.f32 %v3581, 0.0
        %v3594 = vmax.f32 %v3586, 0.0
        %v3595 = vmax.f32 %v3589, 0.0
        %v3596 = vadd.f32 %v3592, %v3338
        %v3597 = vadd.f32 %v3593, %v3339
        %v3598 = vadd.f32 %v3594, %v3340
        %v3599 = vadd.f32 %v3595, %v3341
        %v3600 = vmax.f32 %v3596, 0.0
        %v3601 = vmax.f32 %v3597, 0.0
        %v3602 = vmax.f32 %v3598, 0.0
        %v3603 = vmax.f32 %v3599, 0.0
        %s3604 = scalar_lea.vmem %s17, 14
        %v3605 = vld [vmem:[%s3604] sm:$0x1]
        %v3606 = vpack.c.bf16 %v3601, %v3600
        %v3607 = vpack.c.bf16 %v3603, %v3602
        %v3608 = vld [vmem:[#allocation19] sm:$0xf]
        %v3609 = vld [vmem:[#allocation19 + $0x4] sm:$0xf]
        %v3610 = vld [vmem:[#allocation19 + $0x8] sm:$0xf]
        %v3611 = vld [vmem:[#allocation19 + $0xc] sm:$0xf]
        %v3612 = vld [vmem:[#allocation19 + $0x10] sm:$0xf]
        %v3613 = vld [vmem:[#allocation19 + $0x14] sm:$0xf]
        %v3614 = vld [vmem:[#allocation19 + $0x18] sm:$0xf]
        %v3615 = vld [vmem:[#allocation19 + $0x1c] sm:$0xf]
        %v3616 = vld [vmem:[#allocation19 + $0x20] sm:$0xf]
        %v3617 = vld [vmem:[#allocation19 + $0x24] sm:$0xf]
        %v3618 = vld [vmem:[#allocation19 + $0x28] sm:$0xf]
        %v3619 = vld [vmem:[#allocation19 + $0x2c] sm:$0xf]
        %v3620 = vld [vmem:[#allocation19 + $0x30] sm:$0xf]
        %v3621 = vld [vmem:[#allocation19 + $0x34] sm:$0xf]
        %v3622 = vld [vmem:[#allocation19 + $0x38] sm:$0xf]
        %v3623 = vld [vmem:[#allocation19 + $0x3c] sm:$0xf]
        %v3625 = vlaneseq
        %v3626 = vshrl.u32 %v3625, 7
        %v3627 = vsub.s32 0, %v3626
        %v3628 = vrot.slane %v3605, %v3627
        %v3646 = vunpack.c.l.b16 %v3608
        %v3647 = vunpack.c.l.b16 %v3609
        %v3648 = vunpack.c.l.b16 %v3610
        %v3649 = vunpack.c.l.b16 %v3611
        %v3650 = vunpack.c.l.b16 %v3612
        %v3651 = vunpack.c.l.b16 %v3613
        %v3652 = vunpack.c.l.b16 %v3614
        %v3653 = vunpack.c.l.b16 %v3615
        %v3654 = vunpack.c.l.b16 %v3616
        %v3655 = vunpack.c.l.b16 %v3617
        %v3656 = vunpack.c.l.b16 %v3618
        %v3657 = vunpack.c.l.b16 %v3619
        %v3658 = vunpack.c.l.b16 %v3620
        %v3659 = vunpack.c.l.b16 %v3621
        %v3660 = vunpack.c.l.b16 %v3622
        %v3661 = vunpack.c.l.b16 %v3623
        %v3662 = vpack.c.b16 %v3647, %v3646
        %v3663 = vpack.c.b16 %v3649, %v3648
        %v3664 = vpack.c.b16 %v3651, %v3650
        %v3665 = vpack.c.b16 %v3653, %v3652
        %v3666 = vpack.c.b16 %v3655, %v3654
        %v3667 = vpack.c.b16 %v3657, %v3656
        %v3668 = vpack.c.b16 %v3659, %v3658
        %v3669 = vpack.c.b16 %v3661, %v3660
        %3678 = vmatprep.subr.bf16.mxu0 0
        %3679 = vmatpush1.bf16.msra.mxu0 %v3662
        %3680 = vmatprep.subr.bf16.mxu0 0
        %3681 = vmatpush1.bf16.msra.mxu0 %v3663
        %3682 = vmatprep.subr.bf16.mxu0 0
        %3683 = vmatpush1.bf16.msra.mxu0 %v3664
        %3684 = vmatprep.subr.bf16.mxu0 0
        %3685 = vmatpush1.bf16.msra.mxu0 %v3665
        %3686 = vmatprep.subr.bf16.mxu0 0
        %3687 = vmatpush1.bf16.msra.mxu0 %v3666
        %3688 = vmatprep.subr.bf16.mxu0 0
        %3689 = vmatpush1.bf16.msra.mxu0 %v3667
        %3690 = vmatprep.subr.bf16.mxu0 0
        %3691 = vmatpush1.bf16.msra.mxu0 %v3668
        %3692 = vmatprep.subr.bf16.mxu0 0
        %3693 = vmatpush1.bf16.msra.mxu0 %v3669
        %3694 = vmatprep.subr.bf16.mxu0 0
        %3695 = vmatpush1.bf16.msra.mxu0 0
        %3696 = vmatprep.subr.bf16.mxu0 0
        %3697 = vmatpush1.bf16.msra.mxu0 0
        %3698 = vmatprep.subr.bf16.mxu0 0
        %3699 = vmatpush1.bf16.msra.mxu0 0
        %3700 = vmatprep.subr.bf16.mxu0 0
        %3701 = vmatpush1.bf16.msra.mxu0 0
        %3702 = vmatprep.subr.bf16.mxu0 0
        %3703 = vmatpush1.bf16.msra.mxu0 0
        %3704 = vmatprep.subr.bf16.mxu0 0
        %3705 = vmatpush1.bf16.msra.mxu0 0
        %3706 = vmatprep.subr.bf16.mxu0 0
        %3707 = vmatpush1.bf16.msra.mxu0 0
        %3708 = vmatprep.subr.bf16.mxu0 0
        %3709 = vmatpush1.bf16.msra.mxu0 0
        %3710 = vmatprep.mubr.bf16.mxu0 0
        %3711 = vmatmul.mubr.bf16.gmra.mrb[0].mxu0 %v3606
        %v3712 = vpop.f32.mrb[0].mxu0
        %v3713 = vadd.f32 %v3628, %v3712
        %v3714 = vpop.f32.mrb[0].mxu0
        %v3715 = vpop.f32.mrb[0].mxu0
        %v3716 = vadd.f32 %v3628, %v3715
        %v3717 = vpop.f32.mrb[0].mxu0
        %3718 = vmatprep.mubr.bf16.mxu0 0
        %3719 = vmatmul.mubr.bf16.gmra.mrb[0].mxu0 %v3607
        %v3720 = vpop.f32.mrb[0].mxu0
        %v3721 = vadd.f32 %v3628, %v3720
        %v3722 = vpop.f32.mrb[0].mxu0
        %v3723 = vpop.f32.mrb[0].mxu0
        %v3724 = vadd.f32 %v3628, %v3723
        %v3725 = vpop.f32.mrb[0].mxu0
        %3726 = vdwg.mxu0
        %v3727 = vmax.f32 %v3713, 0.0
        %v3728 = vmax.f32 %v3716, 0.0
        %v3729 = vmax.f32 %v3721, 0.0
        %v3730 = vmax.f32 %v3724, 0.0
        %s3731 = scalar_lea.vmem %s17, 15
        %v3732 = vld [vmem:[%s3731] sm:$0x1]
        %v3733 = vpack.c.bf16 %v3728, %v3727
        %v3734 = vpack.c.bf16 %v3730, %v3729
        %v3735 = vld [vmem:[#allocation20] sm:$0xf]
        %v3736 = vld [vmem:[#allocation20 + $0x4] sm:$0xf]
        %v3737 = vld [vmem:[#allocation20 + $0x8] sm:$0xf]
        %v3738 = vld [vmem:[#allocation20 + $0xc] sm:$0xf]
        %v3739 = vld [vmem:[#allocation20 + $0x10] sm:$0xf]
        %v3740 = vld [vmem:[#allocation20 + $0x14] sm:$0xf]
        %v3741 = vld [vmem:[#allocation20 + $0x18] sm:$0xf]
        %v3742 = vld [vmem:[#allocation20 + $0x1c] sm:$0xf]
        %v3743 = vld [vmem:[#allocation20 + $0x20] sm:$0xf]
        %v3744 = vld [vmem:[#allocation20 + $0x24] sm:$0xf]
        %v3745 = vld [vmem:[#allocation20 + $0x28] sm:$0xf]
        %v3746 = vld [vmem:[#allocation20 + $0x2c] sm:$0xf]
        %v3747 = vld [vmem:[#allocation20 + $0x30] sm:$0xf]
        %v3748 = vld [vmem:[#allocation20 + $0x34] sm:$0xf]
        %v3749 = vld [vmem:[#allocation20 + $0x38] sm:$0xf]
        %v3750 = vld [vmem:[#allocation20 + $0x3c] sm:$0xf]
        %v3752 = vlaneseq
        %v3753 = vshrl.u32 %v3752, 7
        %v3754 = vsub.s32 0, %v3753
        %v3755 = vrot.slane %v3732, %v3754
        %v3773 = vunpack.c.l.b16 %v3735
        %v3774 = vunpack.c.l.b16 %v3736
        %v3775 = vunpack.c.l.b16 %v3737
        %v3776 = vunpack.c.l.b16 %v3738
        %v3777 = vunpack.c.l.b16 %v3739
        %v3778 = vunpack.c.l.b16 %v3740
        %v3779 = vunpack.c.l.b16 %v3741
        %v3780 = vunpack.c.l.b16 %v3742
        %v3781 = vunpack.c.l.b16 %v3743
        %v3782 = vunpack.c.l.b16 %v3744
        %v3783 = vunpack.c.l.b16 %v3745
        %v3784 = vunpack.c.l.b16 %v3746
        %v3785 = vunpack.c.l.b16 %v3747
        %v3786 = vunpack.c.l.b16 %v3748
        %v3787 = vunpack.c.l.b16 %v3749
        %v3788 = vunpack.c.l.b16 %v3750
        %v3789 = vpack.c.b16 %v3774, %v3773
        %v3790 = vpack.c.b16 %v3776, %v3775
        %v3791 = vpack.c.b16 %v3778, %v3777
        %v3792 = vpack.c.b16 %v3780, %v3779
        %v3793 = vpack.c.b16 %v3782, %v3781
        %v3794 = vpack.c.b16 %v3784, %v3783
        %v3795 = vpack.c.b16 %v3786, %v3785
        %v3796 = vpack.c.b16 %v3788, %v3787
        %3805 = vmatprep.subr.bf16.mxu0 0
        %3806 = vmatpush1.bf16.msra.mxu0 %v3789
        %3807 = vmatprep.subr.bf16.mxu0 0
        %3808 = vmatpush1.bf16.msra.mxu0 %v3790
        %3809 = vmatprep.subr.bf16.mxu0 0
        %3810 = vmatpush1.bf16.msra.mxu0 %v3791
        %3811 = vmatprep.subr.bf16.mxu0 0
        %3812 = vmatpush1.bf16.msra.mxu0 %v3792
        %3813 = vmatprep.subr.bf16.mxu0 0
        %3814 = vmatpush1.bf16.msra.mxu0 %v3793
        %3815 = vmatprep.subr.bf16.mxu0 0
        %3816 = vmatpush1.bf16.msra.mxu0 %v3794
        %3817 = vmatprep.subr.bf16.mxu0 0
        %3818 = vmatpush1.bf16.msra.mxu0 %v3795
        %3819 = vmatprep.subr.bf16.mxu0 0
        %3820 = vmatpush1.bf16.msra.mxu0 %v3796
        %3821 = vmatprep.subr.bf16.mxu0 0
        %3822 = vmatpush1.bf16.msra.mxu0 0
        %3823 = vmatprep.subr.bf16.mxu0 0
        %3824 = vmatpush1.bf16.msra.mxu0 0
        %3825 = vmatprep.subr.bf16.mxu0 0
        %3826 = vmatpush1.bf16.msra.mxu0 0
        %3827 = vmatprep.subr.bf16.mxu0 0
        %3828 = vmatpush1.bf16.msra.mxu0 0
        %3829 = vmatprep.subr.bf16.mxu0 0
        %3830 = vmatpush1.bf16.msra.mxu0 0
        %3831 = vmatprep.subr.bf16.mxu0 0
        %3832 = vmatpush1.bf16.msra.mxu0 0
        %3833 = vmatprep.subr.bf16.mxu0 0
        %3834 = vmatpush1.bf16.msra.mxu0 0
        %3835 = vmatprep.subr.bf16.mxu0 0
        %3836 = vmatpush1.bf16.msra.mxu0 0
        %3837 = vmatprep.mubr.bf16.mxu0 0
        %3838 = vmatmul.mubr.bf16.gmra.mrb[0].mxu0 %v3733
        %v3839 = vpop.f32.mrb[0].mxu0
        %v3840 = vadd.f32 %v3755, %v3839
        %v3841 = vpop.f32.mrb[0].mxu0
        %v3842 = vpop.f32.mrb[0].mxu0
        %v3843 = vadd.f32 %v3755, %v3842
        %v3844 = vpop.f32.mrb[0].mxu0
        %3845 = vmatprep.mubr.bf16.mxu0 0
        %3846 = vmatmul.mubr.bf16.gmra.mrb[0].mxu0 %v3734
        %v3847 = vpop.f32.mrb[0].mxu0
        %v3848 = vadd.f32 %v3755, %v3847
        %v3849 = vpop.f32.mrb[0].mxu0
        %v3850 = vpop.f32.mrb[0].mxu0
        %v3851 = vadd.f32 %v3755, %v3850
        %v3852 = vpop.f32.mrb[0].mxu0
        %3853 = vdwg.mxu0
        %v3854 = vmax.f32 %v3840, 0.0
        %v3855 = vmax.f32 %v3843, 0.0
        %v3856 = vmax.f32 %v3848, 0.0
        %v3857 = vmax.f32 %v3851, 0.0
        %v3858 = vadd.f32 %v3854, %v3600
        %v3859 = vadd.f32 %v3855, %v3601
        %v3860 = vadd.f32 %v3856, %v3602
        %v3861 = vadd.f32 %v3857, %v3603
        %v3862 = vmax.f32 %v3858, 0.0
        %v3863 = vmax.f32 %v3859, 0.0
        %v3864 = vmax.f32 %v3860, 0.0
        %v3865 = vmax.f32 %v3861, 0.0
        %v3866 = vpack.c.bf16 %v3863, %v3862
        %v3867 = vpack.c.bf16 %v3865, %v3864
        %v3868 = vld [vmem:[#allocation25] sm:$0xf]
        %v3869 = vld [vmem:[#allocation25 + $0x4] sm:$0xf]
        %v3870 = vld [vmem:[#allocation25 + $0x8] sm:$0xf]
        %v3871 = vld [vmem:[#allocation25 + $0xc] sm:$0xf]
        %v3872 = vld [vmem:[#allocation25 + $0x10] sm:$0xf]
        %v3873 = vld [vmem:[#allocation25 + $0x14] sm:$0xf]
        %v3874 = vld [vmem:[#allocation25 + $0x18] sm:$0xf]
        %v3875 = vld [vmem:[#allocation25 + $0x1c] sm:$0xf]
        %v3876 = vld [vmem:[#allocation25 + $0x20] sm:$0xf]
        %v3877 = vld [vmem:[#allocation25 + $0x24] sm:$0xf]
        %v3878 = vld [vmem:[#allocation25 + $0x28] sm:$0xf]
        %v3879 = vld [vmem:[#allocation25 + $0x2c] sm:$0xf]
        %v3880 = vld [vmem:[#allocation25 + $0x30] sm:$0xf]
        %v3881 = vld [vmem:[#allocation25 + $0x34] sm:$0xf]
        %v3882 = vld [vmem:[#allocation25 + $0x38] sm:$0xf]
        %v3883 = vld [vmem:[#allocation25 + $0x3c] sm:$0xf]
        %v3884 = vld [vmem:[#allocation26] sm:$0x1]
        %v3886 = vlaneseq
        %v3887 = vshrl.u32 %v3886, 7
        %v3888 = vsub.s32 0, %v3887
        %v3889 = vrot.slane %v3884, %v3888
        %v3907 = vunpack.c.l.b16 %v3868
        %v3908 = vunpack.c.l.b16 %v3869
        %v3909 = vunpack.c.l.b16 %v3870
        %v3910 = vunpack.c.l.b16 %v3871
        %v3911 = vunpack.c.l.b16 %v3872
        %v3912 = vunpack.c.l.b16 %v3873
        %v3913 = vunpack.c.l.b16 %v3874
        %v3914 = vunpack.c.l.b16 %v3875
        %v3915 = vunpack.c.l.b16 %v3876
        %v3916 = vunpack.c.l.b16 %v3877
        %v3917 = vunpack.c.l.b16 %v3878
        %v3918 = vunpack.c.l.b16 %v3879
        %v3919 = vunpack.c.l.b16 %v3880
        %v3920 = vunpack.c.l.b16 %v3881
        %v3921 = vunpack.c.l.b16 %v3882
        %v3922 = vunpack.c.l.b16 %v3883
        %v3923 = vpack.c.b16 %v3908, %v3907
        %v3924 = vpack.c.b16 %v3910, %v3909
        %v3925 = vpack.c.b16 %v3912, %v3911
        %v3926 = vpack.c.b16 %v3914, %v3913
        %v3927 = vpack.c.b16 %v3916, %v3915
        %v3928 = vpack.c.b16 %v3918, %v3917
        %v3929 = vpack.c.b16 %v3920, %v3919
        %v3930 = vpack.c.b16 %v3922, %v3921
        %3939 = vmatprep.subr.bf16.mxu0 0
        %3940 = vmatpush1.bf16.msra.mxu0 %v3923
        %3941 = vmatprep.subr.bf16.mxu0 0
        %3942 = vmatpush1.bf16.msra.mxu0 %v3924
        %3943 = vmatprep.subr.bf16.mxu0 0
        %3944 = vmatpush1.bf16.msra.mxu0 %v3925
        %3945 = vmatprep.subr.bf16.mxu0 0
        %3946 = vmatpush1.bf16.msra.mxu0 %v3926
        %3947 = vmatprep.subr.bf16.mxu0 0
        %3948 = vmatpush1.bf16.msra.mxu0 %v3927
        %3949 = vmatprep.subr.bf16.mxu0 0
        %3950 = vmatpush1.bf16.msra.mxu0 %v3928
        %3951 = vmatprep.subr.bf16.mxu0 0
        %3952 = vmatpush1.bf16.msra.mxu0 %v3929
        %3953 = vmatprep.subr.bf16.mxu0 0
        %3954 = vmatpush1.bf16.msra.mxu0 %v3930
        %3955 = vmatprep.subr.bf16.mxu0 0
        %3956 = vmatpush1.bf16.msra.mxu0 0
        %3957 = vmatprep.subr.bf16.mxu0 0
        %3958 = vmatpush1.bf16.msra.mxu0 0
        %3959 = vmatprep.subr.bf16.mxu0 0
        %3960 = vmatpush1.bf16.msra.mxu0 0
        %3961 = vmatprep.subr.bf16.mxu0 0
        %3962 = vmatpush1.bf16.msra.mxu0 0
        %3963 = vmatprep.subr.bf16.mxu0 0
        %3964 = vmatpush1.bf16.msra.mxu0 0
        %3965 = vmatprep.subr.bf16.mxu0 0
        %3966 = vmatpush1.bf16.msra.mxu0 0
        %3967 = vmatprep.subr.bf16.mxu0 0
        %3968 = vmatpush1.bf16.msra.mxu0 0
        %3969 = vmatprep.subr.bf16.mxu0 0
        %3970 = vmatpush1.bf16.msra.mxu0 0
        %3971 = vmatprep.mubr.bf16.mxu0 0
        %3972 = vmatmul.mubr.bf16.gmra.mrb[0].mxu0 %v3866
        %v3973 = vpop.f32.mrb[0].mxu0
        %v3974 = vadd.f32 %v3889, %v3973
        %v3975 = vpop.f32.mrb[0].mxu0
        %v3976 = vpop.f32.mrb[0].mxu0
        %v3977 = vadd.f32 %v3889, %v3976
        %v3978 = vpop.f32.mrb[0].mxu0
        %3979 = vmatprep.mubr.bf16.mxu0 0
        %3980 = vmatmul.mubr.bf16.gmra.mrb[0].mxu0 %v3867
        %v3981 = vpop.f32.mrb[0].mxu0
        %v3982 = vadd.f32 %v3889, %v3981
        %v3983 = vpop.f32.mrb[0].mxu0
        %v3984 = vpop.f32.mrb[0].mxu0
        %v3985 = vadd.f32 %v3889, %v3984
        %v3986 = vpop.f32.mrb[0].mxu0
        %3987 = vdwg.mxu0
        %v3988 = vmax.f32 %v3974, 0.0
        %v3989 = vmax.f32 %v3977, 0.0
        %v3990 = vmax.f32 %v3982, 0.0
        %v3991 = vmax.f32 %v3985, 0.0
        %v3992 = vpack.c.bf16 %v3989, %v3988
        %v3993 = vpack.c.bf16 %v3991, %v3990
        %v3994 = vld [vmem:[%s22] sm:$0xf]
        %v3995 = vld [vmem:[%s22 + $0x4] sm:$0xf]
        %v3996 = vld [vmem:[%s22 + $0x8] sm:$0xf]
        %v3997 = vld [vmem:[%s22 + $0xc] sm:$0xf]
        %v3998 = vld [vmem:[%s22 + $0x10] sm:$0xf]
        %v3999 = vld [vmem:[%s22 + $0x14] sm:$0xf]
        %v4000 = vld [vmem:[%s22 + $0x18] sm:$0xf]
        %v4001 = vld [vmem:[%s22 + $0x1c] sm:$0xf]
        %v4002 = vld [vmem:[%s22 + $0x20] sm:$0xf]
        %v4003 = vld [vmem:[%s22 + $0x24] sm:$0xf]
        %v4004 = vld [vmem:[%s22 + $0x28] sm:$0xf]
        %v4005 = vld [vmem:[%s22 + $0x2c] sm:$0xf]
        %v4006 = vld [vmem:[%s22 + $0x30] sm:$0xf]
        %v4007 = vld [vmem:[%s22 + $0x34] sm:$0xf]
        %v4008 = vld [vmem:[%s22 + $0x38] sm:$0xf]
        %v4009 = vld [vmem:[%s22 + $0x3c] sm:$0xf]
        %v4026 = vunpack.c.l.b16 %v3994
        %v4027 = vunpack.c.l.b16 %v3995
        %v4028 = vunpack.c.l.b16 %v3996
        %v4029 = vunpack.c.l.b16 %v3997
        %v4030 = vunpack.c.l.b16 %v3998
        %v4031 = vunpack.c.l.b16 %v3999
        %v4032 = vunpack.c.l.b16 %v4000
        %v4033 = vunpack.c.l.b16 %v4001
        %v4034 = vunpack.c.l.b16 %v4002
        %v4035 = vunpack.c.l.b16 %v4003
        %v4036 = vunpack.c.l.b16 %v4004
        %v4037 = vunpack.c.l.b16 %v4005
        %v4038 = vunpack.c.l.b16 %v4006
        %v4039 = vunpack.c.l.b16 %v4007
        %v4040 = vunpack.c.l.b16 %v4008
        %v4041 = vunpack.c.l.b16 %v4009
        %v4042 = vpack.c.b16 %v4027, %v4026
        %v4043 = vpack.c.b16 %v4029, %v4028
        %v4044 = vpack.c.b16 %v4031, %v4030
        %v4045 = vpack.c.b16 %v4033, %v4032
        %v4046 = vpack.c.b16 %v4035, %v4034
        %v4047 = vpack.c.b16 %v4037, %v4036
        %v4048 = vpack.c.b16 %v4039, %v4038
        %v4049 = vpack.c.b16 %v4041, %v4040
        %4058 = vmatprep.subr.bf16.mxu0 0
        %4059 = vmatpush1.bf16.msra.mxu0 %v4042
        %4060 = vmatprep.subr.bf16.mxu0 0
        %4061 = vmatpush1.bf16.msra.mxu0 %v4043
        %4062 = vmatprep.subr.bf16.mxu0 0
        %4063 = vmatpush1.bf16.msra.mxu0 %v4044
        %4064 = vmatprep.subr.bf16.mxu0 0
        %4065 = vmatpush1.bf16.msra.mxu0 %v4045
        %4066 = vmatprep.subr.bf16.mxu0 0
        %4067 = vmatpush1.bf16.msra.mxu0 %v4046
        %4068 = vmatprep.subr.bf16.mxu0 0
        %4069 = vmatpush1.bf16.msra.mxu0 %v4047
        %4070 = vmatprep.subr.bf16.mxu0 0
        %4071 = vmatpush1.bf16.msra.mxu0 %v4048
        %4072 = vmatprep.subr.bf16.mxu0 0
        %4073 = vmatpush1.bf16.msra.mxu0 %v4049
        %4074 = vmatprep.subr.bf16.mxu0 0
        %4075 = vmatpush1.bf16.msra.mxu0 0
        %4076 = vmatprep.subr.bf16.mxu0 0
        %4077 = vmatpush1.bf16.msra.mxu0 0
        %4078 = vmatprep.subr.bf16.mxu0 0
        %4079 = vmatpush1.bf16.msra.mxu0 0
        %4080 = vmatprep.subr.bf16.mxu0 0
        %4081 = vmatpush1.bf16.msra.mxu0 0
        %4082 = vmatprep.subr.bf16.mxu0 0
        %4083 = vmatpush1.bf16.msra.mxu0 0
        %4084 = vmatprep.subr.bf16.mxu0 0
        %4085 = vmatpush1.bf16.msra.mxu0 0
        %4086 = vmatprep.subr.bf16.mxu0 0
        %4087 = vmatpush1.bf16.msra.mxu0 0
        %4088 = vmatprep.subr.bf16.mxu0 0
        %4089 = vmatpush1.bf16.msra.mxu0 0
        %4090 = vmatprep.mubr.bf16.mxu0 0
        %4091 = vmatmul.mubr.bf16.gmra.mrb[0].mxu0 %v3992
        %v4092 = vpop.f32.mrb[0].mxu0
        %v4093 = vadd.f32 0.0, %v4092
        %v4094 = vpop.f32.mrb[0].mxu0
        %v4095 = vpop.f32.mrb[0].mxu0
        %v4096 = vadd.f32 0.0, %v4095
        %v4097 = vpop.f32.mrb[0].mxu0
        %4098 = vmatprep.mubr.bf16.mxu0 0
        %4099 = vmatmul.mubr.bf16.gmra.mrb[0].mxu0 %v3993
        %v4100 = vpop.f32.mrb[0].mxu0
        %v4101 = vadd.f32 0.0, %v4100
        %v4102 = vpop.f32.mrb[0].mxu0
        %v4103 = vpop.f32.mrb[0].mxu0
        %v4104 = vadd.f32 0.0, %v4103
        %v4105 = vpop.f32.mrb[0].mxu0
        %4106 = vdwg.mxu0
        %v4107 = vld [vmem:[%s23] sm:$0xf]
        %v4108 = vld [vmem:[%s23 + $0x4] sm:$0xf]
        %v4109 = vld [vmem:[%s23 + $0x8] sm:$0xf]
        %v4110 = vld [vmem:[%s23 + $0xc] sm:$0xf]
        %v4111 = vld [vmem:[%s23 + $0x10] sm:$0xf]
        %v4112 = vld [vmem:[%s23 + $0x14] sm:$0xf]
        %v4113 = vld [vmem:[%s23 + $0x18] sm:$0xf]
        %v4114 = vld [vmem:[%s23 + $0x1c] sm:$0xf]
        %v4115 = vld [vmem:[%s23 + $0x20] sm:$0xf]
        %v4116 = vld [vmem:[%s23 + $0x24] sm:$0xf]
        %v4117 = vld [vmem:[%s23 + $0x28] sm:$0xf]
        %v4118 = vld [vmem:[%s23 + $0x2c] sm:$0xf]
        %v4119 = vld [vmem:[%s23 + $0x30] sm:$0xf]
        %v4120 = vld [vmem:[%s23 + $0x34] sm:$0xf]
        %v4121 = vld [vmem:[%s23 + $0x38] sm:$0xf]
        %v4122 = vld [vmem:[%s23 + $0x3c] sm:$0xf]
        %v4139 = vunpack.c.l.b16 %v4107
        %v4140 = vunpack.c.l.b16 %v4108
        %v4141 = vunpack.c.l.b16 %v4109
        %v4142 = vunpack.c.l.b16 %v4110
        %v4143 = vunpack.c.l.b16 %v4111
        %v4144 = vunpack.c.l.b16 %v4112
        %v4145 = vunpack.c.l.b16 %v4113
        %v4146 = vunpack.c.l.b16 %v4114
        %v4147 = vunpack.c.l.b16 %v4115
        %v4148 = vunpack.c.l.b16 %v4116
        %v4149 = vunpack.c.l.b16 %v4117
        %v4150 = vunpack.c.l.b16 %v4118
        %v4151 = vunpack.c.l.b16 %v4119
        %v4152 = vunpack.c.l.b16 %v4120
        %v4153 = vunpack.c.l.b16 %v4121
        %v4154 = vunpack.c.l.b16 %v4122
        %v4155 = vpack.c.b16 %v4140, %v4139
        %v4156 = vpack.c.b16 %v4142, %v4141
        %v4157 = vpack.c.b16 %v4144, %v4143
        %v4158 = vpack.c.b16 %v4146, %v4145
        %v4159 = vpack.c.b16 %v4148, %v4147
        %v4160 = vpack.c.b16 %v4150, %v4149
        %v4161 = vpack.c.b16 %v4152, %v4151
        %v4162 = vpack.c.b16 %v4154, %v4153
        %4171 = vmatprep.subr.bf16.mxu0 0
        %4172 = vmatpush1.bf16.msra.mxu0 %v4155
        %4173 = vmatprep.subr.bf16.mxu0 0
        %4174 = vmatpush1.bf16.msra.mxu0 %v4156
        %4175 = vmatprep.subr.bf16.mxu0 0
        %4176 = vmatpush1.bf16.msra.mxu0 %v4157
        %4177 = vmatprep.subr.bf16.mxu0 0
        %4178 = vmatpush1.bf16.msra.mxu0 %v4158
        %4179 = vmatprep.subr.bf16.mxu0 0
        %4180 = vmatpush1.bf16.msra.mxu0 %v4159
        %4181 = vmatprep.subr.bf16.mxu0 0
        %4182 = vmatpush1.bf16.msra.mxu0 %v4160
        %4183 = vmatprep.subr.bf16.mxu0 0
        %4184 = vmatpush1.bf16.msra.mxu0 %v4161
        %4185 = vmatprep.subr.bf16.mxu0 0
        %4186 = vmatpush1.bf16.msra.mxu0 %v4162
        %4187 = vmatprep.subr.bf16.mxu0 0
        %4188 = vmatpush1.bf16.msra.mxu0 0
        %4189 = vmatprep.subr.bf16.mxu0 0
        %4190 = vmatpush1.bf16.msra.mxu0 0
        %4191 = vmatprep.subr.bf16.mxu0 0
        %4192 = vmatpush1.bf16.msra.mxu0 0
        %4193 = vmatprep.subr.bf16.mxu0 0
        %4194 = vmatpush1.bf16.msra.mxu0 0
        %4195 = vmatprep.subr.bf16.mxu0 0
        %4196 = vmatpush1.bf16.msra.mxu0 0
        %4197 = vmatprep.subr.bf16.mxu0 0
        %4198 = vmatpush1.bf16.msra.mxu0 0
        %4199 = vmatprep.subr.bf16.mxu0 0
        %4200 = vmatpush1.bf16.msra.mxu0 0
        %4201 = vmatprep.subr.bf16.mxu0 0
        %4202 = vmatpush1.bf16.msra.mxu0 0
        %4203 = vmatprep.mubr.bf16.mxu0 0
        %4204 = vmatmul.mubr.bf16.gmra.mrb[0].mxu0 %v3992
        %v4205 = vpop.f32.mrb[0].mxu0
        %v4206 = vadd.f32 0.0, %v4205
        %v4207 = vpop.f32.mrb[0].mxu0
        %v4208 = vpop.f32.mrb[0].mxu0
        %v4209 = vadd.f32 0.0, %v4208
        %v4210 = vpop.f32.mrb[0].mxu0
        %4211 = vmatprep.mubr.bf16.mxu0 0
        %4212 = vmatmul.mubr.bf16.gmra.mrb[0].mxu0 %v3993
        %v4213 = vpop.f32.mrb[0].mxu0
        %v4214 = vadd.f32 0.0, %v4213
        %v4215 = vpop.f32.mrb[0].mxu0
        %v4216 = vpop.f32.mrb[0].mxu0
        %v4217 = vadd.f32 0.0, %v4216
        %v4218 = vpop.f32.mrb[0].mxu0
        %4219 = vdwg.mxu0
        %v4220 = vsel %vm1029, %v4093, -inf
        %v4221 = vsel %vm1029, %v4096, -inf
        %v4222 = vsel %vm1029, %v4101, -inf
        %v4223 = vsel %vm1029, %v4104, -inf
        %v4224 = vmax.f32 %v4220, %v4221
        %v4225 = vmax.f32 %v4222, %v4223
        %v4226 = vmax.f32 %v4224, %v4225
        %v4227 = vrot.slane %v4226, 4
        %v4228 = vmax.f32 %v4226, %v4227
        %v4229 = vrot.slane %v4228, 2
        %v4230 = vmax.f32 %v4228, %v4229
        %v4231 = vrot.slane %v4230, 1
        %v4232 = vmax.f32 %v4230, %v4231
        %v4233 = vsub.f32 %v4093, %v4232
        %v4234 = vsub.f32 %v4096, %v4232
        %v4235 = vsub.f32 %v4101, %v4232
        %v4236 = vsub.f32 %v4104, %v4232
        %v4237 = vmul.f32 %v4233, 1.442695
        %v4238 = vpow.pop %v4237
        %v4239 = vmul.f32 %v4234, 1.442695
        %v4240 = vpow.pop %v4239
        %v4241 = vmul.f32 %v4235, 1.442695
        %v4242 = vpow.pop %v4241
        %v4243 = vmul.f32 %v4236, 1.442695
        %v4244 = vpow.pop %v4243
        %v4245 = vsel %vm1029, %v4238, 0.0
        %v4246 = vsel %vm1029, %v4240, 0.0
        %v4247 = vadd.f32 %v4245, %v4246
        %v4248 = vsel %vm1029, %v4242, 0.0
        %v4249 = vadd.f32 %v4247, %v4248
        %v4250 = vsel %vm1029, %v4244, 0.0
        %v4251 = vadd.f32 %v4249, %v4250
        %v4252 = vrot.slane %v4251, 4
        %v4253 = vadd.f32 %v4251, %v4252
        %v4254 = vrot.slane %v4253, 2
        %v4255 = vadd.f32 %v4253, %v4254
        %v4256 = vrot.slane %v4255, 1
        %v4257 = vadd.f32 %v4255, %v4256
        %v4258 = vrcp.pop %v4257
        %v4259 = vmul.f32 %v4257, %v4258
        %v4260 = vsub.f32 2.0, %v4259
        %v4261 = vmul.f32 %v4258, %v4260
        %v4262 = vmul.f32 %v4238, %v4206
        %v4263 = vmul.f32 %v4240, %v4209
        %v4264 = vmul.f32 %v4242, %v4214
        %v4265 = vmul.f32 %v4244, %v4217
        %v4266 = vsel %vm1029, %v4262, 0.0
        %v4267 = vsel %vm1029, %v4263, 0.0
        %v4268 = vadd.f32 %v4266, %v4267
        %v4269 = vsel %vm1029, %v4264, 0.0
        %v4270 = vadd.f32 %v4268, %v4269
        %v4271 = vsel %vm1029, %v4265, 0.0
        %v4272 = vadd.f32 %v4270, %v4271
        %v4273 = vrot.slane %v4272, 4
        %v4274 = vadd.f32 %v4272, %v4273
        %v4275 = vrot.slane %v4274, 2
        %v4276 = vadd.f32 %v4274, %v4275
        %v4277 = vrot.slane %v4276, 1
        %v4278 = vadd.f32 %v4276, %v4277
        %v4279 = vmul.f32 %v4278, %v4261
        %v4280 = vld [vmem:[#allocation2] sm:$0x1]
        %4282 = vset.pattern.permute.xlu0 0
        %4283 = vperm.xlu0 %4282, %v4280
        %v4284 = vpop.permute.xlu0 %4283
        %v4286 = vlaneseq
        %v4287 = vshrl.u32 %v4286, 7
        %v4288 = vsub.s32 0, %v4287
        %v4289 = vrot.slane %v4284, %v4288
        %v4290 = vadd.f32 %v4279, %v4289
        %vm4291 = vcmask 122880
        %4292 = vst.msk [vmem:[%s991] sm:$0x1] %vm4291, %v4290
        %p4293 = scmp.lt.s32.totalorder %s47, 1
        %s4294 = scalar_select %p4293, %s47, 1
        %s4295 = scalar_lea.vmem %s25, %s4294
        // Predicated region
        $region185: #{call_predictor_pallas.1} parent=119 // pred_check
          %p4296 = pneg %p595
        $region186: #{call_predictor_pallas.1} parent=119 // pred_check_branch
          %4298 = sbr.rel (%p4296) target = $region188
        $region187: #{call_predictor_pallas.1} parent=119 // pred_region
          _
        $region188: #{call_predictor_pallas.1} parent=119 // pred_fallthru
          _
      $region120: #{call_predictor_pallas.1} parent=5 // pred_fallthru
        _
      %p4299 = scmp.le.s32.totalorder 2, %s42
      // Predicated region
      $region189: #{call_predictor_pallas.1} parent=5 // pred_check
        %p4300 = pneg %p4299
      $region190: #{call_predictor_pallas.1} parent=5 // pred_check_branch
        %4302 = sbr.rel (%p4300) target = $region192
      $region191: #{call_predictor_pallas.1} parent=5 // pred_region
        %s4303 = ssub.s32 %s42, 2
        // Predicated region
        $region193: #{call_predictor_pallas.1} parent=191 // pred_check
          %p4304 = pneg %p601
        $region194: #{call_predictor_pallas.1} parent=191 // pred_check_branch
          %4306 = sbr.rel (%p4304) target = $region196
        $region195: #{call_predictor_pallas.1} parent=191 // pred_region
          %p4307 = scmp.lt.s32.totalorder %s48, 1
          %s4308 = scalar_select %p4307, %s48, 1
          %s4309 = scalar_lea.vmem %s25, %s4308
        $region196: #{call_predictor_pallas.1} parent=191 // pred_fallthru
          _
      $region192: #{call_predictor_pallas.1} parent=5 // pred_fallthru
        _
    $region6: #{call_predictor_pallas.1} parent=1 // loop_footer
      %s46 = sadd.s32 1, %s42
    $region7: #{call_predictor_pallas.1} parent=1 // loop_footer_branch
      %41 = sbr.rel target = $region3
    $region8: #{call_predictor_pallas.1} parent=1 // loop_exit
      _
    %4310 = vsyncpa [#allocation4], 1
    %s4311 = scalar_lea.sflag [#allocation4], 1
    %4312 = vsyncpa %s4311, 1
    %4313 = vsyncpa [#allocation6], 1
    %4314 = vsyncpa [#allocation9], 1
    %4315 = vsyncpa [#allocation12], 1
    %4316 = vsyncpa [#allocation15], 1
    %4317 = vsyncpa [#allocation18], 1
    %4318 = vsyncpa [#allocation21], 1
    %4319 = vsyncpa [#allocation24], 1
    %4320 = vsyncpa [#allocation27], 1

</llo_original>
